<compile_context>
chip_gen: v7x
topology: tpu7x:2x2x1
jax: 0.10.0
libtpu: 0.0.40
codegen_flags: <defaults>
</compile_context>

<pallas_src>
import functools

import jax
import jax.numpy as jnp
from jax.experimental import pallas as pl
from jax.experimental.pallas import tpu as pltpu

NEG_SLOPE = 0.2
BN_EPS = 1e-5

C_IN = 25          # generator latent channels
C_IN_PAD = 32      # zero-padded to a clean sublane multiple for the bf16 weight
C1 = 256
C2 = 1024
C_CONV = 256       # channels after the k4/s2/p1 transposed conv
C_HEAD = 3         # RGB output
C_HEAD_PAD = 128   # lane-dense padded head width


# ------------------------------ tiling helpers ------------------------------

def _row_tile(P):
    """Sublane-aligned row tile TP and padded row count Pp (TP divides Pp)."""
    if P <= 128:
        TP = max(16, ((P + 15) // 16) * 16)
        return TP, TP
    TP = 128
    return TP, ((P + TP - 1) // TP) * TP


def _pad_rows(x, Pp, axis=0):
    if x.shape[axis] == Pp:
        return x
    pad = [(0, 0)] * x.ndim
    pad[axis] = (0, Pp - x.shape[axis])
    return jnp.pad(x, pad)


# ---------------------- kernel A: fused 1x1 conv stem ------------------------

def _stem_kernel(x_ref, w1_ref, b1_ref, w2_ref, b2_ref, o_ref):
    # ConvT(25->256,k1) + folded BN + LeakyReLU
    h = jnp.dot(x_ref[...], w1_ref[...], preferred_element_type=jnp.float32)
    h = h + b1_ref[...]
    h = jnp.where(h > 0, h, NEG_SLOPE * h)
    # TODO(synk): nn.Dropout(0.5) is identity in eval mode; training-mode PRNG masking omitted.
    # ConvT(256->1024,k1) + folded BN + LeakyReLU — intermediate stays in VMEM.
    h2 = jnp.dot(h.astype(jnp.bfloat16), w2_ref[...],
                 preferred_element_type=jnp.float32)
    h2 = h2 + b2_ref[...]
    h2 = jnp.where(h2 > 0, h2, NEG_SLOPE * h2)
    o_ref[...] = h2.astype(o_ref.dtype)


def stem(x, w1, b1, w2, b2):
    """x:(Pp,C_IN_PAD) bf16 -> (Pp,C2) bf16; two fused 1x1 conv + BN + lrelu layers."""
    Pp, cin = x.shape
    c1 = w1.shape[1]
    c2 = w2.shape[1]
    TP, _ = _row_tile(Pp)
    return pl.pallas_call(
        _stem_kernel,
        out_shape=jax.ShapeDtypeStruct((Pp, c2), jnp.bfloat16),
        grid_spec=pltpu.PrefetchScalarGridSpec(
            num_scalar_prefetch=0,
            grid=(Pp // TP,),
            in_specs=[
                pl.BlockSpec((TP, cin), lambda i: (i, 0)),
                pl.BlockSpec((cin, c1), lambda i: (0, 0)),
                pl.BlockSpec((1, c1), lambda i: (0, 0)),
                pl.BlockSpec((c1, c2), lambda i: (0, 0)),
                pl.BlockSpec((1, c2), lambda i: (0, 0)),
            ],
            out_specs=pl.BlockSpec((TP, c2), lambda i: (i, 0)),
        ),
        compiler_params=pltpu.CompilerParams(
            dimension_semantics=("parallel",)),
    )(x, w1, b1, w2, b2)


# ------ kernel B: ConvT(1024->256,k4,s2,p1) + BN + lrelu + 1x1 head + tanh ----
#
# Sub-pixel decomposition of the transposed conv: output pixel (2i+ph, 2j+pw)
# receives exactly 4 taps.  oh = 2*ih - 1 + kh  =>  even oh uses kh in {1,3}
# (ih = i, i-1); odd oh uses kh in {0,2} (ih = i+1, i); same along width.
# Per phase the 4 shifted inputs are gathered on the channel axis so the whole
# phase is one (TP, 4*C2) @ (4*C2, C_CONV) matmul accumulated in VMEM.

_TAP_K = {0: (1, 3), 1: (0, 2)}    # kernel tap indices per output parity
_TAP_D = {0: (0, -1), 1: (1, 0)}   # matching input spatial shifts per output parity


def _upconv_head_kernel(xg_ref, wg_ref, b_ref, wout_ref, o_ref):
    acc = jnp.dot(xg_ref[...], wg_ref[...], preferred_element_type=jnp.float32)
    h = acc + b_ref[...]                       # folded-BN shift
    h = jnp.where(h > 0, h, NEG_SLOPE * h)     # LeakyReLU(0.2)
    out = jnp.dot(h.astype(jnp.bfloat16), wout_ref[...],
                  preferred_element_type=jnp.float32)
    o_ref[...] = jnp.tanh(out).astype(o_ref.dtype)


def upconv_head(xg, wg, b, wout):
    """xg:(4,Pp,4*C2) bf16, wg:(4,4*C2,C_CONV) bf16 -> (4,Pp,C_HEAD_PAD) f32."""
    nph, Pp, c4 = xg.shape
    cconv = wg.shape[2]
    chead = wout.shape[1]
    TP, _ = _row_tile(Pp)
    return pl.pallas_call(
        _upconv_head_kernel,
        out_shape=jax.ShapeDtypeStruct((nph, Pp, chead), jnp.float32),
        grid_spec=pltpu.PrefetchScalarGridSpec(
            num_scalar_prefetch=0,
            grid=(nph, Pp // TP),   # phase outer -> per-phase weight block stays resident
            in_specs=[
                pl.BlockSpec((None, TP, c4), lambda p, i: (p, i, 0)),
                pl.BlockSpec((None, c4, cconv), lambda p, i: (p, 0, 0)),
                pl.BlockSpec((1, cconv), lambda p, i: (0, 0)),
                pl.BlockSpec((cconv, chead), lambda p, i: (0, 0)),
            ],
            out_specs=pl.BlockSpec((None, TP, chead), lambda p, i: (p, i, 0)),
        ),
        compiler_params=pltpu.CompilerParams(
            dimension_semantics=("parallel", "parallel")),
    )(xg, wg, b, wout)


def gather_phase_inputs(h_nhwc):
    """h:(N,H,W,C) -> (4, N*H*W, 4*C): per output phase the 4 contributing taps,
    concatenated on the channel axis (zeros at the image border)."""
    N, H, W, C = h_nhwc.shape
    hp = jnp.pad(h_nhwc, ((0, 0), (1, 1), (1, 1), (0, 0)))

    def shifted(dih, diw):
        return hp[:, 1 + dih:1 + dih + H, 1 + diw:1 + diw + W, :]

    phases = []
    for ph in range(2):
        for pw in range(2):
            taps = [shifted(_TAP_D[ph][a], _TAP_D[pw][b])
                    for a in range(2) for b in range(2)]
            phases.append(jnp.concatenate(taps, axis=-1).reshape(N * H * W, 4 * C))
    return jnp.stack(phases, axis=0)


def build_phase_weights(ws):
    """ws:(Cin,Cout,4,4) BN-scaled ConvT weight -> (4, 4*Cin, Cout); tap order
    matches gather_phase_inputs."""
    phases = []
    for ph in range(2):
        for pw in range(2):
            taps = [ws[:, :, _TAP_K[ph][a], _TAP_K[pw][b]]
                    for a in range(2) for b in range(2)]
            phases.append(jnp.concatenate(taps, axis=0))
    return jnp.stack(phases, axis=0)


# ------------------------------ parameter init -------------------------------

def _bn_fold(k, c):
    k1, k2, k3, k4 = jax.random.split(k, 4)
    gamma = jax.random.uniform(k1, (c,), jnp.float32, 0.5, 1.5)
    beta = 0.1 * jax.random.normal(k2, (c,), jnp.float32)
    mean = 0.1 * jax.random.normal(k3, (c,), jnp.float32)
    var = jax.random.uniform(k4, (c,), jnp.float32, 0.5, 1.5)
    scale = gamma / jnp.sqrt(var + BN_EPS)
    bias = beta - mean * scale
    return scale, bias


def init_params(key):
    ks = jax.random.split(key, 7)

    def conv_w(k, shape, fan_in):
        # PyTorch ConvTranspose2d default: kaiming_uniform(a=sqrt(5)) with
        # fan_in = out_channels * kH * kW  ->  U(-1/sqrt(fan_in), 1/sqrt(fan_in)).
        bound = 1.0 / jnp.sqrt(float(fan_in))
        return jax.random.uniform(k, shape, jnp.float32, -bound, bound)

    w_in = conv_w(ks[0], (C_IN, C1), C1 * 1 * 1)
    s_in, b_in = _bn_fold(ks[1], C1)
    w_l1a = conv_w(ks[2], (C1, C2), C2 * 1 * 1)
    s_l1a, b_l1a = _bn_fold(ks[3], C2)
    w_l1b = conv_w(ks[4], (C2, C_CONV, 4, 4), C_CONV * 4 * 4)
    s_l1b, b_l1b = _bn_fold(ks[5], C_CONV)
    w_out = conv_w(ks[6], (C_CONV, C_HEAD), C_HEAD * 1 * 1)

    p = {}
    # BN scales folded into bf16 weights ONCE here (not per forward pass).
    w_in_s = jnp.zeros((C_IN_PAD, C1), jnp.float32).at[:C_IN].set(w_in * s_in[None, :])
    p["w_in_s"] = w_in_s.astype(jnp.bfloat16)
    p["b_in"] = b_in.reshape(1, C1)
    p["w_l1a_s"] = (w_l1a * s_l1a[None, :]).astype(jnp.bfloat16)
    p["b_l1a"] = b_l1a.reshape(1, C2)
    p["w_l1b_scaled"] = (w_l1b * s_l1b[None, :, None, None]).astype(jnp.bfloat16)
    p["w_l1b_phase"] = build_phase_weights(p["w_l1b_scaled"])      # (4, 4096, 256) bf16
    p["b_l1b"] = b_l1b.reshape(1, C_CONV)
    w_out_pad = jnp.zeros((C_CONV, C_HEAD_PAD), jnp.float32).at[:, :C_HEAD].set(w_out)
    p["w_out_pad"] = w_out_pad.astype(jnp.bfloat16)
    return p


# -------------------------------- forward pass -------------------------------

def generator_forward(x, params, input_dimension_size):
    S = input_dimension_size
    x = x.reshape(-1, C_IN, S, S)                     # PyTorch x.view(-1, 25, S, S)
    N = x.shape[0]
    P = N * S * S
    TP, Pp = _row_tile(P)

    # NCHW -> (pixels, channels), zero-pad channels 25->32 and rows to the tile.
    x_pix = jnp.transpose(x, (0, 2, 3, 1)).reshape(P, C_IN)
    x_pix = jnp.pad(x_pix, ((0, 0), (0, C_IN_PAD - C_IN))).astype(jnp.bfloat16)
    h1 = stem(_pad_rows(x_pix, Pp), params["w_in_s"], params["b_in"],
              params["w_l1a_s"], params["b_l1a"])     # (Pp, 1024) bf16
    h1 = h1[:P].reshape(N, S, S, C2)

    # ConvT(k4,s2,p1) + BN + LeakyReLU + 1x1 head + tanh, one kernel over 4 phases.
    xg = _pad_rows(gather_phase_inputs(h1), Pp, axis=1)
    y = upconv_head(xg, params["w_l1b_phase"], params["b_l1b"],
                    params["w_out_pad"])              # (4, Pp, 128) f32

    # Depth-to-space: phase p = 2*ph + pw lands at output pixel (2i+ph, 2j+pw).
    y = y[:, :P, :C_HEAD].reshape(2, 2, N, S, S, C_HEAD)
    y = jnp.transpose(y, (2, 3, 0, 4, 1, 5)).reshape(N, 2 * S, 2 * S, C_HEAD)
    return jnp.transpose(y, (0, 3, 1, 2))             # NCHW


# -------------------------- pure-JAX reference (check) -----------------------

def reference_forward(x, params, input_dimension_size):
    """Non-Pallas reference using the same bf16-rounded folded weights."""
    S = input_dimension_size
    x = x.reshape(-1, C_IN, S, S)
    N = x.shape[0]
    h = jnp.transpose(x, (0, 2, 3, 1)).reshape(N * S * S, C_IN)
    h = jnp.pad(h, ((0, 0), (0, C_IN_PAD - C_IN)))
    h = h.astype(jnp.bfloat16).astype(jnp.float32)
    h = h @ params["w_in_s"].astype(jnp.float32) + params["b_in"]
    h = jnp.where(h > 0, h, NEG_SLOPE * h)
    h = h.astype(jnp.bfloat16).astype(jnp.float32)
    h = h @ params["w_l1a_s"].astype(jnp.float32) + params["b_l1a"]
    h = jnp.where(h > 0, h, NEG_SLOPE * h)
    h = h.astype(jnp.bfloat16).astype(jnp.float32).reshape(N, S, S, C2)

    w = params["w_l1b_scaled"].astype(jnp.float32)    # (1024, 256, 4, 4), BN scale folded
    taps = jnp.einsum("nhwc,cokl->nhwklo", h, w)
    Ho = Wo = 2 * S
    out = jnp.zeros((N, Ho + 2, Wo + 2, C_CONV), jnp.float32)
    for kh in range(4):
        for kw in range(4):
            out = out.at[:, kh:kh + 2 * S:2, kw:kw + 2 * S:2, :].add(
                taps[:, :, :, kh, kw, :])
    out = out[:, 1:1 + Ho, 1:1 + Wo, :] + params["b_l1b"]
    out = jnp.where(out > 0, out, NEG_SLOPE * out)
    out = out.astype(jnp.bfloat16).astype(jnp.float32)
    out = jnp.tanh(out.reshape(N * Ho * Wo, C_CONV)
                   @ params["w_out_pad"].astype(jnp.float32)[:, :C_HEAD])
    return jnp.transpose(out.reshape(N, Ho, Wo, C_HEAD), (0, 3, 1, 2))


# ------------------------------------ main ------------------------------------

if __name__ == "__main__":
    key = jax.random.PRNGKey(0)
    k_params, k_x = jax.random.split(key)

    S = 4                                            # input_dimension_size
    N = 2
    params = init_params(k_params)
    x = jax.random.normal(k_x, (N, C_IN, S, S), jnp.float32)

    fwd = jax.jit(functools.partial(generator_forward, input_dimension_size=S))
    y = jax.block_until_ready(fwd(x, params))

    assert y.shape == (N, 3, 2 * S, 2 * S), y.shape
    assert bool(jnp.all(jnp.isfinite(y)))
    assert bool(jnp.all(jnp.abs(y) <= 1.0 + 1e-6))   # tanh output range

    y_ref = reference_forward(x, params, S)
    max_err = float(jnp.max(jnp.abs(y - y_ref)))
    assert max_err < 2e-2, f"max abs error vs pure-JAX reference: {max_err}"

    print("KERNEL_OK")
</pallas_src>

<mosaic_0001>
module attributes {stable_mosaic.version = 11 : i64} {
  func.func @_stem_kernel(%arg0: i32, %arg1: memref<32x32xbf16, #tpu.memory_space<vmem>>, %arg2: memref<32x256xbf16, #tpu.memory_space<vmem>>, %arg3: memref<1x256xf32, #tpu.memory_space<vmem>>, %arg4: memref<256x1024xbf16, #tpu.memory_space<vmem>>, %arg5: memref<1x1024xf32, #tpu.memory_space<vmem>>, %arg6: memref<32x1024xbf16, #tpu.memory_space<vmem>>) attributes {dimension_semantics = [#tpu.dimension_semantics<parallel>], iteration_bounds = array<i64: 1>, scalar_prefetch = 0 : i64, scratch_operands = 0 : i64, tpu.core_type = #tpu.core_type<tc>, window_params = [{transform_indices = @transform_0, window_bounds = array<i64: 32, 32>}, {pipeline_mode = #tpu.pipeline_mode<synchronous>, transform_indices = @transform_1, window_bounds = array<i64: 32, 256>}, {pipeline_mode = #tpu.pipeline_mode<synchronous>, transform_indices = @transform_2, window_bounds = array<i64: 1, 256>}, {pipeline_mode = #tpu.pipeline_mode<synchronous>, transform_indices = @transform_3, window_bounds = array<i64: 256, 1024>}, {pipeline_mode = #tpu.pipeline_mode<synchronous>, transform_indices = @transform_4, window_bounds = array<i64: 1, 1024>}, {transform_indices = @transform_5, window_bounds = array<i64: 32, 1024>}]} {
    %c0 = arith.constant 0 : index
    %c0_0 = arith.constant 0 : index
    %0 = vector.load %arg1[%c0, %c0_0] : memref<32x32xbf16, #tpu.memory_space<vmem>>, vector<32x32xbf16>
    %c0_1 = arith.constant 0 : index
    %c0_2 = arith.constant 0 : index
    %1 = vector.load %arg2[%c0_1, %c0_2] : memref<32x256xbf16, #tpu.memory_space<vmem>>, vector<32x256xbf16>
    %cst = arith.constant dense<0.000000e+00> : vector<32x256xf32>
    %2 = tpu.matmul %0, %1, %cst {dimension_numbers = #tpu.dot_dimension_numbers<[1], [0], [0], [1], [0, 0, 1, 1], [], []>} : vector<32x32xbf16>, vector<32x256xbf16>, vector<32x256xf32> -> vector<32x256xf32>
    %c0_3 = arith.constant 0 : index
    %c0_4 = arith.constant 0 : index
    %3 = vector.load %arg3[%c0_3, %c0_4] : memref<1x256xf32, #tpu.memory_space<vmem>>, vector<1x256xf32>
    %4 = vector.broadcast %3 : vector<1x256xf32> to vector<32x256xf32>
    %5 = arith.addf %2, %4 : vector<32x256xf32>
    %cst_5 = arith.constant 0.000000e+00 : f32
    %6 = vector.broadcast %cst_5 : f32 to vector<32x256xf32>
    %7 = arith.cmpf ogt, %5, %6 : vector<32x256xf32>
    %cst_6 = arith.constant 2.000000e-01 : f32
    %8 = vector.broadcast %cst_6 : f32 to vector<32x256xf32>
    %9 = arith.mulf %8, %5 : vector<32x256xf32>
    %10 = arith.select %7, %5, %9 : vector<32x256xi1>, vector<32x256xf32>
    %11 = arith.truncf %10 : vector<32x256xf32> to vector<32x256xbf16>
    %c0_7 = arith.constant 0 : index
    %c0_8 = arith.constant 0 : index
    %12 = vector.load %arg4[%c0_7, %c0_8] : memref<256x1024xbf16, #tpu.memory_space<vmem>>, vector<256x1024xbf16>
    %cst_9 = arith.constant dense<0.000000e+00> : vector<32x1024xf32>
    %13 = tpu.matmul %11, %12, %cst_9 {dimension_numbers = #tpu.dot_dimension_numbers<[1], [0], [0], [1], [0, 0, 1, 1], [], []>} : vector<32x256xbf16>, vector<256x1024xbf16>, vector<32x1024xf32> -> vector<32x1024xf32>
    %c0_10 = arith.constant 0 : index
    %c0_11 = arith.constant 0 : index
    %14 = vector.load %arg5[%c0_10, %c0_11] : memref<1x1024xf32, #tpu.memory_space<vmem>>, vector<1x1024xf32>
    %15 = vector.broadcast %14 : vector<1x1024xf32> to vector<32x1024xf32>
    %16 = arith.addf %13, %15 : vector<32x1024xf32>
    %cst_12 = arith.constant 0.000000e+00 : f32
    %17 = vector.broadcast %cst_12 : f32 to vector<32x1024xf32>
    %18 = arith.cmpf ogt, %16, %17 : vector<32x1024xf32>
    %cst_13 = arith.constant 2.000000e-01 : f32
    %19 = vector.broadcast %cst_13 : f32 to vector<32x1024xf32>
    %20 = arith.mulf %19, %16 : vector<32x1024xf32>
    %21 = arith.select %18, %16, %20 : vector<32x1024xi1>, vector<32x1024xf32>
    %22 = arith.truncf %21 : vector<32x1024xf32> to vector<32x1024xbf16>
    %c0_14 = arith.constant 0 : index
    %c0_15 = arith.constant 0 : index
    %23 = vector.load %arg6[%c0_14, %c0_15] : memref<32x1024xbf16, #tpu.memory_space<vmem>>, vector<32x1024xbf16>
    tpu.vector_store %arg6[%c0_14, %c0_15], %22 {strides = array<i32>} : memref<32x1024xbf16, #tpu.memory_space<vmem>>, vector<32x1024xbf16>,
    return
  }
  func.func @transform_0(%arg0: i32) -> (i32, i32) {
    %c0_i32 = arith.constant 0 : i32
    %c0_i32_0 = arith.constant 0 : i32
    return %arg0, %c0_i32 : i32, i32
  }
  func.func @transform_1(%arg0: i32) -> (i32, i32) {
    %c0_i32 = arith.constant 0 : i32
    %c0_i32_0 = arith.constant 0 : i32
    %c0_i32_1 = arith.constant 0 : i32
    return %c0_i32, %c0_i32_0 : i32, i32
  }
  func.func @transform_2(%arg0: i32) -> (i32, i32) {
    %c0_i32 = arith.constant 0 : i32
    %c0_i32_0 = arith.constant 0 : i32
    %c0_i32_1 = arith.constant 0 : i32
    return %c0_i32, %c0_i32_0 : i32, i32
  }
  func.func @transform_3(%arg0: i32) -> (i32, i32) {
    %c0_i32 = arith.constant 0 : i32
    %c0_i32_0 = arith.constant 0 : i32
    %c0_i32_1 = arith.constant 0 : i32
    return %c0_i32, %c0_i32_0 : i32, i32
  }
  func.func @transform_4(%arg0: i32) -> (i32, i32) {
    %c0_i32 = arith.constant 0 : i32
    %c0_i32_0 = arith.constant 0 : i32
    %c0_i32_1 = arith.constant 0 : i32
    return %c0_i32, %c0_i32_0 : i32, i32
  }
  func.func @transform_5(%arg0: i32) -> (i32, i32) {
    %c0_i32 = arith.constant 0 : i32
    %c0_i32_0 = arith.constant 0 : i32
    return %arg0, %c0_i32 : i32, i32
  }
}

module attributes {stable_mosaic.version = 11 : i64} {
  func.func @_upconv_head_kernel(%arg0: i32, %arg1: i32, %arg2: memref<1x32x4096xbf16, #tpu.memory_space<vmem>>, %arg3: memref<1x4096x256xbf16, #tpu.memory_space<vmem>>, %arg4: memref<1x256xf32, #tpu.memory_space<vmem>>, %arg5: memref<256x128xbf16, #tpu.memory_space<vmem>>, %arg6: memref<1x32x128xf32, #tpu.memory_space<vmem>>) attributes {dimension_semantics = [#tpu.dimension_semantics<parallel>, #tpu.dimension_semantics<parallel>], iteration_bounds = array<i64: 4, 1>, scalar_prefetch = 0 : i64, scratch_operands = 0 : i64, tpu.core_type = #tpu.core_type<tc>, window_params = [{transform_indices = @transform_0, window_bounds = array<i64: 1, 32, 4096>}, {transform_indices = @transform_1, window_bounds = array<i64: 1, 4096, 256>}, {pipeline_mode = #tpu.pipeline_mode<synchronous>, transform_indices = @transform_2, window_bounds = array<i64: 1, 256>}, {pipeline_mode = #tpu.pipeline_mode<synchronous>, transform_indices = @transform_3, window_bounds = array<i64: 256, 128>}, {transform_indices = @transform_4, window_bounds = array<i64: 1, 32, 128>}]} {
    %c0 = arith.constant 0 : index
    %c0_0 = arith.constant 0 : index
    %c0_1 = arith.constant 0 : index
    %0 = vector.load %arg2[%c0, %c0_0, %c0_1] : memref<1x32x4096xbf16, #tpu.memory_space<vmem>>, vector<1x32x4096xbf16>
    %1 = vector.shape_cast %0 : vector<1x32x4096xbf16> to vector<32x4096xbf16>
    %c0_2 = arith.constant 0 : index
    %c0_3 = arith.constant 0 : index
    %c0_4 = arith.constant 0 : index
    %2 = vector.load %arg3[%c0_2, %c0_3, %c0_4] : memref<1x4096x256xbf16, #tpu.memory_space<vmem>>, vector<1x4096x256xbf16>
    %3 = vector.shape_cast %2 : vector<1x4096x256xbf16> to vector<4096x256xbf16>
    %cst = arith.constant dense<0.000000e+00> : vector<32x256xf32>
    %4 = tpu.matmul %1, %3, %cst {dimension_numbers = #tpu.dot_dimension_numbers<[1], [0], [0], [1], [0, 0, 1, 1], [], []>} : vector<32x4096xbf16>, vector<4096x256xbf16>, vector<32x256xf32> -> vector<32x256xf32>
    %c0_5 = arith.constant 0 : index
    %c0_6 = arith.constant 0 : index
    %5 = vector.load %arg4[%c0_5, %c0_6] : memref<1x256xf32, #tpu.memory_space<vmem>>, vector<1x256xf32>
    %6 = vector.broadcast %5 : vector<1x256xf32> to vector<32x256xf32>
    %7 = arith.addf %4, %6 : vector<32x256xf32>
    %cst_7 = arith.constant 0.000000e+00 : f32
    %8 = vector.broadcast %cst_7 : f32 to vector<32x256xf32>
    %9 = arith.cmpf ogt, %7, %8 : vector<32x256xf32>
    %cst_8 = arith.constant 2.000000e-01 : f32
    %10 = vector.broadcast %cst_8 : f32 to vector<32x256xf32>
    %11 = arith.mulf %10, %7 : vector<32x256xf32>
    %12 = arith.select %9, %7, %11 : vector<32x256xi1>, vector<32x256xf32>
    %13 = arith.truncf %12 : vector<32x256xf32> to vector<32x256xbf16>
    %c0_9 = arith.constant 0 : index
    %c0_10 = arith.constant 0 : index
    %14 = vector.load %arg5[%c0_9, %c0_10] : memref<256x128xbf16, #tpu.memory_space<vmem>>, vector<256x128xbf16>
    %cst_11 = arith.constant dense<0.000000e+00> : vector<32x128xf32>
    %15 = tpu.matmul %13, %14, %cst_11 {dimension_numbers = #tpu.dot_dimension_numbers<[1], [0], [0], [1], [0, 0, 1, 1], [], []>} : vector<32x256xbf16>, vector<256x128xbf16>, vector<32x128xf32> -> vector<32x128xf32>
    %16 = math.tanh %15 : vector<32x128xf32>
    %c0_12 = arith.constant 0 : index
    %c0_13 = arith.constant 0 : index
    %c0_14 = arith.constant 0 : index
    %17 = vector.load %arg6[%c0_12, %c0_13, %c0_14] : memref<1x32x128xf32, #tpu.memory_space<vmem>>, vector<1x32x128xf32>
    %18 = vector.shape_cast %17 : vector<1x32x128xf32> to vector<32x128xf32>
    %19 = vector.shape_cast %16 : vector<32x128xf32> to vector<1x32x128xf32>
    tpu.vector_store %arg6[%c0_12, %c0_13, %c0_14], %19 {strides = array<i32>} : memref<1x32x128xf32, #tpu.memory_space<vmem>>, vector<1x32x128xf32>,
    return
  }
  func.func @transform_0(%arg0: i32, %arg1: i32) -> (i32, i32, i32) {
    %c0_i32 = arith.constant 0 : i32
    %c0_i32_0 = arith.constant 0 : i32
    return %arg0, %arg1, %c0_i32 : i32, i32, i32
  }
  func.func @transform_1(%arg0: i32, %arg1: i32) -> (i32, i32, i32) {
    %c0_i32 = arith.constant 0 : i32
    %c0_i32_0 = arith.constant 0 : i32
    %c0_i32_1 = arith.constant 0 : i32
    return %arg0, %c0_i32, %c0_i32_0 : i32, i32, i32
  }
  func.func @transform_2(%arg0: i32, %arg1: i32) -> (i32, i32) {
    %c0_i32 = arith.constant 0 : i32
    %c0_i32_0 = arith.constant 0 : i32
    %c0_i32_1 = arith.constant 0 : i32
    return %c0_i32, %c0_i32_0 : i32, i32
  }
  func.func @transform_3(%arg0: i32, %arg1: i32) -> (i32, i32) {
    %c0_i32 = arith.constant 0 : i32
    %c0_i32_0 = arith.constant 0 : i32
    %c0_i32_1 = arith.constant 0 : i32
    return %c0_i32, %c0_i32_0 : i32, i32
  }
  func.func @transform_4(%arg0: i32, %arg1: i32) -> (i32, i32, i32) {
    %c0_i32 = arith.constant 0 : i32
    %c0_i32_0 = arith.constant 0 : i32
    return %arg0, %arg1, %c0_i32 : i32, i32, i32
  }
}

</mosaic_0001>

<llo_original>
// kernel: generator_forward.2
$region0: #{generator_forward.2}
  #allocation0 [shape = 'u32[]', space=smem, size = 0x4, offset = 0x4, fixed_abs, tag = 'smem constant byte address 0x4 - core index']
  #allocation1 [shape = 'u32[144,128]{1,0:T(1,128)}', space=vmem, size = 0x12000, scoped, tag = 'internal scratch']
  %s0 = inlined_call_operand.vmem [shape: bf16[32,32], index: 0, kind: input, shape index: {}]
  %s1 = inlined_call_operand.hbm [shape: bf16[32,256], index: 1, kind: input, shape index: {}]
  %s2 = inlined_call_operand.hbm [shape: f32[1,256], index: 2, kind: input, shape index: {}]
  %s3 = inlined_call_operand.hbm [shape: bf16[256,1024], index: 3, kind: input, shape index: {}]
  %s4 = inlined_call_operand.hbm [shape: f32[1,1024], index: 4, kind: input, shape index: {}]
  %s5 = inlined_call_operand.vmem [shape: bf16[32,1024], index: 5, kind: output, shape index: {}]
  %s6 = sld [smem:[#allocation0]]
  $region46: #{generator_forward.2} parent=0
    _
  %s8 = ssub.s32 1, %s6
  %s9 = scalar_select 0, %s8, %s6
  $region1: #{generator_forward.2} parent=0
    #allocation2 [shape = 'u8[16384]{0}', space=vmem, size = 0x4000, scoped, tag = 'input window, operand 1, single buffered']
    #allocation3 [shape = 's32[1]{0}', space=sflag, size = 0x4, scoped, tag = 'scoped memory for generator_forward.2']
    #allocation4 [shape = 'u8[1024]{0}', space=vmem, size = 0x400, scoped, tag = 'input window, operand 2, single buffered']
    #allocation5 [shape = 's32[1]{0}', space=sflag, size = 0x4, scoped, tag = 'scoped memory for generator_forward.2']
    #allocation6 [shape = 'u8[524288]{0}', space=vmem, size = 0x80000, scoped, tag = 'input window, operand 3, single buffered']
    #allocation7 [shape = 'u8[4096]{0}', space=vmem, size = 0x1000, scoped, tag = 'input window, operand 4, single buffered']
    #allocation8 [shape = 's32[1]{0}', space=sflag, size = 0x4, scoped, tag = 'scoped memory for generator_forward.2']
    %10 = vsyncpa [#allocation3], 0
    %11 = vsyncpa [#allocation5], 0
    %12 = vsyncpa [#allocation8], 0
    // Predicated region
    $region2: #{generator_forward.2} parent=1 // pred_check
      _
    $region3: #{generator_forward.2} parent=1 // pred_check_branch
      %14 = sbr.rel (0) target = $region5
    $region4: #{generator_forward.2} parent=1 // pred_region
      _
    $region5: #{generator_forward.2} parent=1 // pred_fallthru
      _
    // Predicated region
    $region6: #{generator_forward.2} parent=1 // pred_check
      _
    $region7: #{generator_forward.2} parent=1 // pred_check_branch
      %16 = sbr.rel (0) target = $region9
    $region8: #{generator_forward.2} parent=1 // pred_region
      %s18 = ssub.s32 512, 512
      %19 = vsyncadd [#allocation3], %s18
      %s20 = sshll.u32 [#allocation2], 4
      %s21 = int_to_ptr.vmem [resolvable:$true] %s20
      %26 = dma.hbm_to_vmem [thread:$0]  %s1, 512, %s21, [#allocation3], 128, 128, 8
    $region9: #{generator_forward.2} parent=1 // pred_fallthru
      _
    // Predicated region
    $region10: #{generator_forward.2} parent=1 // pred_check
      _
    $region11: #{generator_forward.2} parent=1 // pred_check_branch
      %28 = sbr.rel (0) target = $region13
    $region12: #{generator_forward.2} parent=1 // pred_region
      %s30 = ssub.s32 32, 32
      %31 = vsyncadd [#allocation5], %s30
      %s33 = sshll.u32 [#allocation4], 4
      %s34 = int_to_ptr.vmem [resolvable:$true] %s33
      %36 = dma.hbm_to_vmem [thread:$0]  %s2, 32, %s34, [#allocation5]
    $region13: #{generator_forward.2} parent=1 // pred_fallthru
      _
    // Predicated region
    $region14: #{generator_forward.2} parent=1 // pred_check
      _
    $region15: #{generator_forward.2} parent=1 // pred_check_branch
      %38 = sbr.rel (0) target = $region17
    $region16: #{generator_forward.2} parent=1 // pred_region
      %s40 = ssub.s32 16384, 16384
      %41 = vsyncadd [#allocation5], %s40
      %s42 = sshll.u32 [#allocation6], 4
      %s43 = int_to_ptr.vmem [resolvable:$true] %s42
      %48 = dma.hbm_to_vmem [thread:$0]  %s3, 16384, %s43, [#allocation5], 512, 512, 32
    $region17: #{generator_forward.2} parent=1 // pred_fallthru
      _
    // Predicated region
    $region18: #{generator_forward.2} parent=1 // pred_check
      _
    $region19: #{generator_forward.2} parent=1 // pred_check_branch
      %50 = sbr.rel (0) target = $region21
    $region20: #{generator_forward.2} parent=1 // pred_region
      %s52 = ssub.s32 128, 128
      %53 = vsyncadd [#allocation8], %s52
      %s55 = sshll.u32 [#allocation7], 4
      %s56 = int_to_ptr.vmem [resolvable:$true] %s55
      %58 = dma.hbm_to_vmem [thread:$0]  %s4, 128, %s56, [#allocation8]
    $region21: #{generator_forward.2} parent=1 // pred_fallthru
      _
    // Predicated region
    $region22: #{generator_forward.2} parent=1 // pred_check
      _
    $region23: #{generator_forward.2} parent=1 // pred_check_branch
      %60 = sbr.rel (0) target = $region25
    $region24: #{generator_forward.2} parent=1 // pred_region
      %61 = dma.done [#allocation3], 512
    $region25: #{generator_forward.2} parent=1 // pred_fallthru
      _
    // Predicated region
    $region26: #{generator_forward.2} parent=1 // pred_check
      _
    $region27: #{generator_forward.2} parent=1 // pred_check_branch
      %63 = sbr.rel (0) target = $region29
    $region28: #{generator_forward.2} parent=1 // pred_region
      %64 = dma.done [#allocation5], 32
    $region29: #{generator_forward.2} parent=1 // pred_fallthru
      _
    // Predicated region
    $region30: #{generator_forward.2} parent=1 // pred_check
      _
    $region31: #{generator_forward.2} parent=1 // pred_check_branch
      %66 = sbr.rel (0) target = $region33
    $region32: #{generator_forward.2} parent=1 // pred_region
      %67 = dma.done [#allocation5], 16384
    $region33: #{generator_forward.2} parent=1 // pred_fallthru
      _
    // Predicated region
    $region34: #{generator_forward.2} parent=1 // pred_check
      _
    $region35: #{generator_forward.2} parent=1 // pred_check_branch
      %69 = sbr.rel (0) target = $region37
    $region36: #{generator_forward.2} parent=1 // pred_region
      %70 = dma.done [#allocation8], 128
    $region37: #{generator_forward.2} parent=1 // pred_fallthru
      _
    %v72 = vld [vmem:[%s0] sm:$0xf]
    %v73 = vld [vmem:[%s0 + $0x4] sm:$0xf]
    %v74 = vld [vmem:[%s0 + $0x8] sm:$0xf]
    %v75 = vld [vmem:[%s0 + $0xc] sm:$0xf]
    %v76 = vld [vmem:[#allocation2] sm:$0xff]
    %v77 = vld [vmem:[#allocation2 + $0x8] sm:$0xff]
    %v78 = vld [vmem:[#allocation2 + $0x10] sm:$0xff]
    %v79 = vld [vmem:[#allocation2 + $0x18] sm:$0xff]
    %v80 = vld [vmem:[#allocation4] sm:$0x3]
    %v82 = vlaneseq
    %v83 = vshrl.u32 %v82, 7
    %v84 = vsub.s32 0, %v83
    %v85 = vrot.slane %v80, %v84
    %v86 = vlaneseq
    %v87 = vshrl.u32 %v86, 7
    %v88 = vsub.s32 1, %v87
    %v89 = vrot.slane %v80, %v88
    %v96 = vunpack.c.l.b16 %v72
    %v97 = vunpack.c.l.b16 %v73
    %v98 = vunpack.c.l.b16 %v74
    %v99 = vunpack.c.l.b16 %v75
    %v100 = vpack.c.b16 %v97, %v96
    %v101 = vpack.c.b16 %v99, %v98
    %v106 = vunpack.c.l.b16 %v76
    %v107 = vunpack.c.h.b16 %v76
    %v108 = vunpack.c.l.b16 %v77
    %v109 = vunpack.c.h.b16 %v77
    %v110 = vunpack.c.l.b16 %v78
    %v111 = vunpack.c.h.b16 %v78
    %v112 = vunpack.c.l.b16 %v79
    %v113 = vunpack.c.h.b16 %v79
    %v114 = vpack.c.b16 %v108, %v106
    %v115 = vpack.c.b16 %v109, %v107
    %v116 = vpack.c.b16 %v112, %v110
    %v117 = vpack.c.b16 %v113, %v111
    %vm122 = vcmask 261120
    %v124 = vsel %vm122, %v100, 0
    %v127 = vsel %vm122, %v101, 0
    %129 = vmatprep.subr.bf16.mxu0 %v115
    %130 = vmatpush1.bf16.msra.mxu0 %v114
    %131 = vmatprep.subr.bf16.mxu0 %v117
    %132 = vmatpush1.bf16.msra.mxu0 %v116
    %133 = vmatprep.subr.bf16.mxu0 0
    %134 = vmatpush1.bf16.msra.mxu0 0
    %135 = vmatprep.subr.bf16.mxu0 0
    %136 = vmatpush1.bf16.msra.mxu0 0
    %137 = vmatprep.subr.bf16.mxu0 0
    %138 = vmatpush1.bf16.msra.mxu0 0
    %139 = vmatprep.subr.bf16.mxu0 0
    %140 = vmatpush1.bf16.msra.mxu0 0
    %141 = vmatprep.subr.bf16.mxu0 0
    %142 = vmatpush1.bf16.msra.mxu0 0
    %143 = vmatprep.subr.bf16.mxu0 0
    %144 = vmatpush1.bf16.msra.mxu0 0
    %145 = vmatprep.subr.bf16.mxu0 0
    %146 = vmatpush1.bf16.msra.mxu0 0
    %147 = vmatprep.subr.bf16.mxu0 0
    %148 = vmatpush1.bf16.msra.mxu0 0
    %149 = vmatprep.subr.bf16.mxu0 0
    %150 = vmatpush1.bf16.msra.mxu0 0
    %151 = vmatprep.subr.bf16.mxu0 0
    %152 = vmatpush1.bf16.msra.mxu0 0
    %153 = vmatprep.subr.bf16.mxu0 0
    %154 = vmatpush1.bf16.msra.mxu0 0
    %155 = vmatprep.subr.bf16.mxu0 0
    %156 = vmatpush1.bf16.msra.mxu0 0
    %157 = vmatprep.subr.bf16.mxu0 0
    %158 = vmatpush1.bf16.msra.mxu0 0
    %159 = vmatprep.subr.bf16.mxu0 0
    %160 = vmatpush1.bf16.msra.mxu0 0
    %161 = vmatprep.mubr.bf16.mxu0 0
    %162 = vmatmul.mubr.bf16.gmra.mrb[0].mxu0 %v124
    %v163 = vpop.f32.mrb[0].mxu0
    %v164 = vadd.f32 %v85, %v163
    %v165 = vpop.f32.mrb[0].mxu0
    %v166 = vadd.f32 %v89, %v165
    %v167 = vpop.f32.mrb[0].mxu0
    %v168 = vadd.f32 %v85, %v167
    %v169 = vpop.f32.mrb[0].mxu0
    %v170 = vadd.f32 %v89, %v169
    %171 = vmatprep.mubr.bf16.mxu0 0
    %172 = vmatmul.mubr.bf16.gmra.mrb[0].mxu0 %v127
    %v173 = vpop.f32.mrb[0].mxu0
    %v174 = vadd.f32 %v85, %v173
    %v175 = vpop.f32.mrb[0].mxu0
    %v176 = vadd.f32 %v89, %v175
    %v177 = vpop.f32.mrb[0].mxu0
    %v178 = vadd.f32 %v85, %v177
    %v179 = vpop.f32.mrb[0].mxu0
    %v180 = vadd.f32 %v89, %v179
    %181 = vdwg.mxu0
    %vm182 = vcmp.gt.f32.partialorder %v164, 0.0
    %vm183 = vcmp.gt.f32.partialorder %v166, 0.0
    %vm184 = vcmp.gt.f32.partialorder %v168, 0.0
    %vm185 = vcmp.gt.f32.partialorder %v170, 0.0
    %vm186 = vcmp.gt.f32.partialorder %v174, 0.0
    %vm187 = vcmp.gt.f32.partialorder %v176, 0.0
    %vm188 = vcmp.gt.f32.partialorder %v178, 0.0
    %vm189 = vcmp.gt.f32.partialorder %v180, 0.0
    %v190 = vmul.f32 %v164, 0.2
    %v191 = vmul.f32 %v166, 0.2
    %v192 = vmul.f32 %v168, 0.2
    %v193 = vmul.f32 %v170, 0.2
    %v194 = vmul.f32 %v174, 0.2
    %v195 = vmul.f32 %v176, 0.2
    %v196 = vmul.f32 %v178, 0.2
    %v197 = vmul.f32 %v180, 0.2
    %v198 = vsel %vm182, %v164, %v190
    %v199 = vsel %vm183, %v166, %v191
    %v200 = vsel %vm184, %v168, %v192
    %v201 = vsel %vm185, %v170, %v193
    %v202 = vsel %vm186, %v174, %v194
    %v203 = vsel %vm187, %v176, %v195
    %v204 = vsel %vm188, %v178, %v196
    %v205 = vsel %vm189, %v180, %v197
    %v206 = vpack.c.bf16 %v200, %v198
    %v207 = vpack.c.bf16 %v201, %v199
    %v208 = vpack.c.bf16 %v204, %v202
    %v209 = vpack.c.bf16 %v205, %v203
    %v210 = vld [vmem:[#allocation6] sm:$0xff]
    %v211 = vld [vmem:[#allocation6 + $0x8] sm:$0xff]
    %v212 = vld [vmem:[#allocation6 + $0x10] sm:$0xff]
    %v213 = vld [vmem:[#allocation6 + $0x18] sm:$0xff]
    %v214 = vld [vmem:[#allocation6 + $0x20] sm:$0xff]
    %v215 = vld [vmem:[#allocation6 + $0x28] sm:$0xff]
    %v216 = vld [vmem:[#allocation6 + $0x30] sm:$0xff]
    %v217 = vld [vmem:[#allocation6 + $0x38] sm:$0xff]
    %v218 = vld [vmem:[#allocation6 + $0x40] sm:$0xff]
    %v219 = vld [vmem:[#allocation6 + $0x48] sm:$0xff]
    %v220 = vld [vmem:[#allocation6 + $0x50] sm:$0xff]
    %v221 = vld [vmem:[#allocation6 + $0x58] sm:$0xff]
    %v222 = vld [vmem:[#allocation6 + $0x60] sm:$0xff]
    %v223 = vld [vmem:[#allocation6 + $0x68] sm:$0xff]
    %v224 = vld [vmem:[#allocation6 + $0x70] sm:$0xff]
    %v225 = vld [vmem:[#allocation6 + $0x78] sm:$0xff]
    %v226 = vld [vmem:[#allocation6 + $0x80] sm:$0xff]
    %v227 = vld [vmem:[#allocation6 + $0x88] sm:$0xff]
    %v228 = vld [vmem:[#allocation6 + $0x90] sm:$0xff]
    %v229 = vld [vmem:[#allocation6 + $0x98] sm:$0xff]
    %v230 = vld [vmem:[#allocation6 + $0xa0] sm:$0xff]
    %v231 = vld [vmem:[#allocation6 + $0xa8] sm:$0xff]
    %v232 = vld [vmem:[#allocation6 + $0xb0] sm:$0xff]
    %v233 = vld [vmem:[#allocation6 + $0xb8] sm:$0xff]
    %v234 = vld [vmem:[#allocation6 + $0xc0] sm:$0xff]
    %v235 = vld [vmem:[#allocation6 + $0xc8] sm:$0xff]
    %v236 = vld [vmem:[#allocation6 + $0xd0] sm:$0xff]
    %v237 = vld [vmem:[#allocation6 + $0xd8] sm:$0xff]
    %v238 = vld [vmem:[#allocation6 + $0xe0] sm:$0xff]
    %v239 = vld [vmem:[#allocation6 + $0xe8] sm:$0xff]
    %v240 = vld [vmem:[#allocation6 + $0xf0] sm:$0xff]
    %v241 = vld [vmem:[#allocation6 + $0xf8] sm:$0xff]
    %v242 = vld [vmem:[#allocation6 + $0x100] sm:$0xff]
    %v243 = vld [vmem:[#allocation6 + $0x108] sm:$0xff]
    %v244 = vld [vmem:[#allocation6 + $0x110] sm:$0xff]
    %v245 = vld [vmem:[#allocation6 + $0x118] sm:$0xff]
    %v246 = vld [vmem:[#allocation6 + $0x120] sm:$0xff]
    %v247 = vld [vmem:[#allocation6 + $0x128] sm:$0xff]
    %v248 = vld [vmem:[#allocation6 + $0x130] sm:$0xff]
    %v249 = vld [vmem:[#allocation6 + $0x138] sm:$0xff]
    %v250 = vld [vmem:[#allocation6 + $0x140] sm:$0xff]
    %v251 = vld [vmem:[#allocation6 + $0x148] sm:$0xff]
    %v252 = vld [vmem:[#allocation6 + $0x150] sm:$0xff]
    %v253 = vld [vmem:[#allocation6 + $0x158] sm:$0xff]
    %v254 = vld [vmem:[#allocation6 + $0x160] sm:$0xff]
    %v255 = vld [vmem:[#allocation6 + $0x168] sm:$0xff]
    %v256 = vld [vmem:[#allocation6 + $0x170] sm:$0xff]
    %v257 = vld [vmem:[#allocation6 + $0x178] sm:$0xff]
    %v258 = vld [vmem:[#allocation6 + $0x180] sm:$0xff]
    %v259 = vld [vmem:[#allocation6 + $0x188] sm:$0xff]
    %v260 = vld [vmem:[#allocation6 + $0x190] sm:$0xff]
    %v261 = vld [vmem:[#allocation6 + $0x198] sm:$0xff]
    %v262 = vld [vmem:[#allocation6 + $0x1a0] sm:$0xff]
    %v263 = vld [vmem:[#allocation6 + $0x1a8] sm:$0xff]
    %v264 = vld [vmem:[#allocation6 + $0x1b0] sm:$0xff]
    %v265 = vld [vmem:[#allocation6 + $0x1b8] sm:$0xff]
    %v266 = vld [vmem:[#allocation6 + $0x1c0] sm:$0xff]
    %v267 = vld [vmem:[#allocation6 + $0x1c8] sm:$0xff]
    %v268 = vld [vmem:[#allocation6 + $0x1d0] sm:$0xff]
    %v269 = vld [vmem:[#allocation6 + $0x1d8] sm:$0xff]
    %v270 = vld [vmem:[#allocation6 + $0x1e0] sm:$0xff]
    %v271 = vld [vmem:[#allocation6 + $0x1e8] sm:$0xff]
    %v272 = vld [vmem:[#allocation6 + $0x1f0] sm:$0xff]
    %v273 = vld [vmem:[#allocation6 + $0x1f8] sm:$0xff]
    %v274 = vld [vmem:[#allocation6 + $0x200] sm:$0xff]
    %v275 = vld [vmem:[#allocation6 + $0x208] sm:$0xff]
    %v276 = vld [vmem:[#allocation6 + $0x210] sm:$0xff]
    %v277 = vld [vmem:[#allocation6 + $0x218] sm:$0xff]
    %v278 = vld [vmem:[#allocation6 + $0x220] sm:$0xff]
    %v279 = vld [vmem:[#allocation6 + $0x228] sm:$0xff]
    %v280 = vld [vmem:[#allocation6 + $0x230] sm:$0xff]
    %v281 = vld [vmem:[#allocation6 + $0x238] sm:$0xff]
    %v282 = vld [vmem:[#allocation6 + $0x240] sm:$0xff]
    %v283 = vld [vmem:[#allocation6 + $0x248] sm:$0xff]
    %v284 = vld [vmem:[#allocation6 + $0x250] sm:$0xff]
    %v285 = vld [vmem:[#allocation6 + $0x258] sm:$0xff]
    %v286 = vld [vmem:[#allocation6 + $0x260] sm:$0xff]
    %v287 = vld [vmem:[#allocation6 + $0x268] sm:$0xff]
    %v288 = vld [vmem:[#allocation6 + $0x270] sm:$0xff]
    %v289 = vld [vmem:[#allocation6 + $0x278] sm:$0xff]
    %v290 = vld [vmem:[#allocation6 + $0x280] sm:$0xff]
    %v291 = vld [vmem:[#allocation6 + $0x288] sm:$0xff]
    %v292 = vld [vmem:[#allocation6 + $0x290] sm:$0xff]
    %v293 = vld [vmem:[#allocation6 + $0x298] sm:$0xff]
    %v294 = vld [vmem:[#allocation6 + $0x2a0] sm:$0xff]
    %v295 = vld [vmem:[#allocation6 + $0x2a8] sm:$0xff]
    %v296 = vld [vmem:[#allocation6 + $0x2b0] sm:$0xff]
    %v297 = vld [vmem:[#allocation6 + $0x2b8] sm:$0xff]
    %v298 = vld [vmem:[#allocation6 + $0x2c0] sm:$0xff]
    %v299 = vld [vmem:[#allocation6 + $0x2c8] sm:$0xff]
    %v300 = vld [vmem:[#allocation6 + $0x2d0] sm:$0xff]
    %v301 = vld [vmem:[#allocation6 + $0x2d8] sm:$0xff]
    %v302 = vld [vmem:[#allocation6 + $0x2e0] sm:$0xff]
    %v303 = vld [vmem:[#allocation6 + $0x2e8] sm:$0xff]
    %v304 = vld [vmem:[#allocation6 + $0x2f0] sm:$0xff]
    %v305 = vld [vmem:[#allocation6 + $0x2f8] sm:$0xff]
    %v306 = vld [vmem:[#allocation6 + $0x300] sm:$0xff]
    %v307 = vld [vmem:[#allocation6 + $0x308] sm:$0xff]
    %v308 = vld [vmem:[#allocation6 + $0x310] sm:$0xff]
    %v309 = vld [vmem:[#allocation6 + $0x318] sm:$0xff]
    %v310 = vld [vmem:[#allocation6 + $0x320] sm:$0xff]
    %v311 = vld [vmem:[#allocation6 + $0x328] sm:$0xff]
    %v312 = vld [vmem:[#allocation6 + $0x330] sm:$0xff]
    %v313 = vld [vmem:[#allocation6 + $0x338] sm:$0xff]
    %v314 = vld [vmem:[#allocation6 + $0x340] sm:$0xff]
    %v315 = vld [vmem:[#allocation6 + $0x348] sm:$0xff]
    %v316 = vld [vmem:[#allocation6 + $0x350] sm:$0xff]
    %v317 = vld [vmem:[#allocation6 + $0x358] sm:$0xff]
    %v318 = vld [vmem:[#allocation6 + $0x360] sm:$0xff]
    %v319 = vld [vmem:[#allocation6 + $0x368] sm:$0xff]
    %v320 = vld [vmem:[#allocation6 + $0x370] sm:$0xff]
    %v321 = vld [vmem:[#allocation6 + $0x378] sm:$0xff]
    %v322 = vld [vmem:[#allocation6 + $0x380] sm:$0xff]
    %v323 = vld [vmem:[#allocation6 + $0x388] sm:$0xff]
    %v324 = vld [vmem:[#allocation6 + $0x390] sm:$0xff]
    %v325 = vld [vmem:[#allocation6 + $0x398] sm:$0xff]
    %v326 = vld [vmem:[#allocation6 + $0x3a0] sm:$0xff]
    %v327 = vld [vmem:[#allocation6 + $0x3a8] sm:$0xff]
    %v328 = vld [vmem:[#allocation6 + $0x3b0] sm:$0xff]
    %v329 = vld [vmem:[#allocation6 + $0x3b8] sm:$0xff]
    %v330 = vld [vmem:[#allocation6 + $0x3c0] sm:$0xff]
    %v331 = vld [vmem:[#allocation6 + $0x3c8] sm:$0xff]
    %v332 = vld [vmem:[#allocation6 + $0x3d0] sm:$0xff]
    %v333 = vld [vmem:[#allocation6 + $0x3d8] sm:$0xff]
    %v334 = vld [vmem:[#allocation6 + $0x3e0] sm:$0xff]
    %v335 = vld [vmem:[#allocation6 + $0x3e8] sm:$0xff]
    %v336 = vld [vmem:[#allocation6 + $0x3f0] sm:$0xff]
    %v337 = vld [vmem:[#allocation6 + $0x3f8] sm:$0xff]
    %v338 = vld [vmem:[#allocation7] sm:$0xff]
    %v340 = vlaneseq
    %v341 = vshrl.u32 %v340, 7
    %v342 = vsub.s32 0, %v341
    %v343 = vrot.slane %v338, %v342
    %v344 = vlaneseq
    %v345 = vshrl.u32 %v344, 7
    %v346 = vsub.s32 1, %v345
    %v347 = vrot.slane %v338, %v346
    %v348 = vlaneseq
    %v349 = vshrl.u32 %v348, 7
    %v350 = vsub.s32 2, %v349
    %v351 = vrot.slane %v338, %v350
    %v352 = vlaneseq
    %v353 = vshrl.u32 %v352, 7
    %v354 = vsub.s32 3, %v353
    %v355 = vrot.slane %v338, %v354
    %v356 = vlaneseq
    %v357 = vshrl.u32 %v356, 7
    %v358 = vsub.s32 4, %v357
    %v359 = vrot.slane %v338, %v358
    %v360 = vlaneseq
    %v361 = vshrl.u32 %v360, 7
    %v362 = vsub.s32 5, %v361
    %v363 = vrot.slane %v338, %v362
    %v364 = vlaneseq
    %v365 = vshrl.u32 %v364, 7
    %v366 = vsub.s32 6, %v365
    %v367 = vrot.slane %v338, %v366
    %v368 = vlaneseq
    %v369 = vshrl.u32 %v368, 7
    %v370 = vsub.s32 7, %v369
    %v371 = vrot.slane %v338, %v370
    %v508 = vunpack.c.l.b16 %v210
    %v509 = vunpack.c.h.b16 %v210
    %v510 = vunpack.c.l.b16 %v211
    %v511 = vunpack.c.h.b16 %v211
    %v512 = vunpack.c.l.b16 %v212
    %v513 = vunpack.c.h.b16 %v212
    %v514 = vunpack.c.l.b16 %v213
    %v515 = vunpack.c.h.b16 %v213
    %v516 = vunpack.c.l.b16 %v214
    %v517 = vunpack.c.h.b16 %v214
    %v518 = vunpack.c.l.b16 %v215
    %v519 = vunpack.c.h.b16 %v215
    %v520 = vunpack.c.l.b16 %v216
    %v521 = vunpack.c.h.b16 %v216
    %v522 = vunpack.c.l.b16 %v217
    %v523 = vunpack.c.h.b16 %v217
    %v524 = vunpack.c.l.b16 %v218
    %v525 = vunpack.c.h.b16 %v218
    %v526 = vunpack.c.l.b16 %v219
    %v527 = vunpack.c.h.b16 %v219
    %v528 = vunpack.c.l.b16 %v220
    %v529 = vunpack.c.h.b16 %v220
    %v530 = vunpack.c.l.b16 %v221
    %v531 = vunpack.c.h.b16 %v221
    %v532 = vunpack.c.l.b16 %v222
    %v533 = vunpack.c.h.b16 %v222
    %v534 = vunpack.c.l.b16 %v223
    %v535 = vunpack.c.h.b16 %v223
    %v536 = vunpack.c.l.b16 %v224
    %v537 = vunpack.c.h.b16 %v224
    %v538 = vunpack.c.l.b16 %v225
    %v539 = vunpack.c.h.b16 %v225
    %v540 = vunpack.c.l.b16 %v226
    %v541 = vunpack.c.h.b16 %v226
    %v542 = vunpack.c.l.b16 %v227
    %v543 = vunpack.c.h.b16 %v227
    %v544 = vunpack.c.l.b16 %v228
    %v545 = vunpack.c.h.b16 %v228
    %v546 = vunpack.c.l.b16 %v229
    %v547 = vunpack.c.h.b16 %v229
    %v548 = vunpack.c.l.b16 %v230
    %v549 = vunpack.c.h.b16 %v230
    %v550 = vunpack.c.l.b16 %v231
    %v551 = vunpack.c.h.b16 %v231
    %v552 = vunpack.c.l.b16 %v232
    %v553 = vunpack.c.h.b16 %v232
    %v554 = vunpack.c.l.b16 %v233
    %v555 = vunpack.c.h.b16 %v233
    %v556 = vunpack.c.l.b16 %v234
    %v557 = vunpack.c.h.b16 %v234
    %v558 = vunpack.c.l.b16 %v235
    %v559 = vunpack.c.h.b16 %v235
    %v560 = vunpack.c.l.b16 %v236
    %v561 = vunpack.c.h.b16 %v236
    %v562 = vunpack.c.l.b16 %v237
    %v563 = vunpack.c.h.b16 %v237
    %v564 = vunpack.c.l.b16 %v238
    %v565 = vunpack.c.h.b16 %v238
    %v566 = vunpack.c.l.b16 %v239
    %v567 = vunpack.c.h.b16 %v239
    %v568 = vunpack.c.l.b16 %v240
    %v569 = vunpack.c.h.b16 %v240
    %v570 = vunpack.c.l.b16 %v241
    %v571 = vunpack.c.h.b16 %v241
    %v572 = vunpack.c.l.b16 %v242
    %v573 = vunpack.c.h.b16 %v242
    %v574 = vunpack.c.l.b16 %v243
    %v575 = vunpack.c.h.b16 %v243
    %v576 = vunpack.c.l.b16 %v244
    %v577 = vunpack.c.h.b16 %v244
    %v578 = vunpack.c.l.b16 %v245
    %v579 = vunpack.c.h.b16 %v245
    %v580 = vunpack.c.l.b16 %v246
    %v581 = vunpack.c.h.b16 %v246
    %v582 = vunpack.c.l.b16 %v247
    %v583 = vunpack.c.h.b16 %v247
    %v584 = vunpack.c.l.b16 %v248
    %v585 = vunpack.c.h.b16 %v248
    %v586 = vunpack.c.l.b16 %v249
    %v587 = vunpack.c.h.b16 %v249
    %v588 = vunpack.c.l.b16 %v250
    %v589 = vunpack.c.h.b16 %v250
    %v590 = vunpack.c.l.b16 %v251
    %v591 = vunpack.c.h.b16 %v251
    %v592 = vunpack.c.l.b16 %v252
    %v593 = vunpack.c.h.b16 %v252
    %v594 = vunpack.c.l.b16 %v253
    %v595 = vunpack.c.h.b16 %v253
    %v596 = vunpack.c.l.b16 %v254
    %v597 = vunpack.c.h.b16 %v254
    %v598 = vunpack.c.l.b16 %v255
    %v599 = vunpack.c.h.b16 %v255
    %v600 = vunpack.c.l.b16 %v256
    %v601 = vunpack.c.h.b16 %v256
    %v602 = vunpack.c.l.b16 %v257
    %v603 = vunpack.c.h.b16 %v257
    %v604 = vunpack.c.l.b16 %v258
    %v605 = vunpack.c.h.b16 %v258
    %v606 = vunpack.c.l.b16 %v259
    %v607 = vunpack.c.h.b16 %v259
    %v608 = vunpack.c.l.b16 %v260
    %v609 = vunpack.c.h.b16 %v260
    %v610 = vunpack.c.l.b16 %v261
    %v611 = vunpack.c.h.b16 %v261
    %v612 = vunpack.c.l.b16 %v262
    %v613 = vunpack.c.h.b16 %v262
    %v614 = vunpack.c.l.b16 %v263
    %v615 = vunpack.c.h.b16 %v263
    %v616 = vunpack.c.l.b16 %v264
    %v617 = vunpack.c.h.b16 %v264
    %v618 = vunpack.c.l.b16 %v265
    %v619 = vunpack.c.h.b16 %v265
    %v620 = vunpack.c.l.b16 %v266
    %v621 = vunpack.c.h.b16 %v266
    %v622 = vunpack.c.l.b16 %v267
    %v623 = vunpack.c.h.b16 %v267
    %v624 = vunpack.c.l.b16 %v268
    %v625 = vunpack.c.h.b16 %v268
    %v626 = vunpack.c.l.b16 %v269
    %v627 = vunpack.c.h.b16 %v269
    %v628 = vunpack.c.l.b16 %v270
    %v629 = vunpack.c.h.b16 %v270
    %v630 = vunpack.c.l.b16 %v271
    %v631 = vunpack.c.h.b16 %v271
    %v632 = vunpack.c.l.b16 %v272
    %v633 = vunpack.c.h.b16 %v272
    %v634 = vunpack.c.l.b16 %v273
    %v635 = vunpack.c.h.b16 %v273
    %v636 = vunpack.c.l.b16 %v274
    %v637 = vunpack.c.h.b16 %v274
    %v638 = vunpack.c.l.b16 %v275
    %v639 = vunpack.c.h.b16 %v275
    %v640 = vunpack.c.l.b16 %v276
    %v641 = vunpack.c.h.b16 %v276
    %v642 = vunpack.c.l.b16 %v277
    %v643 = vunpack.c.h.b16 %v277
    %v644 = vunpack.c.l.b16 %v278
    %v645 = vunpack.c.h.b16 %v278
    %v646 = vunpack.c.l.b16 %v279
    %v647 = vunpack.c.h.b16 %v279
    %v648 = vunpack.c.l.b16 %v280
    %v649 = vunpack.c.h.b16 %v280
    %v650 = vunpack.c.l.b16 %v281
    %v651 = vunpack.c.h.b16 %v281
    %v652 = vunpack.c.l.b16 %v282
    %v653 = vunpack.c.h.b16 %v282
    %v654 = vunpack.c.l.b16 %v283
    %v655 = vunpack.c.h.b16 %v283
    %v656 = vunpack.c.l.b16 %v284
    %v657 = vunpack.c.h.b16 %v284
    %v658 = vunpack.c.l.b16 %v285
    %v659 = vunpack.c.h.b16 %v285
    %v660 = vunpack.c.l.b16 %v286
    %v661 = vunpack.c.h.b16 %v286
    %v662 = vunpack.c.l.b16 %v287
    %v663 = vunpack.c.h.b16 %v287
    %v664 = vunpack.c.l.b16 %v288
    %v665 = vunpack.c.h.b16 %v288
    %v666 = vunpack.c.l.b16 %v289
    %v667 = vunpack.c.h.b16 %v289
    %v668 = vunpack.c.l.b16 %v290
    %v669 = vunpack.c.h.b16 %v290
    %v670 = vunpack.c.l.b16 %v291
    %v671 = vunpack.c.h.b16 %v291
    %v672 = vunpack.c.l.b16 %v292
    %v673 = vunpack.c.h.b16 %v292
    %v674 = vunpack.c.l.b16 %v293
    %v675 = vunpack.c.h.b16 %v293
    %v676 = vunpack.c.l.b16 %v294
    %v677 = vunpack.c.h.b16 %v294
    %v678 = vunpack.c.l.b16 %v295
    %v679 = vunpack.c.h.b16 %v295
    %v680 = vunpack.c.l.b16 %v296
    %v681 = vunpack.c.h.b16 %v296
    %v682 = vunpack.c.l.b16 %v297
    %v683 = vunpack.c.h.b16 %v297
    %v684 = vunpack.c.l.b16 %v298
    %v685 = vunpack.c.h.b16 %v298
    %v686 = vunpack.c.l.b16 %v299
    %v687 = vunpack.c.h.b16 %v299
    %v688 = vunpack.c.l.b16 %v300
    %v689 = vunpack.c.h.b16 %v300
    %v690 = vunpack.c.l.b16 %v301
    %v691 = vunpack.c.h.b16 %v301
    %v692 = vunpack.c.l.b16 %v302
    %v693 = vunpack.c.h.b16 %v302
    %v694 = vunpack.c.l.b16 %v303
    %v695 = vunpack.c.h.b16 %v303
    %v696 = vunpack.c.l.b16 %v304
    %v697 = vunpack.c.h.b16 %v304
    %v698 = vunpack.c.l.b16 %v305
    %v699 = vunpack.c.h.b16 %v305
    %v700 = vunpack.c.l.b16 %v306
    %v701 = vunpack.c.h.b16 %v306
    %v702 = vunpack.c.l.b16 %v307
    %v703 = vunpack.c.h.b16 %v307
    %v704 = vunpack.c.l.b16 %v308
    %v705 = vunpack.c.h.b16 %v308
    %v706 = vunpack.c.l.b16 %v309
    %v707 = vunpack.c.h.b16 %v309
    %v708 = vunpack.c.l.b16 %v310
    %v709 = vunpack.c.h.b16 %v310
    %v710 = vunpack.c.l.b16 %v311
    %v711 = vunpack.c.h.b16 %v311
    %v712 = vunpack.c.l.b16 %v312
    %v713 = vunpack.c.h.b16 %v312
    %v714 = vunpack.c.l.b16 %v313
    %v715 = vunpack.c.h.b16 %v313
    %v716 = vunpack.c.l.b16 %v314
    %v717 = vunpack.c.h.b16 %v314
    %v718 = vunpack.c.l.b16 %v315
    %v719 = vunpack.c.h.b16 %v315
    %v720 = vunpack.c.l.b16 %v316
    %v721 = vunpack.c.h.b16 %v316
    %v722 = vunpack.c.l.b16 %v317
    %v723 = vunpack.c.h.b16 %v317
    %v724 = vunpack.c.l.b16 %v318
    %v725 = vunpack.c.h.b16 %v318
    %v726 = vunpack.c.l.b16 %v319
    %v727 = vunpack.c.h.b16 %v319
    %v728 = vunpack.c.l.b16 %v320
    %v729 = vunpack.c.h.b16 %v320
    %v730 = vunpack.c.l.b16 %v321
    %v731 = vunpack.c.h.b16 %v321
    %v732 = vunpack.c.l.b16 %v322
    %v733 = vunpack.c.h.b16 %v322
    %v734 = vunpack.c.l.b16 %v323
    %v735 = vunpack.c.h.b16 %v323
    %v736 = vunpack.c.l.b16 %v324
    %v737 = vunpack.c.h.b16 %v324
    %v738 = vunpack.c.l.b16 %v325
    %v739 = vunpack.c.h.b16 %v325
    %v740 = vunpack.c.l.b16 %v326
    %v741 = vunpack.c.h.b16 %v326
    %v742 = vunpack.c.l.b16 %v327
    %v743 = vunpack.c.h.b16 %v327
    %v744 = vunpack.c.l.b16 %v328
    %v745 = vunpack.c.h.b16 %v328
    %v746 = vunpack.c.l.b16 %v329
    %v747 = vunpack.c.h.b16 %v329
    %v748 = vunpack.c.l.b16 %v330
    %v749 = vunpack.c.h.b16 %v330
    %v750 = vunpack.c.l.b16 %v331
    %v751 = vunpack.c.h.b16 %v331
    %v752 = vunpack.c.l.b16 %v332
    %v753 = vunpack.c.h.b16 %v332
    %v754 = vunpack.c.l.b16 %v333
    %v755 = vunpack.c.h.b16 %v333
    %v756 = vunpack.c.l.b16 %v334
    %v757 = vunpack.c.h.b16 %v334
    %v758 = vunpack.c.l.b16 %v335
    %v759 = vunpack.c.h.b16 %v335
    %v760 = vunpack.c.l.b16 %v336
    %v761 = vunpack.c.h.b16 %v336
    %v762 = vunpack.c.l.b16 %v337
    %v763 = vunpack.c.h.b16 %v337
    %v764 = vpack.c.b16 %v516, %v508
    %v765 = vpack.c.b16 %v517, %v509
    %v766 = vpack.c.b16 %v518, %v510
    %v767 = vpack.c.b16 %v519, %v511
    %v768 = vpack.c.b16 %v520, %v512
    %v769 = vpack.c.b16 %v521, %v513
    %v770 = vpack.c.b16 %v522, %v514
    %v771 = vpack.c.b16 %v523, %v515
    %v772 = vpack.c.b16 %v532, %v524
    %v773 = vpack.c.b16 %v533, %v525
    %v774 = vpack.c.b16 %v534, %v526
    %v775 = vpack.c.b16 %v535, %v527
    %v776 = vpack.c.b16 %v536, %v528
    %v777 = vpack.c.b16 %v537, %v529
    %v778 = vpack.c.b16 %v538, %v530
    %v779 = vpack.c.b16 %v539, %v531
    %v780 = vpack.c.b16 %v548, %v540
    %v781 = vpack.c.b16 %v549, %v541
    %v782 = vpack.c.b16 %v550, %v542
    %v783 = vpack.c.b16 %v551, %v543
    %v784 = vpack.c.b16 %v552, %v544
    %v785 = vpack.c.b16 %v553, %v545
    %v786 = vpack.c.b16 %v554, %v546
    %v787 = vpack.c.b16 %v555, %v547
    %v788 = vpack.c.b16 %v564, %v556
    %v789 = vpack.c.b16 %v565, %v557
    %v790 = vpack.c.b16 %v566, %v558
    %v791 = vpack.c.b16 %v567, %v559
    %v792 = vpack.c.b16 %v568, %v560
    %v793 = vpack.c.b16 %v569, %v561
    %v794 = vpack.c.b16 %v570, %v562
    %v795 = vpack.c.b16 %v571, %v563
    %v796 = vpack.c.b16 %v580, %v572
    %v797 = vpack.c.b16 %v581, %v573
    %v798 = vpack.c.b16 %v582, %v574
    %v799 = vpack.c.b16 %v583, %v575
    %v800 = vpack.c.b16 %v584, %v576
    %v801 = vpack.c.b16 %v585, %v577
    %v802 = vpack.c.b16 %v586, %v578
    %v803 = vpack.c.b16 %v587, %v579
    %v804 = vpack.c.b16 %v596, %v588
    %v805 = vpack.c.b16 %v597, %v589
    %v806 = vpack.c.b16 %v598, %v590
    %v807 = vpack.c.b16 %v599, %v591
    %v808 = vpack.c.b16 %v600, %v592
    %v809 = vpack.c.b16 %v601, %v593
    %v810 = vpack.c.b16 %v602, %v594
    %v811 = vpack.c.b16 %v603, %v595
    %v812 = vpack.c.b16 %v612, %v604
    %v813 = vpack.c.b16 %v613, %v605
    %v814 = vpack.c.b16 %v614, %v606
    %v815 = vpack.c.b16 %v615, %v607
    %v816 = vpack.c.b16 %v616, %v608
    %v817 = vpack.c.b16 %v617, %v609
    %v818 = vpack.c.b16 %v618, %v610
    %v819 = vpack.c.b16 %v619, %v611
    %v820 = vpack.c.b16 %v628, %v620
    %v821 = vpack.c.b16 %v629, %v621
    %v822 = vpack.c.b16 %v630, %v622
    %v823 = vpack.c.b16 %v631, %v623
    %v824 = vpack.c.b16 %v632, %v624
    %v825 = vpack.c.b16 %v633, %v625
    %v826 = vpack.c.b16 %v634, %v626
    %v827 = vpack.c.b16 %v635, %v627
    %v828 = vpack.c.b16 %v644, %v636
    %v829 = vpack.c.b16 %v645, %v637
    %v830 = vpack.c.b16 %v646, %v638
    %v831 = vpack.c.b16 %v647, %v639
    %v832 = vpack.c.b16 %v648, %v640
    %v833 = vpack.c.b16 %v649, %v641
    %v834 = vpack.c.b16 %v650, %v642
    %v835 = vpack.c.b16 %v651, %v643
    %v836 = vpack.c.b16 %v660, %v652
    %v837 = vpack.c.b16 %v661, %v653
    %v838 = vpack.c.b16 %v662, %v654
    %v839 = vpack.c.b16 %v663, %v655
    %v840 = vpack.c.b16 %v664, %v656
    %v841 = vpack.c.b16 %v665, %v657
    %v842 = vpack.c.b16 %v666, %v658
    %v843 = vpack.c.b16 %v667, %v659
    %v844 = vpack.c.b16 %v676, %v668
    %v845 = vpack.c.b16 %v677, %v669
    %v846 = vpack.c.b16 %v678, %v670
    %v847 = vpack.c.b16 %v679, %v671
    %v848 = vpack.c.b16 %v680, %v672
    %v849 = vpack.c.b16 %v681, %v673
    %v850 = vpack.c.b16 %v682, %v674
    %v851 = vpack.c.b16 %v683, %v675
    %v852 = vpack.c.b16 %v692, %v684
    %v853 = vpack.c.b16 %v693, %v685
    %v854 = vpack.c.b16 %v694, %v686
    %v855 = vpack.c.b16 %v695, %v687
    %v856 = vpack.c.b16 %v696, %v688
    %v857 = vpack.c.b16 %v697, %v689
    %v858 = vpack.c.b16 %v698, %v690
    %v859 = vpack.c.b16 %v699, %v691
    %v860 = vpack.c.b16 %v708, %v700
    %v861 = vpack.c.b16 %v709, %v701
    %v862 = vpack.c.b16 %v710, %v702
    %v863 = vpack.c.b16 %v711, %v703
    %v864 = vpack.c.b16 %v712, %v704
    %v865 = vpack.c.b16 %v713, %v705
    %v866 = vpack.c.b16 %v714, %v706
    %v867 = vpack.c.b16 %v715, %v707
    %v868 = vpack.c.b16 %v724, %v716
    %v869 = vpack.c.b16 %v725, %v717
    %v870 = vpack.c.b16 %v726, %v718
    %v871 = vpack.c.b16 %v727, %v719
    %v872 = vpack.c.b16 %v728, %v720
    %v873 = vpack.c.b16 %v729, %v721
    %v874 = vpack.c.b16 %v730, %v722
    %v875 = vpack.c.b16 %v731, %v723
    %v876 = vpack.c.b16 %v740, %v732
    %v877 = vpack.c.b16 %v741, %v733
    %v878 = vpack.c.b16 %v742, %v734
    %v879 = vpack.c.b16 %v743, %v735
    %v880 = vpack.c.b16 %v744, %v736
    %v881 = vpack.c.b16 %v745, %v737
    %v882 = vpack.c.b16 %v746, %v738
    %v883 = vpack.c.b16 %v747, %v739
    %v884 = vpack.c.b16 %v756, %v748
    %v885 = vpack.c.b16 %v757, %v749
    %v886 = vpack.c.b16 %v758, %v750
    %v887 = vpack.c.b16 %v759, %v751
    %v888 = vpack.c.b16 %v760, %v752
    %v889 = vpack.c.b16 %v761, %v753
    %v890 = vpack.c.b16 %v762, %v754
    %v891 = vpack.c.b16 %v763, %v755
    %1020 = vmatprep.subr.bf16.mxu0 %v765
    %1021 = vmatpush1.bf16.msra.mxu0 %v764
    %1022 = vmatprep.subr.bf16.mxu0 %v773
    %1023 = vmatpush1.bf16.msra.mxu0 %v772
    %1024 = vmatprep.subr.bf16.mxu0 %v781
    %1025 = vmatpush1.bf16.msra.mxu0 %v780
    %1026 = vmatprep.subr.bf16.mxu0 %v789
    %1027 = vmatpush1.bf16.msra.mxu0 %v788
    %1028 = vmatprep.subr.bf16.mxu0 %v797
    %1029 = vmatpush1.bf16.msra.mxu0 %v796
    %1030 = vmatprep.subr.bf16.mxu0 %v805
    %1031 = vmatpush1.bf16.msra.mxu0 %v804
    %1032 = vmatprep.subr.bf16.mxu0 %v813
    %1033 = vmatpush1.bf16.msra.mxu0 %v812
    %1034 = vmatprep.subr.bf16.mxu0 %v821
    %1035 = vmatpush1.bf16.msra.mxu0 %v820
    %1036 = vmatprep.subr.bf16.mxu0 %v829
    %1037 = vmatpush1.bf16.msra.mxu0 %v828
    %1038 = vmatprep.subr.bf16.mxu0 %v837
    %1039 = vmatpush1.bf16.msra.mxu0 %v836
    %1040 = vmatprep.subr.bf16.mxu0 %v845
    %1041 = vmatpush1.bf16.msra.mxu0 %v844
    %1042 = vmatprep.subr.bf16.mxu0 %v853
    %1043 = vmatpush1.bf16.msra.mxu0 %v852
    %1044 = vmatprep.subr.bf16.mxu0 %v861
    %1045 = vmatpush1.bf16.msra.mxu0 %v860
    %1046 = vmatprep.subr.bf16.mxu0 %v869
    %1047 = vmatpush1.bf16.msra.mxu0 %v868
    %1048 = vmatprep.subr.bf16.mxu0 %v877
    %1049 = vmatpush1.bf16.msra.mxu0 %v876
    %1050 = vmatprep.subr.bf16.mxu0 %v885
    %1051 = vmatpush1.bf16.msra.mxu0 %v884
    %1052 = vmatprep.mubr.bf16.mxu0 %v207
    %1053 = vmatmul.mubr.bf16.gmra.mrb[0].mxu0 %v206
    %v1054 = vpop.f32.mrb[0].mxu0
    %v1055 = vadd.f32 %v343, %v1054
    %v1056 = vpop.f32.mrb[0].mxu0
    %v1057 = vadd.f32 %v347, %v1056
    %v1058 = vpop.f32.mrb[0].mxu0
    %v1059 = vadd.f32 %v343, %v1058
    %v1060 = vpop.f32.mrb[0].mxu0
    %v1061 = vadd.f32 %v347, %v1060
    %1062 = vmatprep.mubr.bf16.mxu0 %v209
    %1063 = vmatmul.mubr.bf16.gmra.mrb[0].mxu0 %v208
    %v1064 = vpop.f32.mrb[0].mxu0
    %v1065 = vadd.f32 %v343, %v1064
    %v1066 = vpop.f32.mrb[0].mxu0
    %v1067 = vadd.f32 %v347, %v1066
    %v1068 = vpop.f32.mrb[0].mxu0
    %v1069 = vadd.f32 %v343, %v1068
    %v1070 = vpop.f32.mrb[0].mxu0
    %v1071 = vadd.f32 %v347, %v1070
    %1072 = vdwg.mxu0
    %1073 = vmatprep.subr.bf16.mxu0 %v767
    %1074 = vmatpush1.bf16.msra.mxu0 %v766
    %1075 = vmatprep.subr.bf16.mxu0 %v775
    %1076 = vmatpush1.bf16.msra.mxu0 %v774
    %1077 = vmatprep.subr.bf16.mxu0 %v783
    %1078 = vmatpush1.bf16.msra.mxu0 %v782
    %1079 = vmatprep.subr.bf16.mxu0 %v791
    %1080 = vmatpush1.bf16.msra.mxu0 %v790
    %1081 = vmatprep.subr.bf16.mxu0 %v799
    %1082 = vmatpush1.bf16.msra.mxu0 %v798
    %1083 = vmatprep.subr.bf16.mxu0 %v807
    %1084 = vmatpush1.bf16.msra.mxu0 %v806
    %1085 = vmatprep.subr.bf16.mxu0 %v815
    %1086 = vmatpush1.bf16.msra.mxu0 %v814
    %1087 = vmatprep.subr.bf16.mxu0 %v823
    %1088 = vmatpush1.bf16.msra.mxu0 %v822
    %1089 = vmatprep.subr.bf16.mxu0 %v831
    %1090 = vmatpush1.bf16.msra.mxu0 %v830
    %1091 = vmatprep.subr.bf16.mxu0 %v839
    %1092 = vmatpush1.bf16.msra.mxu0 %v838
    %1093 = vmatprep.subr.bf16.mxu0 %v847
    %1094 = vmatpush1.bf16.msra.mxu0 %v846
    %1095 = vmatprep.subr.bf16.mxu0 %v855
    %1096 = vmatpush1.bf16.msra.mxu0 %v854
    %1097 = vmatprep.subr.bf16.mxu0 %v863
    %1098 = vmatpush1.bf16.msra.mxu0 %v862
    %1099 = vmatprep.subr.bf16.mxu0 %v871
    %1100 = vmatpush1.bf16.msra.mxu0 %v870
    %1101 = vmatprep.subr.bf16.mxu0 %v879
    %1102 = vmatpush1.bf16.msra.mxu0 %v878
    %1103 = vmatprep.subr.bf16.mxu0 %v887
    %1104 = vmatpush1.bf16.msra.mxu0 %v886
    %1105 = vmatprep.mubr.bf16.mxu0 %v207
    %1106 = vmatmul.mubr.bf16.gmra.mrb[0].mxu0 %v206
    %v1107 = vpop.f32.mrb[0].mxu0
    %v1108 = vadd.f32 %v351, %v1107
    %v1109 = vpop.f32.mrb[0].mxu0
    %v1110 = vadd.f32 %v355, %v1109
    %v1111 = vpop.f32.mrb[0].mxu0
    %v1112 = vadd.f32 %v351, %v1111
    %v1113 = vpop.f32.mrb[0].mxu0
    %v1114 = vadd.f32 %v355, %v1113
    %1115 = vmatprep.mubr.bf16.mxu0 %v209
    %1116 = vmatmul.mubr.bf16.gmra.mrb[0].mxu0 %v208
    %v1117 = vpop.f32.mrb[0].mxu0
    %v1118 = vadd.f32 %v351, %v1117
    %v1119 = vpop.f32.mrb[0].mxu0
    %v1120 = vadd.f32 %v355, %v1119
    %v1121 = vpop.f32.mrb[0].mxu0
    %v1122 = vadd.f32 %v351, %v1121
    %v1123 = vpop.f32.mrb[0].mxu0
    %v1124 = vadd.f32 %v355, %v1123
    %1125 = vdwg.mxu0
    %1126 = vmatprep.subr.bf16.mxu0 %v769
    %1127 = vmatpush1.bf16.msra.mxu0 %v768
    %1128 = vmatprep.subr.bf16.mxu0 %v777
    %1129 = vmatpush1.bf16.msra.mxu0 %v776
    %1130 = vmatprep.subr.bf16.mxu0 %v785
    %1131 = vmatpush1.bf16.msra.mxu0 %v784
    %1132 = vmatprep.subr.bf16.mxu0 %v793
    %1133 = vmatpush1.bf16.msra.mxu0 %v792
    %1134 = vmatprep.subr.bf16.mxu0 %v801
    %1135 = vmatpush1.bf16.msra.mxu0 %v800
    %1136 = vmatprep.subr.bf16.mxu0 %v809
    %1137 = vmatpush1.bf16.msra.mxu0 %v808
    %1138 = vmatprep.subr.bf16.mxu0 %v817
    %1139 = vmatpush1.bf16.msra.mxu0 %v816
    %1140 = vmatprep.subr.bf16.mxu0 %v825
    %1141 = vmatpush1.bf16.msra.mxu0 %v824
    %1142 = vmatprep.subr.bf16.mxu0 %v833
    %1143 = vmatpush1.bf16.msra.mxu0 %v832
    %1144 = vmatprep.subr.bf16.mxu0 %v841
    %1145 = vmatpush1.bf16.msra.mxu0 %v840
    %1146 = vmatprep.subr.bf16.mxu0 %v849
    %1147 = vmatpush1.bf16.msra.mxu0 %v848
    %1148 = vmatprep.subr.bf16.mxu0 %v857
    %1149 = vmatpush1.bf16.msra.mxu0 %v856
    %1150 = vmatprep.subr.bf16.mxu0 %v865
    %1151 = vmatpush1.bf16.msra.mxu0 %v864
    %1152 = vmatprep.subr.bf16.mxu0 %v873
    %1153 = vmatpush1.bf16.msra.mxu0 %v872
    %1154 = vmatprep.subr.bf16.mxu0 %v881
    %1155 = vmatpush1.bf16.msra.mxu0 %v880
    %1156 = vmatprep.subr.bf16.mxu0 %v889
    %1157 = vmatpush1.bf16.msra.mxu0 %v888
    %1158 = vmatprep.mubr.bf16.mxu0 %v207
    %1159 = vmatmul.mubr.bf16.gmra.mrb[0].mxu0 %v206
    %v1160 = vpop.f32.mrb[0].mxu0
    %v1161 = vadd.f32 %v359, %v1160
    %v1162 = vpop.f32.mrb[0].mxu0
    %v1163 = vadd.f32 %v363, %v1162
    %v1164 = vpop.f32.mrb[0].mxu0
    %v1165 = vadd.f32 %v359, %v1164
    %v1166 = vpop.f32.mrb[0].mxu0
    %v1167 = vadd.f32 %v363, %v1166
    %1168 = vmatprep.mubr.bf16.mxu0 %v209
    %1169 = vmatmul.mubr.bf16.gmra.mrb[0].mxu0 %v208
    %v1170 = vpop.f32.mrb[0].mxu0
    %v1171 = vadd.f32 %v359, %v1170
    %v1172 = vpop.f32.mrb[0].mxu0
    %v1173 = vadd.f32 %v363, %v1172
    %v1174 = vpop.f32.mrb[0].mxu0
    %v1175 = vadd.f32 %v359, %v1174
    %v1176 = vpop.f32.mrb[0].mxu0
    %v1177 = vadd.f32 %v363, %v1176
    %1178 = vdwg.mxu0
    %1179 = vmatprep.subr.bf16.mxu0 %v771
    %1180 = vmatpush1.bf16.msra.mxu0 %v770
    %1181 = vmatprep.subr.bf16.mxu0 %v779
    %1182 = vmatpush1.bf16.msra.mxu0 %v778
    %1183 = vmatprep.subr.bf16.mxu0 %v787
    %1184 = vmatpush1.bf16.msra.mxu0 %v786
    %1185 = vmatprep.subr.bf16.mxu0 %v795
    %1186 = vmatpush1.bf16.msra.mxu0 %v794
    %1187 = vmatprep.subr.bf16.mxu0 %v803
    %1188 = vmatpush1.bf16.msra.mxu0 %v802
    %1189 = vmatprep.subr.bf16.mxu0 %v811
    %1190 = vmatpush1.bf16.msra.mxu0 %v810
    %1191 = vmatprep.subr.bf16.mxu0 %v819
    %1192 = vmatpush1.bf16.msra.mxu0 %v818
    %1193 = vmatprep.subr.bf16.mxu0 %v827
    %1194 = vmatpush1.bf16.msra.mxu0 %v826
    %1195 = vmatprep.subr.bf16.mxu0 %v835
    %1196 = vmatpush1.bf16.msra.mxu0 %v834
    %1197 = vmatprep.subr.bf16.mxu0 %v843
    %1198 = vmatpush1.bf16.msra.mxu0 %v842
    %1199 = vmatprep.subr.bf16.mxu0 %v851
    %1200 = vmatpush1.bf16.msra.mxu0 %v850
    %1201 = vmatprep.subr.bf16.mxu0 %v859
    %1202 = vmatpush1.bf16.msra.mxu0 %v858
    %1203 = vmatprep.subr.bf16.mxu0 %v867
    %1204 = vmatpush1.bf16.msra.mxu0 %v866
    %1205 = vmatprep.subr.bf16.mxu0 %v875
    %1206 = vmatpush1.bf16.msra.mxu0 %v874
    %1207 = vmatprep.subr.bf16.mxu0 %v883
    %1208 = vmatpush1.bf16.msra.mxu0 %v882
    %1209 = vmatprep.subr.bf16.mxu0 %v891
    %1210 = vmatpush1.bf16.msra.mxu0 %v890
    %1211 = vmatprep.mubr.bf16.mxu0 %v207
    %1212 = vmatmul.mubr.bf16.gmra.mrb[0].mxu0 %v206
    %v1213 = vpop.f32.mrb[0].mxu0
    %v1214 = vadd.f32 %v367, %v1213
    %v1215 = vpop.f32.mrb[0].mxu0
    %v1216 = vadd.f32 %v371, %v1215
    %v1217 = vpop.f32.mrb[0].mxu0
    %v1218 = vadd.f32 %v367, %v1217
    %v1219 = vpop.f32.mrb[0].mxu0
    %v1220 = vadd.f32 %v371, %v1219
    %1221 = vmatprep.mubr.bf16.mxu0 %v209
    %1222 = vmatmul.mubr.bf16.gmra.mrb[0].mxu0 %v208
    %v1223 = vpop.f32.mrb[0].mxu0
    %v1224 = vadd.f32 %v367, %v1223
    %v1225 = vpop.f32.mrb[0].mxu0
    %v1226 = vadd.f32 %v371, %v1225
    %v1227 = vpop.f32.mrb[0].mxu0
    %v1228 = vadd.f32 %v367, %v1227
    %v1229 = vpop.f32.mrb[0].mxu0
    %v1230 = vadd.f32 %v371, %v1229
    %1231 = vdwg.mxu0
    %vm1232 = vcmp.gt.f32.partialorder %v1055, 0.0
    %vm1233 = vcmp.gt.f32.partialorder %v1057, 0.0
    %vm1234 = vcmp.gt.f32.partialorder %v1108, 0.0
    %vm1235 = vcmp.gt.f32.partialorder %v1110, 0.0
    %vm1236 = vcmp.gt.f32.partialorder %v1161, 0.0
    %vm1237 = vcmp.gt.f32.partialorder %v1163, 0.0
    %vm1238 = vcmp.gt.f32.partialorder %v1214, 0.0
    %vm1239 = vcmp.gt.f32.partialorder %v1216, 0.0
    %vm1240 = vcmp.gt.f32.partialorder %v1059, 0.0
    %vm1241 = vcmp.gt.f32.partialorder %v1061, 0.0
    %vm1242 = vcmp.gt.f32.partialorder %v1112, 0.0
    %vm1243 = vcmp.gt.f32.partialorder %v1114, 0.0
    %vm1244 = vcmp.gt.f32.partialorder %v1165, 0.0
    %vm1245 = vcmp.gt.f32.partialorder %v1167, 0.0
    %vm1246 = vcmp.gt.f32.partialorder %v1218, 0.0
    %vm1247 = vcmp.gt.f32.partialorder %v1220, 0.0
    %vm1248 = vcmp.gt.f32.partialorder %v1065, 0.0
    %vm1249 = vcmp.gt.f32.partialorder %v1067, 0.0
    %vm1250 = vcmp.gt.f32.partialorder %v1118, 0.0
    %vm1251 = vcmp.gt.f32.partialorder %v1120, 0.0
    %vm1252 = vcmp.gt.f32.partialorder %v1171, 0.0
    %vm1253 = vcmp.gt.f32.partialorder %v1173, 0.0
    %vm1254 = vcmp.gt.f32.partialorder %v1224, 0.0
    %vm1255 = vcmp.gt.f32.partialorder %v1226, 0.0
    %vm1256 = vcmp.gt.f32.partialorder %v1069, 0.0
    %vm1257 = vcmp.gt.f32.partialorder %v1071, 0.0
    %vm1258 = vcmp.gt.f32.partialorder %v1122, 0.0
    %vm1259 = vcmp.gt.f32.partialorder %v1124, 0.0
    %vm1260 = vcmp.gt.f32.partialorder %v1175, 0.0
    %vm1261 = vcmp.gt.f32.partialorder %v1177, 0.0
    %vm1262 = vcmp.gt.f32.partialorder %v1228, 0.0
    %vm1263 = vcmp.gt.f32.partialorder %v1230, 0.0
    %v1264 = vmul.f32 %v1055, 0.2
    %v1265 = vmul.f32 %v1057, 0.2
    %v1266 = vmul.f32 %v1108, 0.2
    %v1267 = vmul.f32 %v1110, 0.2
    %v1268 = vmul.f32 %v1161, 0.2
    %v1269 = vmul.f32 %v1163, 0.2
    %v1270 = vmul.f32 %v1214, 0.2
    %v1271 = vmul.f32 %v1216, 0.2
    %v1272 = vmul.f32 %v1059, 0.2
    %v1273 = vmul.f32 %v1061, 0.2
    %v1274 = vmul.f32 %v1112, 0.2
    %v1275 = vmul.f32 %v1114, 0.2
    %v1276 = vmul.f32 %v1165, 0.2
    %v1277 = vmul.f32 %v1167, 0.2
    %v1278 = vmul.f32 %v1218, 0.2
    %v1279 = vmul.f32 %v1220, 0.2
    %v1280 = vmul.f32 %v1065, 0.2
    %v1281 = vmul.f32 %v1067, 0.2
    %v1282 = vmul.f32 %v1118, 0.2
    %v1283 = vmul.f32 %v1120, 0.2
    %v1284 = vmul.f32 %v1171, 0.2
    %v1285 = vmul.f32 %v1173, 0.2
    %v1286 = vmul.f32 %v1224, 0.2
    %v1287 = vmul.f32 %v1226, 0.2
    %v1288 = vmul.f32 %v1069, 0.2
    %v1289 = vmul.f32 %v1071, 0.2
    %v1290 = vmul.f32 %v1122, 0.2
    %v1291 = vmul.f32 %v1124, 0.2
    %v1292 = vmul.f32 %v1175, 0.2
    %v1293 = vmul.f32 %v1177, 0.2
    %v1294 = vmul.f32 %v1228, 0.2
    %v1295 = vmul.f32 %v1230, 0.2
    %v1296 = vsel %vm1232, %v1055, %v1264
    %v1297 = vsel %vm1233, %v1057, %v1265
    %v1298 = vsel %vm1234, %v1108, %v1266
    %v1299 = vsel %vm1235, %v1110, %v1267
    %v1300 = vsel %vm1236, %v1161, %v1268
    %v1301 = vsel %vm1237, %v1163, %v1269
    %v1302 = vsel %vm1238, %v1214, %v1270
    %v1303 = vsel %vm1239, %v1216, %v1271
    %v1304 = vsel %vm1240, %v1059, %v1272
    %v1305 = vsel %vm1241, %v1061, %v1273
    %v1306 = vsel %vm1242, %v1112, %v1274
    %v1307 = vsel %vm1243, %v1114, %v1275
    %v1308 = vsel %vm1244, %v1165, %v1276
    %v1309 = vsel %vm1245, %v1167, %v1277
    %v1310 = vsel %vm1246, %v1218, %v1278
    %v1311 = vsel %vm1247, %v1220, %v1279
    %v1312 = vsel %vm1248, %v1065, %v1280
    %v1313 = vsel %vm1249, %v1067, %v1281
    %v1314 = vsel %vm1250, %v1118, %v1282
    %v1315 = vsel %vm1251, %v1120, %v1283
    %v1316 = vsel %vm1252, %v1171, %v1284
    %v1317 = vsel %vm1253, %v1173, %v1285
    %v1318 = vsel %vm1254, %v1224, %v1286
    %v1319 = vsel %vm1255, %v1226, %v1287
    %v1320 = vsel %vm1256, %v1069, %v1288
    %v1321 = vsel %vm1257, %v1071, %v1289
    %v1322 = vsel %vm1258, %v1122, %v1290
    %v1323 = vsel %vm1259, %v1124, %v1291
    %v1324 = vsel %vm1260, %v1175, %v1292
    %v1325 = vsel %vm1261, %v1177, %v1293
    %v1326 = vsel %vm1262, %v1228, %v1294
    %v1327 = vsel %vm1263, %v1230, %v1295
    %v1328 = vpack.c.bf16 %v1304, %v1296
    %v1329 = vpack.c.bf16 %v1305, %v1297
    %v1330 = vpack.c.bf16 %v1306, %v1298
    %v1331 = vpack.c.bf16 %v1307, %v1299
    %v1332 = vpack.c.bf16 %v1308, %v1300
    %v1333 = vpack.c.bf16 %v1309, %v1301
    %v1334 = vpack.c.bf16 %v1310, %v1302
    %v1335 = vpack.c.bf16 %v1311, %v1303
    %v1336 = vpack.c.bf16 %v1320, %v1312
    %v1337 = vpack.c.bf16 %v1321, %v1313
    %v1338 = vpack.c.bf16 %v1322, %v1314
    %v1339 = vpack.c.bf16 %v1323, %v1315
    %v1340 = vpack.c.bf16 %v1324, %v1316
    %v1341 = vpack.c.bf16 %v1325, %v1317
    %v1342 = vpack.c.bf16 %v1326, %v1318
    %v1343 = vpack.c.bf16 %v1327, %v1319
    %v1360 = vunpack.c.l.b16 %v1328
    %v1361 = vunpack.c.l.b16 %v1329
    %v1362 = vunpack.c.l.b16 %v1330
    %v1363 = vunpack.c.l.b16 %v1331
    %v1364 = vunpack.c.l.b16 %v1332
    %v1365 = vunpack.c.l.b16 %v1333
    %v1366 = vunpack.c.l.b16 %v1334
    %v1367 = vunpack.c.l.b16 %v1335
    %v1368 = vunpack.c.h.b16 %v1328
    %v1369 = vunpack.c.h.b16 %v1329
    %v1370 = vunpack.c.h.b16 %v1330
    %v1371 = vunpack.c.h.b16 %v1331
    %v1372 = vunpack.c.h.b16 %v1332
    %v1373 = vunpack.c.h.b16 %v1333
    %v1374 = vunpack.c.h.b16 %v1334
    %v1375 = vunpack.c.h.b16 %v1335
    %v1376 = vunpack.c.l.b16 %v1336
    %v1377 = vunpack.c.l.b16 %v1337
    %v1378 = vunpack.c.l.b16 %v1338
    %v1379 = vunpack.c.l.b16 %v1339
    %v1380 = vunpack.c.l.b16 %v1340
    %v1381 = vunpack.c.l.b16 %v1341
    %v1382 = vunpack.c.l.b16 %v1342
    %v1383 = vunpack.c.l.b16 %v1343
    %v1384 = vunpack.c.h.b16 %v1336
    %v1385 = vunpack.c.h.b16 %v1337
    %v1386 = vunpack.c.h.b16 %v1338
    %v1387 = vunpack.c.h.b16 %v1339
    %v1388 = vunpack.c.h.b16 %v1340
    %v1389 = vunpack.c.h.b16 %v1341
    %v1390 = vunpack.c.h.b16 %v1342
    %v1391 = vunpack.c.h.b16 %v1343
    %v1392 = vpack.c.b16 %v1361, %v1360
    %v1393 = vpack.c.b16 %v1363, %v1362
    %v1394 = vpack.c.b16 %v1365, %v1364
    %v1395 = vpack.c.b16 %v1367, %v1366
    %v1396 = vpack.c.b16 %v1369, %v1368
    %v1397 = vpack.c.b16 %v1371, %v1370
    %v1398 = vpack.c.b16 %v1373, %v1372
    %v1399 = vpack.c.b16 %v1375, %v1374
    %v1400 = vpack.c.b16 %v1377, %v1376
    %v1401 = vpack.c.b16 %v1379, %v1378
    %v1402 = vpack.c.b16 %v1381, %v1380
    %v1403 = vpack.c.b16 %v1383, %v1382
    %v1404 = vpack.c.b16 %v1385, %v1384
    %v1405 = vpack.c.b16 %v1387, %v1386
    %v1406 = vpack.c.b16 %v1389, %v1388
    %v1407 = vpack.c.b16 %v1391, %v1390
    %1424 = vst [vmem:[%s5] sm:$0xff] %v1392
    %1425 = vst [vmem:[%s5 + $0x8] sm:$0xff] %v1393
    %1426 = vst [vmem:[%s5 + $0x10] sm:$0xff] %v1394
    %1427 = vst [vmem:[%s5 + $0x18] sm:$0xff] %v1395
    %1428 = vst [vmem:[%s5 + $0x20] sm:$0xff] %v1396
    %1429 = vst [vmem:[%s5 + $0x28] sm:$0xff] %v1397
    %1430 = vst [vmem:[%s5 + $0x30] sm:$0xff] %v1398
    %1431 = vst [vmem:[%s5 + $0x38] sm:$0xff] %v1399
    %1432 = vst [vmem:[%s5 + $0x40] sm:$0xff] %v1400
    %1433 = vst [vmem:[%s5 + $0x48] sm:$0xff] %v1401
    %1434 = vst [vmem:[%s5 + $0x50] sm:$0xff] %v1402
    %1435 = vst [vmem:[%s5 + $0x58] sm:$0xff] %v1403
    %1436 = vst [vmem:[%s5 + $0x60] sm:$0xff] %v1404
    %1437 = vst [vmem:[%s5 + $0x68] sm:$0xff] %v1405
    %1438 = vst [vmem:[%s5 + $0x70] sm:$0xff] %v1406
    %1439 = vst [vmem:[%s5 + $0x78] sm:$0xff] %v1407
    // Predicated region
    $region38: #{generator_forward.2} parent=1 // pred_check
      _
    $region39: #{generator_forward.2} parent=1 // pred_check_branch
      %1441 = sbr.rel (0) target = $region41
    $region40: #{generator_forward.2} parent=1 // pred_region
      _
    $region41: #{generator_forward.2} parent=1 // pred_fallthru
      _
    // Predicated region
    $region42: #{generator_forward.2} parent=1 // pred_check
      _
    $region43: #{generator_forward.2} parent=1 // pred_check_branch
      %1443 = sbr.rel (0) target = $region45
    $region44: #{generator_forward.2} parent=1 // pred_region
      _
    $region45: #{generator_forward.2} parent=1 // pred_fallthru
      _
    %1444 = vsyncpa [#allocation3], 1
    %1445 = vsyncpa [#allocation5], 1
    %1446 = vsyncpa [#allocation8], 1

// kernel: generator_forward.3
$region0: #{generator_forward.3}
  #allocation0 [shape = 'u32[]', space=smem, size = 0x4, offset = 0x4, fixed_abs, tag = 'smem constant byte address 0x4 - core index']
  #allocation1 [shape = 'u32[144,128]{1,0:T(1,128)}', space=vmem, size = 0x12000, scoped, tag = 'internal scratch']
  %s0 = inlined_call_operand.vmem [shape: bf16[4,32,4096], index: 0, kind: input, shape index: {}]
  %s1 = inlined_call_operand.hbm [shape: bf16[4,4096,256], index: 1, kind: input, shape index: {}]
  %s2 = inlined_call_operand.hbm [shape: f32[1,256], index: 2, kind: input, shape index: {}]
  %s3 = inlined_call_operand.hbm [shape: bf16[256,128], index: 3, kind: input, shape index: {}]
  %s4 = inlined_call_operand.vmem [shape: f32[4,32,128], index: 4, kind: output, shape index: {}]
  %s5 = sld [smem:[#allocation0]]
  $region61: #{generator_forward.3} parent=0
    _
  %s7 = ssub.s32 1, %s5
  %s8 = scalar_select 0, %s7, %s5
  $region1: #{generator_forward.3} parent=0
    #allocation2 [shape = 'u8[4194304]{0}', space=vmem, size = 0x400000, scoped, tag = 'input window, operand 1']
    #allocation3 [shape = 's32[2]{0}', space=sflag, size = 0x8, scoped, tag = 'scoped memory for generator_forward.3']
    #allocation4 [shape = 'u8[1024]{0}', space=vmem, size = 0x400, scoped, tag = 'input window, operand 2, single buffered']
    #allocation5 [shape = 's32[1]{0}', space=sflag, size = 0x4, scoped, tag = 'scoped memory for generator_forward.3']
    #allocation6 [shape = 'u8[65536]{0}', space=vmem, size = 0x10000, scoped, tag = 'input window, operand 3, single buffered']
    %9 = vsyncpa [#allocation3], 0
    %s10 = scalar_lea.sflag [#allocation3], 1
    %11 = vsyncpa %s10, 0
    %12 = vsyncpa [#allocation5], 0
    loop: start=0, step=1, limit=6
    $region2: #{generator_forward.3} parent=1 // loop_pre_header
      _
    $region3: #{generator_forward.3} parent=1 // loop_header
      %s14 = sphi 0, %s18
      %p15 = scmp.ge.s32.totalorder %s14, 6
      %s21 = sphi 0, %s33
      %s22 = sphi 0, %s29
      %s23 = sphi 0, %s21
      %s24 = sphi 0, %s22
      %s25 = sphi 0, %s23
      %s26 = sphi 0, %s24
      %s38 = sphi 0, %s40
      %s41 = sphi 0, %s38
      %s42 = sphi 0, %s41
      %s58 = sphi 0, %s42
      %s64 = sphi 0, %s66
      %s67 = sphi 0, %s64
      %s68 = sphi 0, %s67
      %s84 = sphi 0, %s68
      %s88 = sphi 0, %s88
      %s90 = sphi 0, %s88
      %s91 = sphi 0, %s90
      %s105 = sphi 0, %s91
      %s109 = sphi 0, %s109
      %s111 = sphi 0, %s109
      %s112 = sphi 0, %s111
      %s126 = sphi 0, %s112
      %s134 = sphi 0, %s136
      %s137 = sphi 0, %s134
      %s138 = sphi 0, %s137
      %s154 = sphi 0, %s138
    $region4: #{generator_forward.3} parent=1 // loop_header_branch
      %17 = sbr.rel (%p15) target = $region8
    $region5: #{generator_forward.3} parent=1 // loop_body
      %s19 = ssub.s32 %s14, 1
      %s20 = ssub.s32 %s14, 2
      %s27 = sadd.s32 1, %s22
      %p28 = scmp.ge.s32.totalorder %s27, 1
      %s29 = scalar_select %p28, 0, %s27
      %s30 = sadd.s32 1, %s21
      %s31 = scalar_select %p28, %s30, %s21
      %p32 = scmp.ge.s32.totalorder %s31, 4
      %s33 = scalar_select %p32, 0, %s31
      %s34 = ssub.s32 %s21, %s33
      %s35 = ssub.s32 %s22, %s29
      %s36 = sor.u32 %s34, %s35
      %p37 = scmp.eq.s32.totalorder %s36, 0
      %s39 = sadd.s32 %s38, 1
      %s40 = scalar_select %p37, %s38, %s39
      %p43 = pneg %p37
      %p44 = scmp.eq.s32.totalorder %s14, 3
      %p45 = por %p43, %p44
      %p46 = scmp.ne.s32.totalorder %s38, %s41
      %p47 = scmp.eq.s32.totalorder %s14, 0
      %p48 = por %p46, %p47
      %p49 = scmp.ne.s32.totalorder %s38, %s41
      %p50 = scmp.eq.s32.totalorder %s19, 3
      %p51 = por %p49, %p50
      %p52 = scmp.ne.s32.totalorder %s41, %s42
      %p53 = scmp.eq.s32.totalorder %s19, 0
      %p54 = por %p52, %p53
      %p55 = scmp.ne.s32.totalorder %s41, %s42
      %p56 = scmp.eq.s32.totalorder %s20, 3
      %p57 = por %p55, %p56
      %p59 = scmp.ne.s32.totalorder %s42, %s58
      %p60 = scmp.eq.s32.totalorder %s20, 0
      %p61 = por %p59, %p60
      %s62 = ssub.s32 %s21, %s33
      %p63 = scmp.eq.s32.totalorder %s62, 0
      %s65 = sadd.s32 %s64, 1
      %s66 = scalar_select %p63, %s64, %s65
      %p69 = pneg %p63
      %p70 = scmp.eq.s32.totalorder %s14, 3
      %p71 = por %p69, %p70
      %p72 = scmp.ne.s32.totalorder %s64, %s67
      %p73 = scmp.eq.s32.totalorder %s14, 0
      %p74 = por %p72, %p73
      %p75 = scmp.ne.s32.totalorder %s64, %s67
      %p76 = scmp.eq.s32.totalorder %s19, 3
      %p77 = por %p75, %p76
      %p78 = scmp.ne.s32.totalorder %s67, %s68
      %p79 = scmp.eq.s32.totalorder %s19, 0
      %p80 = por %p78, %p79
      %p81 = scmp.ne.s32.totalorder %s67, %s68
      %p82 = scmp.eq.s32.totalorder %s20, 3
      %p83 = por %p81, %p82
      %p85 = scmp.ne.s32.totalorder %s68, %s84
      %p86 = scmp.eq.s32.totalorder %s20, 0
      %p87 = por %p85, %p86
      %s89 = sadd.s32 %s88, 1
      %p92 = scmp.eq.s32.totalorder %s14, 3
      %p93 = scmp.ne.s32.totalorder %s88, %s90
      %p94 = scmp.eq.s32.totalorder %s14, 0
      %p95 = por %p93, %p94
      %p96 = scmp.ne.s32.totalorder %s88, %s90
      %p97 = scmp.eq.s32.totalorder %s19, 3
      %p98 = por %p96, %p97
      %p99 = scmp.ne.s32.totalorder %s90, %s91
      %p100 = scmp.eq.s32.totalorder %s19, 0
      %p101 = por %p99, %p100
      %p102 = scmp.ne.s32.totalorder %s90, %s91
      %p103 = scmp.eq.s32.totalorder %s20, 3
      %p104 = por %p102, %p103
      %p106 = scmp.ne.s32.totalorder %s91, %s105
      %p107 = scmp.eq.s32.totalorder %s20, 0
      %p108 = por %p106, %p107
      %s110 = sadd.s32 %s109, 1
      %p113 = scmp.eq.s32.totalorder %s14, 3
      %p114 = scmp.ne.s32.totalorder %s109, %s111
      %p115 = scmp.eq.s32.totalorder %s14, 0
      %p116 = por %p114, %p115
      %p117 = scmp.ne.s32.totalorder %s109, %s111
      %p118 = scmp.eq.s32.totalorder %s19, 3
      %p119 = por %p117, %p118
      %p120 = scmp.ne.s32.totalorder %s111, %s112
      %p121 = scmp.eq.s32.totalorder %s19, 0
      %p122 = por %p120, %p121
      %p123 = scmp.ne.s32.totalorder %s111, %s112
      %p124 = scmp.eq.s32.totalorder %s20, 3
      %p125 = por %p123, %p124
      %p127 = scmp.ne.s32.totalorder %s112, %s126
      %p128 = scmp.eq.s32.totalorder %s20, 0
      %p129 = por %p127, %p128
      %s130 = ssub.s32 %s21, %s33
      %s131 = ssub.s32 %s22, %s29
      %s132 = sor.u32 %s130, %s131
      %p133 = scmp.eq.s32.totalorder %s132, 0
      %s135 = sadd.s32 %s134, 1
      %s136 = scalar_select %p133, %s134, %s135
      %p139 = pneg %p133
      %p140 = scmp.eq.s32.totalorder %s14, 3
      %p141 = por %p139, %p140
      %p142 = scmp.ne.s32.totalorder %s134, %s137
      %p143 = scmp.eq.s32.totalorder %s14, 0
      %p144 = por %p142, %p143
      %p145 = scmp.ne.s32.totalorder %s134, %s137
      %p146 = scmp.eq.s32.totalorder %s19, 3
      %p147 = por %p145, %p146
      %p148 = scmp.ne.s32.totalorder %s137, %s138
      %p149 = scmp.eq.s32.totalorder %s19, 0
      %p150 = por %p148, %p149
      %p151 = scmp.ne.s32.totalorder %s137, %s138
      %p152 = scmp.eq.s32.totalorder %s20, 3
      %p153 = por %p151, %p152
      %p155 = scmp.ne.s32.totalorder %s138, %s154
      %p156 = scmp.eq.s32.totalorder %s20, 0
      %p157 = por %p155, %p156
      %p158 = scmp.le.s32.totalorder 1, %s14
      %p159 = scmp.lt.s32.totalorder %s14, 5
      %p160 = pnand %p158, %p159
      %p161 = pneg %p160
      // Predicated region
      $region9: #{generator_forward.3} parent=5 // pred_check
        _
      $region10: #{generator_forward.3} parent=5 // pred_check_branch
        %163 = sbr.rel (%p160) target = $region12
      $region11: #{generator_forward.3} parent=5 // pred_region
        %s164 = ssub.s32 %s14, 1
        // Predicated region
        $region13: #{generator_forward.3} parent=11 // pred_check
          %p165 = pneg %p101
        $region14: #{generator_forward.3} parent=11 // pred_check_branch
          %167 = sbr.rel (%p165) target = $region16
        $region15: #{generator_forward.3} parent=11 // pred_region
          %s169 = ssub.s32 32, 32
          %170 = vsyncadd [#allocation5], %s169
          %s172 = sshll.u32 [#allocation4], 4
          %s173 = int_to_ptr.vmem [resolvable:$true] %s172
          %175 = dma.hbm_to_vmem [thread:$0]  %s2, 32, %s173, [#allocation5]
        $region16: #{generator_forward.3} parent=11 // pred_fallthru
          _
        // Predicated region
        $region17: #{generator_forward.3} parent=11 // pred_check
          %p176 = pneg %p122
        $region18: #{generator_forward.3} parent=11 // pred_check_branch
          %178 = sbr.rel (%p176) target = $region20
        $region19: #{generator_forward.3} parent=11 // pred_region
          %s180 = ssub.s32 2048, 2048
          %181 = vsyncadd [#allocation5], %s180
          %s182 = sshll.u32 [#allocation6], 4
          %s183 = int_to_ptr.vmem [resolvable:$true] %s182
          %188 = dma.hbm_to_vmem [thread:$0]  %s3, 2048, %s183, [#allocation5], 64, 64, 4
        $region20: #{generator_forward.3} parent=11 // pred_fallthru
          _
      $region12: #{generator_forward.3} parent=5 // pred_fallthru
        _
      %p189 = scmp.lt.s32.totalorder %s14, 4
      // Predicated region
      $region21: #{generator_forward.3} parent=5 // pred_check
        %p190 = pneg %p189
      $region22: #{generator_forward.3} parent=5 // pred_check_branch
        %192 = sbr.rel (%p190) target = $region24
      $region23: #{generator_forward.3} parent=5 // pred_region
        // Predicated region
        $region25: #{generator_forward.3} parent=23 // pred_check
          %p193 = pneg %p48
        $region26: #{generator_forward.3} parent=23 // pred_check_branch
          %195 = sbr.rel (%p193) target = $region28
        $region27: #{generator_forward.3} parent=23 // pred_region
          %s196 = smul.u32 4, %s22
          %p197 = scmp.lt.s32.totalorder %s21, 3
          %s198 = scalar_select %p197, %s21, 3
          %p199 = scmp.lt.s32.totalorder %s196, 3
          %s200 = scalar_select %p199, %s196, 3
          %s201 = smul.addr %s200, 32
          %s202 = smul.addr %s198, 128
          %s203 = sadd.s32 %s201, %s202
          %s204 = smul.addr %s203, 4
          %s205 = scalar_lea.vmem %s0, %s204
          %s206 = smul.u32 4, %s22
        $region28: #{generator_forward.3} parent=23 // pred_fallthru
          _
        // Predicated region
        $region29: #{generator_forward.3} parent=23 // pred_check
          %p207 = pneg %p74
        $region30: #{generator_forward.3} parent=23 // pred_check_branch
          %209 = sbr.rel (%p207) target = $region32
        $region31: #{generator_forward.3} parent=23 // pred_region
          %s210 = sand.u32 %s64, 1
          %s211 = scalar_lea.sflag [#allocation3], %s210
          %s212 = sand.u32 %s64, 1
          %s213 = smul.addr %s212, 4096
          %s214 = scalar_lea.vmem [#allocation2], %s213
          %s216 = ssub.s32 65536, 65536
          %217 = vsyncadd %s211, %s216
          %s218 = smul.addr %s21, 1024
          %s219 = smul.addr %s218, 64
          %s220 = scalar_lea.hbm %s1, %s219
          %s221 = sshll.u32 %s214, 4
          %s222 = int_to_ptr.vmem [resolvable:$true] %s221
          %227 = dma.hbm_to_vmem [thread:$0]  %s220, 65536, %s222, %s211, 128, 128, 8
        $region32: #{generator_forward.3} parent=23 // pred_fallthru
          _
      $region24: #{generator_forward.3} parent=5 // pred_fallthru
        _
      %p228 = scmp.le.s32.totalorder 1, %s14
      %p229 = scmp.lt.s32.totalorder %s14, 5
      %p230 = pnand %p228, %p229
      %p231 = pneg %p230
      // Predicated region
      $region33: #{generator_forward.3} parent=5 // pred_check
        _
      $region34: #{generator_forward.3} parent=5 // pred_check_branch
        %233 = sbr.rel (%p230) target = $region36
      $region35: #{generator_forward.3} parent=5 // pred_region
        %s234 = ssub.s32 %s14, 1
        %s235 = sand.u32 %s67, 1
        %s236 = scalar_lea.sflag [#allocation3], %s235
        %s237 = sand.u32 %s67, 1
        %s238 = smul.addr %s237, 4096
        %s239 = scalar_lea.vmem [#allocation2], %s238
        // Predicated region
        $region37: #{generator_forward.3} parent=35 // pred_check
          %p240 = pneg %p80
        $region38: #{generator_forward.3} parent=35 // pred_check_branch
          %242 = sbr.rel (%p240) target = $region40
        $region39: #{generator_forward.3} parent=35 // pred_region
          %243 = dma.done %s236, 65536
        $region40: #{generator_forward.3} parent=35 // pred_fallthru
          _
        // Predicated region
        $region41: #{generator_forward.3} parent=35 // pred_check
          %p244 = pneg %p101
        $region42: #{generator_forward.3} parent=35 // pred_check_branch
          %246 = sbr.rel (%p244) target = $region44
        $region43: #{generator_forward.3} parent=35 // pred_region
          %247 = dma.done [#allocation5], 32
        $region44: #{generator_forward.3} parent=35 // pred_fallthru
          _
        // Predicated region
        $region45: #{generator_forward.3} parent=35 // pred_check
          %p248 = pneg %p122
        $region46: #{generator_forward.3} parent=35 // pred_check_branch
          %250 = sbr.rel (%p248) target = $region48
        $region47: #{generator_forward.3} parent=35 // pred_region
          %251 = dma.done [#allocation5], 2048
        $region48: #{generator_forward.3} parent=35 // pred_fallthru
          _
        %s252 = smul.u32 4, %s24
        %p253 = scmp.lt.s32.totalorder %s23, 3
        %s254 = scalar_select %p253, %s23, 3
        %p255 = scmp.lt.s32.totalorder %s252, 3
        %s256 = scalar_select %p255, %s252, 3
        %s257 = smul.addr %s256, 32
        %s258 = smul.addr %s254, 128
        %s259 = sadd.s32 %s257, %s258
        %s260 = smul.addr %s259, 4
        %s261 = scalar_lea.vmem %s0, %s260
        %p262 = pneg %p54
        %p263 = pneg %p51
        %s264 = sand.u32 %s67, 1
        %s265 = scalar_lea.sflag [#allocation3], %s264
        %s266 = sand.u32 %s67, 1
        %s267 = smul.addr %s266, 4096
        %s268 = scalar_lea.vmem [#allocation2], %s267
        %p269 = pneg %p80
        %p270 = pneg %p77
        %p271 = pneg %p101
        %p272 = pneg %p98
        %p273 = pneg %p122
        %p274 = pneg %p119
        %p275 = pneg %p150
        %p276 = pneg %p147
        %s277 = smul.u32 4, %s24
        %p278 = scmp.lt.s32.totalorder %s23, 3
        %s279 = scalar_select %p278, %s23, 3
        %p280 = scmp.lt.s32.totalorder %s277, 3
        %s281 = scalar_select %p280, %s277, 3
        %s282 = smul.addr %s279, 4
        %s283 = sadd.s32 %s281, %s282
        %s284 = smul.addr %s283, 8
        %s285 = scalar_lea.vmem %s4, %s284
        %s286 = smul.u32 4, %s24
        %p287 = scmp.lt.s32.totalorder %s23, 3
        %s288 = scalar_select %p287, %s23, 3
        %p289 = scmp.lt.s32.totalorder %s286, 3
        %s290 = scalar_select %p289, %s286, 3
        %s291 = smul.addr %s290, 32
        %s292 = smul.addr %s288, 128
        %s293 = sadd.s32 %s291, %s292
        %s294 = smul.addr %s293, 4
        %s295 = scalar_lea.vmem %s0, %s294
        %s296 = smul.u32 4, %s24
        %s297 = smul.u32 4, %s24
        %p298 = scmp.lt.s32.totalorder %s23, 3
        %s299 = scalar_select %p298, %s23, 3
        %p300 = scmp.lt.s32.totalorder %s297, 3
        %s301 = scalar_select %p300, %s297, 3
        %s302 = smul.addr %s299, 4
        %s303 = sadd.s32 %s301, %s302
        %s304 = smul.addr %s303, 8
        %s305 = scalar_lea.vmem %s4, %s304
        %s306 = smul.u32 4, %s24
        %v308 = vld [vmem:[%s295] sm:$0xff]
        %v309 = vld [vmem:[%s295 + $0x8] sm:$0xff]
        %v310 = vld [vmem:[%s295 + $0x10] sm:$0xff]
        %v311 = vld [vmem:[%s295 + $0x18] sm:$0xff]
        %v312 = vld [vmem:[%s295 + $0x20] sm:$0xff]
        %v313 = vld [vmem:[%s295 + $0x28] sm:$0xff]
        %v314 = vld [vmem:[%s295 + $0x30] sm:$0xff]
        %v315 = vld [vmem:[%s295 + $0x38] sm:$0xff]
        %v316 = vld [vmem:[%s295 + $0x40] sm:$0xff]
        %v317 = vld [vmem:[%s295 + $0x48] sm:$0xff]
        %v318 = vld [vmem:[%s295 + $0x50] sm:$0xff]
        %v319 = vld [vmem:[%s295 + $0x58] sm:$0xff]
        %v320 = vld [vmem:[%s295 + $0x60] sm:$0xff]
        %v321 = vld [vmem:[%s295 + $0x68] sm:$0xff]
        %v322 = vld [vmem:[%s295 + $0x70] sm:$0xff]
        %v323 = vld [vmem:[%s295 + $0x78] sm:$0xff]
        %v324 = vld [vmem:[%s295 + $0x80] sm:$0xff]
        %v325 = vld [vmem:[%s295 + $0x88] sm:$0xff]
        %v326 = vld [vmem:[%s295 + $0x90] sm:$0xff]
        %v327 = vld [vmem:[%s295 + $0x98] sm:$0xff]
        %v328 = vld [vmem:[%s295 + $0xa0] sm:$0xff]
        %v329 = vld [vmem:[%s295 + $0xa8] sm:$0xff]
        %v330 = vld [vmem:[%s295 + $0xb0] sm:$0xff]
        %v331 = vld [vmem:[%s295 + $0xb8] sm:$0xff]
        %v332 = vld [vmem:[%s295 + $0xc0] sm:$0xff]
        %v333 = vld [vmem:[%s295 + $0xc8] sm:$0xff]
        %v334 = vld [vmem:[%s295 + $0xd0] sm:$0xff]
        %v335 = vld [vmem:[%s295 + $0xd8] sm:$0xff]
        %v336 = vld [vmem:[%s295 + $0xe0] sm:$0xff]
        %v337 = vld [vmem:[%s295 + $0xe8] sm:$0xff]
        %v338 = vld [vmem:[%s295 + $0xf0] sm:$0xff]
        %v339 = vld [vmem:[%s295 + $0xf8] sm:$0xff]
        %v340 = vld [vmem:[%s295 + $0x100] sm:$0xff]
        %v341 = vld [vmem:[%s295 + $0x108] sm:$0xff]
        %v342 = vld [vmem:[%s295 + $0x110] sm:$0xff]
        %v343 = vld [vmem:[%s295 + $0x118] sm:$0xff]
        %v344 = vld [vmem:[%s295 + $0x120] sm:$0xff]
        %v345 = vld [vmem:[%s295 + $0x128] sm:$0xff]
        %v346 = vld [vmem:[%s295 + $0x130] sm:$0xff]
        %v347 = vld [vmem:[%s295 + $0x138] sm:$0xff]
        %v348 = vld [vmem:[%s295 + $0x140] sm:$0xff]
        %v349 = vld [vmem:[%s295 + $0x148] sm:$0xff]
        %v350 = vld [vmem:[%s295 + $0x150] sm:$0xff]
        %v351 = vld [vmem:[%s295 + $0x158] sm:$0xff]
        %v352 = vld [vmem:[%s295 + $0x160] sm:$0xff]
        %v353 = vld [vmem:[%s295 + $0x168] sm:$0xff]
        %v354 = vld [vmem:[%s295 + $0x170] sm:$0xff]
        %v355 = vld [vmem:[%s295 + $0x178] sm:$0xff]
        %v356 = vld [vmem:[%s295 + $0x180] sm:$0xff]
        %v357 = vld [vmem:[%s295 + $0x188] sm:$0xff]
        %v358 = vld [vmem:[%s295 + $0x190] sm:$0xff]
        %v359 = vld [vmem:[%s295 + $0x198] sm:$0xff]
        %v360 = vld [vmem:[%s295 + $0x1a0] sm:$0xff]
        %v361 = vld [vmem:[%s295 + $0x1a8] sm:$0xff]
        %v362 = vld [vmem:[%s295 + $0x1b0] sm:$0xff]
        %v363 = vld [vmem:[%s295 + $0x1b8] sm:$0xff]
        %v364 = vld [vmem:[%s295 + $0x1c0] sm:$0xff]
        %v365 = vld [vmem:[%s295 + $0x1c8] sm:$0xff]
        %v366 = vld [vmem:[%s295 + $0x1d0] sm:$0xff]
        %v367 = vld [vmem:[%s295 + $0x1d8] sm:$0xff]
        %v368 = vld [vmem:[%s295 + $0x1e0] sm:$0xff]
        %v369 = vld [vmem:[%s295 + $0x1e8] sm:$0xff]
        %v370 = vld [vmem:[%s295 + $0x1f0] sm:$0xff]
        %v371 = vld [vmem:[%s295 + $0x1f8] sm:$0xff]
        %v372 = vld [vmem:[%s239] sm:$0xff]
        %v373 = vld [vmem:[%s239 + $0x8] sm:$0xff]
        %v374 = vld [vmem:[%s239 + $0x10] sm:$0xff]
        %v375 = vld [vmem:[%s239 + $0x18] sm:$0xff]
        %v376 = vld [vmem:[%s239 + $0x20] sm:$0xff]
        %v377 = vld [vmem:[%s239 + $0x28] sm:$0xff]
        %v378 = vld [vmem:[%s239 + $0x30] sm:$0xff]
        %v379 = vld [vmem:[%s239 + $0x38] sm:$0xff]
        %v380 = vld [vmem:[%s239 + $0x40] sm:$0xff]
        %v381 = vld [vmem:[%s239 + $0x48] sm:$0xff]
        %v382 = vld [vmem:[%s239 + $0x50] sm:$0xff]
        %v383 = vld [vmem:[%s239 + $0x58] sm:$0xff]
        %v384 = vld [vmem:[%s239 + $0x60] sm:$0xff]
        %v385 = vld [vmem:[%s239 + $0x68] sm:$0xff]
        %v386 = vld [vmem:[%s239 + $0x70] sm:$0xff]
        %v387 = vld [vmem:[%s239 + $0x78] sm:$0xff]
        %v388 = vld [vmem:[%s239 + $0x80] sm:$0xff]
        %v389 = vld [vmem:[%s239 + $0x88] sm:$0xff]
        %v390 = vld [vmem:[%s239 + $0x90] sm:$0xff]
        %v391 = vld [vmem:[%s239 + $0x98] sm:$0xff]
        %v392 = vld [vmem:[%s239 + $0xa0] sm:$0xff]
        %v393 = vld [vmem:[%s239 + $0xa8] sm:$0xff]
        %v394 = vld [vmem:[%s239 + $0xb0] sm:$0xff]
        %v395 = vld [vmem:[%s239 + $0xb8] sm:$0xff]
        %v396 = vld [vmem:[%s239 + $0xc0] sm:$0xff]
        %v397 = vld [vmem:[%s239 + $0xc8] sm:$0xff]
        %v398 = vld [vmem:[%s239 + $0xd0] sm:$0xff]
        %v399 = vld [vmem:[%s239 + $0xd8] sm:$0xff]
        %v400 = vld [vmem:[%s239 + $0xe0] sm:$0xff]
        %v401 = vld [vmem:[%s239 + $0xe8] sm:$0xff]
        %v402 = vld [vmem:[%s239 + $0xf0] sm:$0xff]
        %v403 = vld [vmem:[%s239 + $0xf8] sm:$0xff]
        %v404 = vld [vmem:[%s239 + $0x100] sm:$0xff]
        %v405 = vld [vmem:[%s239 + $0x108] sm:$0xff]
        %v406 = vld [vmem:[%s239 + $0x110] sm:$0xff]
        %v407 = vld [vmem:[%s239 + $0x118] sm:$0xff]
        %v408 = vld [vmem:[%s239 + $0x120] sm:$0xff]
        %v409 = vld [vmem:[%s239 + $0x128] sm:$0xff]
        %v410 = vld [vmem:[%s239 + $0x130] sm:$0xff]
        %v411 = vld [vmem:[%s239 + $0x138] sm:$0xff]
        %v412 = vld [vmem:[%s239 + $0x140] sm:$0xff]
        %v413 = vld [vmem:[%s239 + $0x148] sm:$0xff]
        %v414 = vld [vmem:[%s239 + $0x150] sm:$0xff]
        %v415 = vld [vmem:[%s239 + $0x158] sm:$0xff]
        %v416 = vld [vmem:[%s239 + $0x160] sm:$0xff]
        %v417 = vld [vmem:[%s239 + $0x168] sm:$0xff]
        %v418 = vld [vmem:[%s239 + $0x170] sm:$0xff]
        %v419 = vld [vmem:[%s239 + $0x178] sm:$0xff]
        %v420 = vld [vmem:[%s239 + $0x180] sm:$0xff]
        %v421 = vld [vmem:[%s239 + $0x188] sm:$0xff]
        %v422 = vld [vmem:[%s239 + $0x190] sm:$0xff]
        %v423 = vld [vmem:[%s239 + $0x198] sm:$0xff]
        %v424 = vld [vmem:[%s239 + $0x1a0] sm:$0xff]
        %v425 = vld [vmem:[%s239 + $0x1a8] sm:$0xff]
        %v426 = vld [vmem:[%s239 + $0x1b0] sm:$0xff]
        %v427 = vld [vmem:[%s239 + $0x1b8] sm:$0xff]
        %v428 = vld [vmem:[%s239 + $0x1c0] sm:$0xff]
        %v429 = vld [vmem:[%s239 + $0x1c8] sm:$0xff]
        %v430 = vld [vmem:[%s239 + $0x1d0] sm:$0xff]
        %v431 = vld [vmem:[%s239 + $0x1d8] sm:$0xff]
        %v432 = vld [vmem:[%s239 + $0x1e0] sm:$0xff]
        %v433 = vld [vmem:[%s239 + $0x1e8] sm:$0xff]
        %v434 = vld [vmem:[%s239 + $0x1f0] sm:$0xff]
        %v435 = vld [vmem:[%s239 + $0x1f8] sm:$0xff]
        %v436 = vld [vmem:[%s239 + $0x200] sm:$0xff]
        %v437 = vld [vmem:[%s239 + $0x208] sm:$0xff]
        %v438 = vld [vmem:[%s239 + $0x210] sm:$0xff]
        %v439 = vld [vmem:[%s239 + $0x218] sm:$0xff]
        %v440 = vld [vmem:[%s239 + $0x220] sm:$0xff]
        %v441 = vld [vmem:[%s239 + $0x228] sm:$0xff]
        %v442 = vld [vmem:[%s239 + $0x230] sm:$0xff]
        %v443 = vld [vmem:[%s239 + $0x238] sm:$0xff]
        %v444 = vld [vmem:[%s239 + $0x240] sm:$0xff]
        %v445 = vld [vmem:[%s239 + $0x248] sm:$0xff]
        %v446 = vld [vmem:[%s239 + $0x250] sm:$0xff]
        %v447 = vld [vmem:[%s239 + $0x258] sm:$0xff]
        %v448 = vld [vmem:[%s239 + $0x260] sm:$0xff]
        %v449 = vld [vmem:[%s239 + $0x268] sm:$0xff]
        %v450 = vld [vmem:[%s239 + $0x270] sm:$0xff]
        %v451 = vld [vmem:[%s239 + $0x278] sm:$0xff]
        %v452 = vld [vmem:[%s239 + $0x280] sm:$0xff]
        %v453 = vld [vmem:[%s239 + $0x288] sm:$0xff]
        %v454 = vld [vmem:[%s239 + $0x290] sm:$0xff]
        %v455 = vld [vmem:[%s239 + $0x298] sm:$0xff]
        %v456 = vld [vmem:[%s239 + $0x2a0] sm:$0xff]
        %v457 = vld [vmem:[%s239 + $0x2a8] sm:$0xff]
        %v458 = vld [vmem:[%s239 + $0x2b0] sm:$0xff]
        %v459 = vld [vmem:[%s239 + $0x2b8] sm:$0xff]
        %v460 = vld [vmem:[%s239 + $0x2c0] sm:$0xff]
        %v461 = vld [vmem:[%s239 + $0x2c8] sm:$0xff]
        %v462 = vld [vmem:[%s239 + $0x2d0] sm:$0xff]
        %v463 = vld [vmem:[%s239 + $0x2d8] sm:$0xff]
        %v464 = vld [vmem:[%s239 + $0x2e0] sm:$0xff]
        %v465 = vld [vmem:[%s239 + $0x2e8] sm:$0xff]
        %v466 = vld [vmem:[%s239 + $0x2f0] sm:$0xff]
        %v467 = vld [vmem:[%s239 + $0x2f8] sm:$0xff]
        %v468 = vld [vmem:[%s239 + $0x300] sm:$0xff]
        %v469 = vld [vmem:[%s239 + $0x308] sm:$0xff]
        %v470 = vld [vmem:[%s239 + $0x310] sm:$0xff]
        %v471 = vld [vmem:[%s239 + $0x318] sm:$0xff]
        %v472 = vld [vmem:[%s239 + $0x320] sm:$0xff]
        %v473 = vld [vmem:[%s239 + $0x328] sm:$0xff]
        %v474 = vld [vmem:[%s239 + $0x330] sm:$0xff]
        %v475 = vld [vmem:[%s239 + $0x338] sm:$0xff]
        %v476 = vld [vmem:[%s239 + $0x340] sm:$0xff]
        %v477 = vld [vmem:[%s239 + $0x348] sm:$0xff]
        %v478 = vld [vmem:[%s239 + $0x350] sm:$0xff]
        %v479 = vld [vmem:[%s239 + $0x358] sm:$0xff]
        %v480 = vld [vmem:[%s239 + $0x360] sm:$0xff]
        %v481 = vld [vmem:[%s239 + $0x368] sm:$0xff]
        %v482 = vld [vmem:[%s239 + $0x370] sm:$0xff]
        %v483 = vld [vmem:[%s239 + $0x378] sm:$0xff]
        %v484 = vld [vmem:[%s239 + $0x380] sm:$0xff]
        %v485 = vld [vmem:[%s239 + $0x388] sm:$0xff]
        %v486 = vld [vmem:[%s239 + $0x390] sm:$0xff]
        %v487 = vld [vmem:[%s239 + $0x398] sm:$0xff]
        %v488 = vld [vmem:[%s239 + $0x3a0] sm:$0xff]
        %v489 = vld [vmem:[%s239 + $0x3a8] sm:$0xff]
        %v490 = vld [vmem:[%s239 + $0x3b0] sm:$0xff]
        %v491 = vld [vmem:[%s239 + $0x3b8] sm:$0xff]
        %v492 = vld [vmem:[%s239 + $0x3c0] sm:$0xff]
        %v493 = vld [vmem:[%s239 + $0x3c8] sm:$0xff]
        %v494 = vld [vmem:[%s239 + $0x3d0] sm:$0xff]
        %v495 = vld [vmem:[%s239 + $0x3d8] sm:$0xff]
        %v496 = vld [vmem:[%s239 + $0x3e0] sm:$0xff]
        %v497 = vld [vmem:[%s239 + $0x3e8] sm:$0xff]
        %v498 = vld [vmem:[%s239 + $0x3f0] sm:$0xff]
        %v499 = vld [vmem:[%s239 + $0x3f8] sm:$0xff]
        %v500 = vld [vmem:[%s239 + $0x400] sm:$0xff]
        %v501 = vld [vmem:[%s239 + $0x408] sm:$0xff]
        %v502 = vld [vmem:[%s239 + $0x410] sm:$0xff]
        %v503 = vld [vmem:[%s239 + $0x418] sm:$0xff]
        %v504 = vld [vmem:[%s239 + $0x420] sm:$0xff]
        %v505 = vld [vmem:[%s239 + $0x428] sm:$0xff]
        %v506 = vld [vmem:[%s239 + $0x430] sm:$0xff]
        %v507 = vld [vmem:[%s239 + $0x438] sm:$0xff]
        %v508 = vld [vmem:[%s239 + $0x440] sm:$0xff]
        %v509 = vld [vmem:[%s239 + $0x448] sm:$0xff]
        %v510 = vld [vmem:[%s239 + $0x450] sm:$0xff]
        %v511 = vld [vmem:[%s239 + $0x458] sm:$0xff]
        %v512 = vld [vmem:[%s239 + $0x460] sm:$0xff]
        %v513 = vld [vmem:[%s239 + $0x468] sm:$0xff]
        %v514 = vld [vmem:[%s239 + $0x470] sm:$0xff]
        %v515 = vld [vmem:[%s239 + $0x478] sm:$0xff]
        %v516 = vld [vmem:[%s239 + $0x480] sm:$0xff]
        %v517 = vld [vmem:[%s239 + $0x488] sm:$0xff]
        %v518 = vld [vmem:[%s239 + $0x490] sm:$0xff]
        %v519 = vld [vmem:[%s239 + $0x498] sm:$0xff]
        %v520 = vld [vmem:[%s239 + $0x4a0] sm:$0xff]
        %v521 = vld [vmem:[%s239 + $0x4a8] sm:$0xff]
        %v522 = vld [vmem:[%s239 + $0x4b0] sm:$0xff]
        %v523 = vld [vmem:[%s239 + $0x4b8] sm:$0xff]
        %v524 = vld [vmem:[%s239 + $0x4c0] sm:$0xff]
        %v525 = vld [vmem:[%s239 + $0x4c8] sm:$0xff]
        %v526 = vld [vmem:[%s239 + $0x4d0] sm:$0xff]
        %v527 = vld [vmem:[%s239 + $0x4d8] sm:$0xff]
        %v528 = vld [vmem:[%s239 + $0x4e0] sm:$0xff]
        %v529 = vld [vmem:[%s239 + $0x4e8] sm:$0xff]
        %v530 = vld [vmem:[%s239 + $0x4f0] sm:$0xff]
        %v531 = vld [vmem:[%s239 + $0x4f8] sm:$0xff]
        %v532 = vld [vmem:[%s239 + $0x500] sm:$0xff]
        %v533 = vld [vmem:[%s239 + $0x508] sm:$0xff]
        %v534 = vld [vmem:[%s239 + $0x510] sm:$0xff]
        %v535 = vld [vmem:[%s239 + $0x518] sm:$0xff]
        %v536 = vld [vmem:[%s239 + $0x520] sm:$0xff]
        %v537 = vld [vmem:[%s239 + $0x528] sm:$0xff]
        %v538 = vld [vmem:[%s239 + $0x530] sm:$0xff]
        %v539 = vld [vmem:[%s239 + $0x538] sm:$0xff]
        %v540 = vld [vmem:[%s239 + $0x540] sm:$0xff]
        %v541 = vld [vmem:[%s239 + $0x548] sm:$0xff]
        %v542 = vld [vmem:[%s239 + $0x550] sm:$0xff]
        %v543 = vld [vmem:[%s239 + $0x558] sm:$0xff]
        %v544 = vld [vmem:[%s239 + $0x560] sm:$0xff]
        %v545 = vld [vmem:[%s239 + $0x568] sm:$0xff]
        %v546 = vld [vmem:[%s239 + $0x570] sm:$0xff]
        %v547 = vld [vmem:[%s239 + $0x578] sm:$0xff]
        %v548 = vld [vmem:[%s239 + $0x580] sm:$0xff]
        %v549 = vld [vmem:[%s239 + $0x588] sm:$0xff]
        %v550 = vld [vmem:[%s239 + $0x590] sm:$0xff]
        %v551 = vld [vmem:[%s239 + $0x598] sm:$0xff]
        %v552 = vld [vmem:[%s239 + $0x5a0] sm:$0xff]
        %v553 = vld [vmem:[%s239 + $0x5a8] sm:$0xff]
        %v554 = vld [vmem:[%s239 + $0x5b0] sm:$0xff]
        %v555 = vld [vmem:[%s239 + $0x5b8] sm:$0xff]
        %v556 = vld [vmem:[%s239 + $0x5c0] sm:$0xff]
        %v557 = vld [vmem:[%s239 + $0x5c8] sm:$0xff]
        %v558 = vld [vmem:[%s239 + $0x5d0] sm:$0xff]
        %v559 = vld [vmem:[%s239 + $0x5d8] sm:$0xff]
        %v560 = vld [vmem:[%s239 + $0x5e0] sm:$0xff]
        %v561 = vld [vmem:[%s239 + $0x5e8] sm:$0xff]
        %v562 = vld [vmem:[%s239 + $0x5f0] sm:$0xff]
        %v563 = vld [vmem:[%s239 + $0x5f8] sm:$0xff]
        %v564 = vld [vmem:[%s239 + $0x600] sm:$0xff]
        %v565 = vld [vmem:[%s239 + $0x608] sm:$0xff]
        %v566 = vld [vmem:[%s239 + $0x610] sm:$0xff]
        %v567 = vld [vmem:[%s239 + $0x618] sm:$0xff]
        %v568 = vld [vmem:[%s239 + $0x620] sm:$0xff]
        %v569 = vld [vmem:[%s239 + $0x628] sm:$0xff]
        %v570 = vld [vmem:[%s239 + $0x630] sm:$0xff]
        %v571 = vld [vmem:[%s239 + $0x638] sm:$0xff]
        %v572 = vld [vmem:[%s239 + $0x640] sm:$0xff]
        %v573 = vld [vmem:[%s239 + $0x648] sm:$0xff]
        %v574 = vld [vmem:[%s239 + $0x650] sm:$0xff]
        %v575 = vld [vmem:[%s239 + $0x658] sm:$0xff]
        %v576 = vld [vmem:[%s239 + $0x660] sm:$0xff]
        %v577 = vld [vmem:[%s239 + $0x668] sm:$0xff]
        %v578 = vld [vmem:[%s239 + $0x670] sm:$0xff]
        %v579 = vld [vmem:[%s239 + $0x678] sm:$0xff]
        %v580 = vld [vmem:[%s239 + $0x680] sm:$0xff]
        %v581 = vld [vmem:[%s239 + $0x688] sm:$0xff]
        %v582 = vld [vmem:[%s239 + $0x690] sm:$0xff]
        %v583 = vld [vmem:[%s239 + $0x698] sm:$0xff]
        %v584 = vld [vmem:[%s239 + $0x6a0] sm:$0xff]
        %v585 = vld [vmem:[%s239 + $0x6a8] sm:$0xff]
        %v586 = vld [vmem:[%s239 + $0x6b0] sm:$0xff]
        %v587 = vld [vmem:[%s239 + $0x6b8] sm:$0xff]
        %v588 = vld [vmem:[%s239 + $0x6c0] sm:$0xff]
        %v589 = vld [vmem:[%s239 + $0x6c8] sm:$0xff]
        %v590 = vld [vmem:[%s239 + $0x6d0] sm:$0xff]
        %v591 = vld [vmem:[%s239 + $0x6d8] sm:$0xff]
        %v592 = vld [vmem:[%s239 + $0x6e0] sm:$0xff]
        %v593 = vld [vmem:[%s239 + $0x6e8] sm:$0xff]
        %v594 = vld [vmem:[%s239 + $0x6f0] sm:$0xff]
        %v595 = vld [vmem:[%s239 + $0x6f8] sm:$0xff]
        %v596 = vld [vmem:[%s239 + $0x700] sm:$0xff]
        %v597 = vld [vmem:[%s239 + $0x708] sm:$0xff]
        %v598 = vld [vmem:[%s239 + $0x710] sm:$0xff]
        %v599 = vld [vmem:[%s239 + $0x718] sm:$0xff]
        %v600 = vld [vmem:[%s239 + $0x720] sm:$0xff]
        %v601 = vld [vmem:[%s239 + $0x728] sm:$0xff]
        %v602 = vld [vmem:[%s239 + $0x730] sm:$0xff]
        %v603 = vld [vmem:[%s239 + $0x738] sm:$0xff]
        %v604 = vld [vmem:[%s239 + $0x740] sm:$0xff]
        %v605 = vld [vmem:[%s239 + $0x748] sm:$0xff]
        %v606 = vld [vmem:[%s239 + $0x750] sm:$0xff]
        %v607 = vld [vmem:[%s239 + $0x758] sm:$0xff]
        %v608 = vld [vmem:[%s239 + $0x760] sm:$0xff]
        %v609 = vld [vmem:[%s239 + $0x768] sm:$0xff]
        %v610 = vld [vmem:[%s239 + $0x770] sm:$0xff]
        %v611 = vld [vmem:[%s239 + $0x778] sm:$0xff]
        %v612 = vld [vmem:[%s239 + $0x780] sm:$0xff]
        %v613 = vld [vmem:[%s239 + $0x788] sm:$0xff]
        %v614 = vld [vmem:[%s239 + $0x790] sm:$0xff]
        %v615 = vld [vmem:[%s239 + $0x798] sm:$0xff]
        %v616 = vld [vmem:[%s239 + $0x7a0] sm:$0xff]
        %v617 = vld [vmem:[%s239 + $0x7a8] sm:$0xff]
        %v618 = vld [vmem:[%s239 + $0x7b0] sm:$0xff]
        %v619 = vld [vmem:[%s239 + $0x7b8] sm:$0xff]
        %v620 = vld [vmem:[%s239 + $0x7c0] sm:$0xff]
        %v621 = vld [vmem:[%s239 + $0x7c8] sm:$0xff]
        %v622 = vld [vmem:[%s239 + $0x7d0] sm:$0xff]
        %v623 = vld [vmem:[%s239 + $0x7d8] sm:$0xff]
        %v624 = vld [vmem:[%s239 + $0x7e0] sm:$0xff]
        %v625 = vld [vmem:[%s239 + $0x7e8] sm:$0xff]
        %v626 = vld [vmem:[%s239 + $0x7f0] sm:$0xff]
        %v627 = vld [vmem:[%s239 + $0x7f8] sm:$0xff]
        %v628 = vld [vmem:[%s239 + $0x800] sm:$0xff]
        %v629 = vld [vmem:[%s239 + $0x808] sm:$0xff]
        %v630 = vld [vmem:[%s239 + $0x810] sm:$0xff]
        %v631 = vld [vmem:[%s239 + $0x818] sm:$0xff]
        %v632 = vld [vmem:[%s239 + $0x820] sm:$0xff]
        %v633 = vld [vmem:[%s239 + $0x828] sm:$0xff]
        %v634 = vld [vmem:[%s239 + $0x830] sm:$0xff]
        %v635 = vld [vmem:[%s239 + $0x838] sm:$0xff]
        %v636 = vld [vmem:[%s239 + $0x840] sm:$0xff]
        %v637 = vld [vmem:[%s239 + $0x848] sm:$0xff]
        %v638 = vld [vmem:[%s239 + $0x850] sm:$0xff]
        %v639 = vld [vmem:[%s239 + $0x858] sm:$0xff]
        %v640 = vld [vmem:[%s239 + $0x860] sm:$0xff]
        %v641 = vld [vmem:[%s239 + $0x868] sm:$0xff]
        %v642 = vld [vmem:[%s239 + $0x870] sm:$0xff]
        %v643 = vld [vmem:[%s239 + $0x878] sm:$0xff]
        %v644 = vld [vmem:[%s239 + $0x880] sm:$0xff]
        %v645 = vld [vmem:[%s239 + $0x888] sm:$0xff]
        %v646 = vld [vmem:[%s239 + $0x890] sm:$0xff]
        %v647 = vld [vmem:[%s239 + $0x898] sm:$0xff]
        %v648 = vld [vmem:[%s239 + $0x8a0] sm:$0xff]
        %v649 = vld [vmem:[%s239 + $0x8a8] sm:$0xff]
        %v650 = vld [vmem:[%s239 + $0x8b0] sm:$0xff]
        %v651 = vld [vmem:[%s239 + $0x8b8] sm:$0xff]
        %v652 = vld [vmem:[%s239 + $0x8c0] sm:$0xff]
        %v653 = vld [vmem:[%s239 + $0x8c8] sm:$0xff]
        %v654 = vld [vmem:[%s239 + $0x8d0] sm:$0xff]
        %v655 = vld [vmem:[%s239 + $0x8d8] sm:$0xff]
        %v656 = vld [vmem:[%s239 + $0x8e0] sm:$0xff]
        %v657 = vld [vmem:[%s239 + $0x8e8] sm:$0xff]
        %v658 = vld [vmem:[%s239 + $0x8f0] sm:$0xff]
        %v659 = vld [vmem:[%s239 + $0x8f8] sm:$0xff]
        %v660 = vld [vmem:[%s239 + $0x900] sm:$0xff]
        %v661 = vld [vmem:[%s239 + $0x908] sm:$0xff]
        %v662 = vld [vmem:[%s239 + $0x910] sm:$0xff]
        %v663 = vld [vmem:[%s239 + $0x918] sm:$0xff]
        %v664 = vld [vmem:[%s239 + $0x920] sm:$0xff]
        %v665 = vld [vmem:[%s239 + $0x928] sm:$0xff]
        %v666 = vld [vmem:[%s239 + $0x930] sm:$0xff]
        %v667 = vld [vmem:[%s239 + $0x938] sm:$0xff]
        %v668 = vld [vmem:[%s239 + $0x940] sm:$0xff]
        %v669 = vld [vmem:[%s239 + $0x948] sm:$0xff]
        %v670 = vld [vmem:[%s239 + $0x950] sm:$0xff]
        %v671 = vld [vmem:[%s239 + $0x958] sm:$0xff]
        %v672 = vld [vmem:[%s239 + $0x960] sm:$0xff]
        %v673 = vld [vmem:[%s239 + $0x968] sm:$0xff]
        %v674 = vld [vmem:[%s239 + $0x970] sm:$0xff]
        %v675 = vld [vmem:[%s239 + $0x978] sm:$0xff]
        %v676 = vld [vmem:[%s239 + $0x980] sm:$0xff]
        %v677 = vld [vmem:[%s239 + $0x988] sm:$0xff]
        %v678 = vld [vmem:[%s239 + $0x990] sm:$0xff]
        %v679 = vld [vmem:[%s239 + $0x998] sm:$0xff]
        %v680 = vld [vmem:[%s239 + $0x9a0] sm:$0xff]
        %v681 = vld [vmem:[%s239 + $0x9a8] sm:$0xff]
        %v682 = vld [vmem:[%s239 + $0x9b0] sm:$0xff]
        %v683 = vld [vmem:[%s239 + $0x9b8] sm:$0xff]
        %v684 = vld [vmem:[%s239 + $0x9c0] sm:$0xff]
        %v685 = vld [vmem:[%s239 + $0x9c8] sm:$0xff]
        %v686 = vld [vmem:[%s239 + $0x9d0] sm:$0xff]
        %v687 = vld [vmem:[%s239 + $0x9d8] sm:$0xff]
        %v688 = vld [vmem:[%s239 + $0x9e0] sm:$0xff]
        %v689 = vld [vmem:[%s239 + $0x9e8] sm:$0xff]
        %v690 = vld [vmem:[%s239 + $0x9f0] sm:$0xff]
        %v691 = vld [vmem:[%s239 + $0x9f8] sm:$0xff]
        %v692 = vld [vmem:[%s239 + $0xa00] sm:$0xff]
        %v693 = vld [vmem:[%s239 + $0xa08] sm:$0xff]
        %v694 = vld [vmem:[%s239 + $0xa10] sm:$0xff]
        %v695 = vld [vmem:[%s239 + $0xa18] sm:$0xff]
        %v696 = vld [vmem:[%s239 + $0xa20] sm:$0xff]
        %v697 = vld [vmem:[%s239 + $0xa28] sm:$0xff]
        %v698 = vld [vmem:[%s239 + $0xa30] sm:$0xff]
        %v699 = vld [vmem:[%s239 + $0xa38] sm:$0xff]
        %v700 = vld [vmem:[%s239 + $0xa40] sm:$0xff]
        %v701 = vld [vmem:[%s239 + $0xa48] sm:$0xff]
        %v702 = vld [vmem:[%s239 + $0xa50] sm:$0xff]
        %v703 = vld [vmem:[%s239 + $0xa58] sm:$0xff]
        %v704 = vld [vmem:[%s239 + $0xa60] sm:$0xff]
        %v705 = vld [vmem:[%s239 + $0xa68] sm:$0xff]
        %v706 = vld [vmem:[%s239 + $0xa70] sm:$0xff]
        %v707 = vld [vmem:[%s239 + $0xa78] sm:$0xff]
        %v708 = vld [vmem:[%s239 + $0xa80] sm:$0xff]
        %v709 = vld [vmem:[%s239 + $0xa88] sm:$0xff]
        %v710 = vld [vmem:[%s239 + $0xa90] sm:$0xff]
        %v711 = vld [vmem:[%s239 + $0xa98] sm:$0xff]
        %v712 = vld [vmem:[%s239 + $0xaa0] sm:$0xff]
        %v713 = vld [vmem:[%s239 + $0xaa8] sm:$0xff]
        %v714 = vld [vmem:[%s239 + $0xab0] sm:$0xff]
        %v715 = vld [vmem:[%s239 + $0xab8] sm:$0xff]
        %v716 = vld [vmem:[%s239 + $0xac0] sm:$0xff]
        %v717 = vld [vmem:[%s239 + $0xac8] sm:$0xff]
        %v718 = vld [vmem:[%s239 + $0xad0] sm:$0xff]
        %v719 = vld [vmem:[%s239 + $0xad8] sm:$0xff]
        %v720 = vld [vmem:[%s239 + $0xae0] sm:$0xff]
        %v721 = vld [vmem:[%s239 + $0xae8] sm:$0xff]
        %v722 = vld [vmem:[%s239 + $0xaf0] sm:$0xff]
        %v723 = vld [vmem:[%s239 + $0xaf8] sm:$0xff]
        %v724 = vld [vmem:[%s239 + $0xb00] sm:$0xff]
        %v725 = vld [vmem:[%s239 + $0xb08] sm:$0xff]
        %v726 = vld [vmem:[%s239 + $0xb10] sm:$0xff]
        %v727 = vld [vmem:[%s239 + $0xb18] sm:$0xff]
        %v728 = vld [vmem:[%s239 + $0xb20] sm:$0xff]
        %v729 = vld [vmem:[%s239 + $0xb28] sm:$0xff]
        %v730 = vld [vmem:[%s239 + $0xb30] sm:$0xff]
        %v731 = vld [vmem:[%s239 + $0xb38] sm:$0xff]
        %v732 = vld [vmem:[%s239 + $0xb40] sm:$0xff]
        %v733 = vld [vmem:[%s239 + $0xb48] sm:$0xff]
        %v734 = vld [vmem:[%s239 + $0xb50] sm:$0xff]
        %v735 = vld [vmem:[%s239 + $0xb58] sm:$0xff]
        %v736 = vld [vmem:[%s239 + $0xb60] sm:$0xff]
        %v737 = vld [vmem:[%s239 + $0xb68] sm:$0xff]
        %v738 = vld [vmem:[%s239 + $0xb70] sm:$0xff]
        %v739 = vld [vmem:[%s239 + $0xb78] sm:$0xff]
        %v740 = vld [vmem:[%s239 + $0xb80] sm:$0xff]
        %v741 = vld [vmem:[%s239 + $0xb88] sm:$0xff]
        %v742 = vld [vmem:[%s239 + $0xb90] sm:$0xff]
        %v743 = vld [vmem:[%s239 + $0xb98] sm:$0xff]
        %v744 = vld [vmem:[%s239 + $0xba0] sm:$0xff]
        %v745 = vld [vmem:[%s239 + $0xba8] sm:$0xff]
        %v746 = vld [vmem:[%s239 + $0xbb0] sm:$0xff]
        %v747 = vld [vmem:[%s239 + $0xbb8] sm:$0xff]
        %v748 = vld [vmem:[%s239 + $0xbc0] sm:$0xff]
        %v749 = vld [vmem:[%s239 + $0xbc8] sm:$0xff]
        %v750 = vld [vmem:[%s239 + $0xbd0] sm:$0xff]
        %v751 = vld [vmem:[%s239 + $0xbd8] sm:$0xff]
        %v752 = vld [vmem:[%s239 + $0xbe0] sm:$0xff]
        %v753 = vld [vmem:[%s239 + $0xbe8] sm:$0xff]
        %v754 = vld [vmem:[%s239 + $0xbf0] sm:$0xff]
        %v755 = vld [vmem:[%s239 + $0xbf8] sm:$0xff]
        %v756 = vld [vmem:[%s239 + $0xc00] sm:$0xff]
        %v757 = vld [vmem:[%s239 + $0xc08] sm:$0xff]
        %v758 = vld [vmem:[%s239 + $0xc10] sm:$0xff]
        %v759 = vld [vmem:[%s239 + $0xc18] sm:$0xff]
        %v760 = vld [vmem:[%s239 + $0xc20] sm:$0xff]
        %v761 = vld [vmem:[%s239 + $0xc28] sm:$0xff]
        %v762 = vld [vmem:[%s239 + $0xc30] sm:$0xff]
        %v763 = vld [vmem:[%s239 + $0xc38] sm:$0xff]
        %v764 = vld [vmem:[%s239 + $0xc40] sm:$0xff]
        %v765 = vld [vmem:[%s239 + $0xc48] sm:$0xff]
        %v766 = vld [vmem:[%s239 + $0xc50] sm:$0xff]
        %v767 = vld [vmem:[%s239 + $0xc58] sm:$0xff]
        %v768 = vld [vmem:[%s239 + $0xc60] sm:$0xff]
        %v769 = vld [vmem:[%s239 + $0xc68] sm:$0xff]
        %v770 = vld [vmem:[%s239 + $0xc70] sm:$0xff]
        %v771 = vld [vmem:[%s239 + $0xc78] sm:$0xff]
        %v772 = vld [vmem:[%s239 + $0xc80] sm:$0xff]
        %v773 = vld [vmem:[%s239 + $0xc88] sm:$0xff]
        %v774 = vld [vmem:[%s239 + $0xc90] sm:$0xff]
        %v775 = vld [vmem:[%s239 + $0xc98] sm:$0xff]
        %v776 = vld [vmem:[%s239 + $0xca0] sm:$0xff]
        %v777 = vld [vmem:[%s239 + $0xca8] sm:$0xff]
        %v778 = vld [vmem:[%s239 + $0xcb0] sm:$0xff]
        %v779 = vld [vmem:[%s239 + $0xcb8] sm:$0xff]
        %v780 = vld [vmem:[%s239 + $0xcc0] sm:$0xff]
        %v781 = vld [vmem:[%s239 + $0xcc8] sm:$0xff]
        %v782 = vld [vmem:[%s239 + $0xcd0] sm:$0xff]
        %v783 = vld [vmem:[%s239 + $0xcd8] sm:$0xff]
        %v784 = vld [vmem:[%s239 + $0xce0] sm:$0xff]
        %v785 = vld [vmem:[%s239 + $0xce8] sm:$0xff]
        %v786 = vld [vmem:[%s239 + $0xcf0] sm:$0xff]
        %v787 = vld [vmem:[%s239 + $0xcf8] sm:$0xff]
        %v788 = vld [vmem:[%s239 + $0xd00] sm:$0xff]
        %v789 = vld [vmem:[%s239 + $0xd08] sm:$0xff]
        %v790 = vld [vmem:[%s239 + $0xd10] sm:$0xff]
        %v791 = vld [vmem:[%s239 + $0xd18] sm:$0xff]
        %v792 = vld [vmem:[%s239 + $0xd20] sm:$0xff]
        %v793 = vld [vmem:[%s239 + $0xd28] sm:$0xff]
        %v794 = vld [vmem:[%s239 + $0xd30] sm:$0xff]
        %v795 = vld [vmem:[%s239 + $0xd38] sm:$0xff]
        %v796 = vld [vmem:[%s239 + $0xd40] sm:$0xff]
        %v797 = vld [vmem:[%s239 + $0xd48] sm:$0xff]
        %v798 = vld [vmem:[%s239 + $0xd50] sm:$0xff]
        %v799 = vld [vmem:[%s239 + $0xd58] sm:$0xff]
        %v800 = vld [vmem:[%s239 + $0xd60] sm:$0xff]
        %v801 = vld [vmem:[%s239 + $0xd68] sm:$0xff]
        %v802 = vld [vmem:[%s239 + $0xd70] sm:$0xff]
        %v803 = vld [vmem:[%s239 + $0xd78] sm:$0xff]
        %v804 = vld [vmem:[%s239 + $0xd80] sm:$0xff]
        %v805 = vld [vmem:[%s239 + $0xd88] sm:$0xff]
        %v806 = vld [vmem:[%s239 + $0xd90] sm:$0xff]
        %v807 = vld [vmem:[%s239 + $0xd98] sm:$0xff]
        %v808 = vld [vmem:[%s239 + $0xda0] sm:$0xff]
        %v809 = vld [vmem:[%s239 + $0xda8] sm:$0xff]
        %v810 = vld [vmem:[%s239 + $0xdb0] sm:$0xff]
        %v811 = vld [vmem:[%s239 + $0xdb8] sm:$0xff]
        %v812 = vld [vmem:[%s239 + $0xdc0] sm:$0xff]
        %v813 = vld [vmem:[%s239 + $0xdc8] sm:$0xff]
        %v814 = vld [vmem:[%s239 + $0xdd0] sm:$0xff]
        %v815 = vld [vmem:[%s239 + $0xdd8] sm:$0xff]
        %v816 = vld [vmem:[%s239 + $0xde0] sm:$0xff]
        %v817 = vld [vmem:[%s239 + $0xde8] sm:$0xff]
        %v818 = vld [vmem:[%s239 + $0xdf0] sm:$0xff]
        %v819 = vld [vmem:[%s239 + $0xdf8] sm:$0xff]
        %v820 = vld [vmem:[%s239 + $0xe00] sm:$0xff]
        %v821 = vld [vmem:[%s239 + $0xe08] sm:$0xff]
        %v822 = vld [vmem:[%s239 + $0xe10] sm:$0xff]
        %v823 = vld [vmem:[%s239 + $0xe18] sm:$0xff]
        %v824 = vld [vmem:[%s239 + $0xe20] sm:$0xff]
        %v825 = vld [vmem:[%s239 + $0xe28] sm:$0xff]
        %v826 = vld [vmem:[%s239 + $0xe30] sm:$0xff]
        %v827 = vld [vmem:[%s239 + $0xe38] sm:$0xff]
        %v828 = vld [vmem:[%s239 + $0xe40] sm:$0xff]
        %v829 = vld [vmem:[%s239 + $0xe48] sm:$0xff]
        %v830 = vld [vmem:[%s239 + $0xe50] sm:$0xff]
        %v831 = vld [vmem:[%s239 + $0xe58] sm:$0xff]
        %v832 = vld [vmem:[%s239 + $0xe60] sm:$0xff]
        %v833 = vld [vmem:[%s239 + $0xe68] sm:$0xff]
        %v834 = vld [vmem:[%s239 + $0xe70] sm:$0xff]
        %v835 = vld [vmem:[%s239 + $0xe78] sm:$0xff]
        %v836 = vld [vmem:[%s239 + $0xe80] sm:$0xff]
        %v837 = vld [vmem:[%s239 + $0xe88] sm:$0xff]
        %v838 = vld [vmem:[%s239 + $0xe90] sm:$0xff]
        %v839 = vld [vmem:[%s239 + $0xe98] sm:$0xff]
        %v840 = vld [vmem:[%s239 + $0xea0] sm:$0xff]
        %v841 = vld [vmem:[%s239 + $0xea8] sm:$0xff]
        %v842 = vld [vmem:[%s239 + $0xeb0] sm:$0xff]
        %v843 = vld [vmem:[%s239 + $0xeb8] sm:$0xff]
        %v844 = vld [vmem:[%s239 + $0xec0] sm:$0xff]
        %v845 = vld [vmem:[%s239 + $0xec8] sm:$0xff]
        %v846 = vld [vmem:[%s239 + $0xed0] sm:$0xff]
        %v847 = vld [vmem:[%s239 + $0xed8] sm:$0xff]
        %v848 = vld [vmem:[%s239 + $0xee0] sm:$0xff]
        %v849 = vld [vmem:[%s239 + $0xee8] sm:$0xff]
        %v850 = vld [vmem:[%s239 + $0xef0] sm:$0xff]
        %v851 = vld [vmem:[%s239 + $0xef8] sm:$0xff]
        %v852 = vld [vmem:[%s239 + $0xf00] sm:$0xff]
        %v853 = vld [vmem:[%s239 + $0xf08] sm:$0xff]
        %v854 = vld [vmem:[%s239 + $0xf10] sm:$0xff]
        %v855 = vld [vmem:[%s239 + $0xf18] sm:$0xff]
        %v856 = vld [vmem:[%s239 + $0xf20] sm:$0xff]
        %v857 = vld [vmem:[%s239 + $0xf28] sm:$0xff]
        %v858 = vld [vmem:[%s239 + $0xf30] sm:$0xff]
        %v859 = vld [vmem:[%s239 + $0xf38] sm:$0xff]
        %v860 = vld [vmem:[%s239 + $0xf40] sm:$0xff]
        %v861 = vld [vmem:[%s239 + $0xf48] sm:$0xff]
        %v862 = vld [vmem:[%s239 + $0xf50] sm:$0xff]
        %v863 = vld [vmem:[%s239 + $0xf58] sm:$0xff]
        %v864 = vld [vmem:[%s239 + $0xf60] sm:$0xff]
        %v865 = vld [vmem:[%s239 + $0xf68] sm:$0xff]
        %v866 = vld [vmem:[%s239 + $0xf70] sm:$0xff]
        %v867 = vld [vmem:[%s239 + $0xf78] sm:$0xff]
        %v868 = vld [vmem:[%s239 + $0xf80] sm:$0xff]
        %v869 = vld [vmem:[%s239 + $0xf88] sm:$0xff]
        %v870 = vld [vmem:[%s239 + $0xf90] sm:$0xff]
        %v871 = vld [vmem:[%s239 + $0xf98] sm:$0xff]
        %v872 = vld [vmem:[%s239 + $0xfa0] sm:$0xff]
        %v873 = vld [vmem:[%s239 + $0xfa8] sm:$0xff]
        %v874 = vld [vmem:[%s239 + $0xfb0] sm:$0xff]
        %v875 = vld [vmem:[%s239 + $0xfb8] sm:$0xff]
        %v876 = vld [vmem:[%s239 + $0xfc0] sm:$0xff]
        %v877 = vld [vmem:[%s239 + $0xfc8] sm:$0xff]
        %v878 = vld [vmem:[%s239 + $0xfd0] sm:$0xff]
        %v879 = vld [vmem:[%s239 + $0xfd8] sm:$0xff]
        %v880 = vld [vmem:[%s239 + $0xfe0] sm:$0xff]
        %v881 = vld [vmem:[%s239 + $0xfe8] sm:$0xff]
        %v882 = vld [vmem:[%s239 + $0xff0] sm:$0xff]
        %v883 = vld [vmem:[%s239 + $0xff8] sm:$0xff]
        %v884 = vld [vmem:[#allocation4] sm:$0x3]
        %v886 = vlaneseq
        %v887 = vshrl.u32 %v886, 7
        %v888 = vsub.s32 0, %v887
        %v889 = vrot.slane %v884, %v888
        %v890 = vlaneseq
        %v891 = vshrl.u32 %v890, 7
        %v892 = vsub.s32 1, %v891
        %v893 = vrot.slane %v884, %v892
        %v960 = vunpack.c.l.b16 %v308
        %v961 = vunpack.c.h.b16 %v308
        %v962 = vunpack.c.l.b16 %v309
        %v963 = vunpack.c.h.b16 %v309
        %v964 = vunpack.c.l.b16 %v310
        %v965 = vunpack.c.h.b16 %v310
        %v966 = vunpack.c.l.b16 %v311
        %v967 = vunpack.c.h.b16 %v311
        %v968 = vunpack.c.l.b16 %v312
        %v969 = vunpack.c.h.b16 %v312
        %v970 = vunpack.c.l.b16 %v313
        %v971 = vunpack.c.h.b16 %v313
        %v972 = vunpack.c.l.b16 %v314
        %v973 = vunpack.c.h.b16 %v314
        %v974 = vunpack.c.l.b16 %v315
        %v975 = vunpack.c.h.b16 %v315
        %v976 = vunpack.c.l.b16 %v316
        %v977 = vunpack.c.h.b16 %v316
        %v978 = vunpack.c.l.b16 %v317
        %v979 = vunpack.c.h.b16 %v317
        %v980 = vunpack.c.l.b16 %v318
        %v981 = vunpack.c.h.b16 %v318
        %v982 = vunpack.c.l.b16 %v319
        %v983 = vunpack.c.h.b16 %v319
        %v984 = vunpack.c.l.b16 %v320
        %v985 = vunpack.c.h.b16 %v320
        %v986 = vunpack.c.l.b16 %v321
        %v987 = vunpack.c.h.b16 %v321
        %v988 = vunpack.c.l.b16 %v322
        %v989 = vunpack.c.h.b16 %v322
        %v990 = vunpack.c.l.b16 %v323
        %v991 = vunpack.c.h.b16 %v323
        %v992 = vunpack.c.l.b16 %v324
        %v993 = vunpack.c.h.b16 %v324
        %v994 = vunpack.c.l.b16 %v325
        %v995 = vunpack.c.h.b16 %v325
        %v996 = vunpack.c.l.b16 %v326
        %v997 = vunpack.c.h.b16 %v326
        %v998 = vunpack.c.l.b16 %v327
        %v999 = vunpack.c.h.b16 %v327
        %v1000 = vunpack.c.l.b16 %v328
        %v1001 = vunpack.c.h.b16 %v328
        %v1002 = vunpack.c.l.b16 %v329
        %v1003 = vunpack.c.h.b16 %v329
        %v1004 = vunpack.c.l.b16 %v330
        %v1005 = vunpack.c.h.b16 %v330
        %v1006 = vunpack.c.l.b16 %v331
        %v1007 = vunpack.c.h.b16 %v331
        %v1008 = vunpack.c.l.b16 %v332
        %v1009 = vunpack.c.h.b16 %v332
        %v1010 = vunpack.c.l.b16 %v333
        %v1011 = vunpack.c.h.b16 %v333
        %v1012 = vunpack.c.l.b16 %v334
        %v1013 = vunpack.c.h.b16 %v334
        %v1014 = vunpack.c.l.b16 %v335
        %v1015 = vunpack.c.h.b16 %v335
        %v1016 = vunpack.c.l.b16 %v336
        %v1017 = vunpack.c.h.b16 %v336
        %v1018 = vunpack.c.l.b16 %v337
        %v1019 = vunpack.c.h.b16 %v337
        %v1020 = vunpack.c.l.b16 %v338
        %v1021 = vunpack.c.h.b16 %v338
        %v1022 = vunpack.c.l.b16 %v339
        %v1023 = vunpack.c.h.b16 %v339
        %v1024 = vunpack.c.l.b16 %v340
        %v1025 = vunpack.c.h.b16 %v340
        %v1026 = vunpack.c.l.b16 %v341
        %v1027 = vunpack.c.h.b16 %v341
        %v1028 = vunpack.c.l.b16 %v342
        %v1029 = vunpack.c.h.b16 %v342
        %v1030 = vunpack.c.l.b16 %v343
        %v1031 = vunpack.c.h.b16 %v343
        %v1032 = vunpack.c.l.b16 %v344
        %v1033 = vunpack.c.h.b16 %v344
        %v1034 = vunpack.c.l.b16 %v345
        %v1035 = vunpack.c.h.b16 %v345
        %v1036 = vunpack.c.l.b16 %v346
        %v1037 = vunpack.c.h.b16 %v346
        %v1038 = vunpack.c.l.b16 %v347
        %v1039 = vunpack.c.h.b16 %v347
        %v1040 = vunpack.c.l.b16 %v348
        %v1041 = vunpack.c.h.b16 %v348
        %v1042 = vunpack.c.l.b16 %v349
        %v1043 = vunpack.c.h.b16 %v349
        %v1044 = vunpack.c.l.b16 %v350
        %v1045 = vunpack.c.h.b16 %v350
        %v1046 = vunpack.c.l.b16 %v351
        %v1047 = vunpack.c.h.b16 %v351
        %v1048 = vunpack.c.l.b16 %v352
        %v1049 = vunpack.c.h.b16 %v352
        %v1050 = vunpack.c.l.b16 %v353
        %v1051 = vunpack.c.h.b16 %v353
        %v1052 = vunpack.c.l.b16 %v354
        %v1053 = vunpack.c.h.b16 %v354
        %v1054 = vunpack.c.l.b16 %v355
        %v1055 = vunpack.c.h.b16 %v355
        %v1056 = vunpack.c.l.b16 %v356
        %v1057 = vunpack.c.h.b16 %v356
        %v1058 = vunpack.c.l.b16 %v357
        %v1059 = vunpack.c.h.b16 %v357
        %v1060 = vunpack.c.l.b16 %v358
        %v1061 = vunpack.c.h.b16 %v358
        %v1062 = vunpack.c.l.b16 %v359
        %v1063 = vunpack.c.h.b16 %v359
        %v1064 = vunpack.c.l.b16 %v360
        %v1065 = vunpack.c.h.b16 %v360
        %v1066 = vunpack.c.l.b16 %v361
        %v1067 = vunpack.c.h.b16 %v361
        %v1068 = vunpack.c.l.b16 %v362
        %v1069 = vunpack.c.h.b16 %v362
        %v1070 = vunpack.c.l.b16 %v363
        %v1071 = vunpack.c.h.b16 %v363
        %v1072 = vunpack.c.l.b16 %v364
        %v1073 = vunpack.c.h.b16 %v364
        %v1074 = vunpack.c.l.b16 %v365
        %v1075 = vunpack.c.h.b16 %v365
        %v1076 = vunpack.c.l.b16 %v366
        %v1077 = vunpack.c.h.b16 %v366
        %v1078 = vunpack.c.l.b16 %v367
        %v1079 = vunpack.c.h.b16 %v367
        %v1080 = vunpack.c.l.b16 %v368
        %v1081 = vunpack.c.h.b16 %v368
        %v1082 = vunpack.c.l.b16 %v369
        %v1083 = vunpack.c.h.b16 %v369
        %v1084 = vunpack.c.l.b16 %v370
        %v1085 = vunpack.c.h.b16 %v370
        %v1086 = vunpack.c.l.b16 %v371
        %v1087 = vunpack.c.h.b16 %v371
        %v1088 = vpack.c.b16 %v992, %v960
        %v1089 = vpack.c.b16 %v993, %v961
        %v1090 = vpack.c.b16 %v994, %v962
        %v1091 = vpack.c.b16 %v995, %v963
        %v1092 = vpack.c.b16 %v996, %v964
        %v1093 = vpack.c.b16 %v997, %v965
        %v1094 = vpack.c.b16 %v998, %v966
        %v1095 = vpack.c.b16 %v999, %v967
        %v1096 = vpack.c.b16 %v1000, %v968
        %v1097 = vpack.c.b16 %v1001, %v969
        %v1098 = vpack.c.b16 %v1002, %v970
        %v1099 = vpack.c.b16 %v1003, %v971
        %v1100 = vpack.c.b16 %v1004, %v972
        %v1101 = vpack.c.b16 %v1005, %v973
        %v1102 = vpack.c.b16 %v1006, %v974
        %v1103 = vpack.c.b16 %v1007, %v975
        %v1104 = vpack.c.b16 %v1008, %v976
        %v1105 = vpack.c.b16 %v1009, %v977
        %v1106 = vpack.c.b16 %v1010, %v978
        %v1107 = vpack.c.b16 %v1011, %v979
        %v1108 = vpack.c.b16 %v1012, %v980
        %v1109 = vpack.c.b16 %v1013, %v981
        %v1110 = vpack.c.b16 %v1014, %v982
        %v1111 = vpack.c.b16 %v1015, %v983
        %v1112 = vpack.c.b16 %v1016, %v984
        %v1113 = vpack.c.b16 %v1017, %v985
        %v1114 = vpack.c.b16 %v1018, %v986
        %v1115 = vpack.c.b16 %v1019, %v987
        %v1116 = vpack.c.b16 %v1020, %v988
        %v1117 = vpack.c.b16 %v1021, %v989
        %v1118 = vpack.c.b16 %v1022, %v990
        %v1119 = vpack.c.b16 %v1023, %v991
        %v1120 = vpack.c.b16 %v1056, %v1024
        %v1121 = vpack.c.b16 %v1057, %v1025
        %v1122 = vpack.c.b16 %v1058, %v1026
        %v1123 = vpack.c.b16 %v1059, %v1027
        %v1124 = vpack.c.b16 %v1060, %v1028
        %v1125 = vpack.c.b16 %v1061, %v1029
        %v1126 = vpack.c.b16 %v1062, %v1030
        %v1127 = vpack.c.b16 %v1063, %v1031
        %v1128 = vpack.c.b16 %v1064, %v1032
        %v1129 = vpack.c.b16 %v1065, %v1033
        %v1130 = vpack.c.b16 %v1066, %v1034
        %v1131 = vpack.c.b16 %v1067, %v1035
        %v1132 = vpack.c.b16 %v1068, %v1036
        %v1133 = vpack.c.b16 %v1069, %v1037
        %v1134 = vpack.c.b16 %v1070, %v1038
        %v1135 = vpack.c.b16 %v1071, %v1039
        %v1136 = vpack.c.b16 %v1072, %v1040
        %v1137 = vpack.c.b16 %v1073, %v1041
        %v1138 = vpack.c.b16 %v1074, %v1042
        %v1139 = vpack.c.b16 %v1075, %v1043
        %v1140 = vpack.c.b16 %v1076, %v1044
        %v1141 = vpack.c.b16 %v1077, %v1045
        %v1142 = vpack.c.b16 %v1078, %v1046
        %v1143 = vpack.c.b16 %v1079, %v1047
        %v1144 = vpack.c.b16 %v1080, %v1048
        %v1145 = vpack.c.b16 %v1081, %v1049
        %v1146 = vpack.c.b16 %v1082, %v1050
        %v1147 = vpack.c.b16 %v1083, %v1051
        %v1148 = vpack.c.b16 %v1084, %v1052
        %v1149 = vpack.c.b16 %v1085, %v1053
        %v1150 = vpack.c.b16 %v1086, %v1054
        %v1151 = vpack.c.b16 %v1087, %v1055
        %v1728 = vunpack.c.l.b16 %v372
        %v1729 = vunpack.c.h.b16 %v372
        %v1730 = vunpack.c.l.b16 %v373
        %v1731 = vunpack.c.h.b16 %v373
        %v1732 = vunpack.c.l.b16 %v374
        %v1733 = vunpack.c.h.b16 %v374
        %v1734 = vunpack.c.l.b16 %v375
        %v1735 = vunpack.c.h.b16 %v375
        %v1736 = vunpack.c.l.b16 %v376
        %v1737 = vunpack.c.h.b16 %v376
        %v1738 = vunpack.c.l.b16 %v377
        %v1739 = vunpack.c.h.b16 %v377
        %v1740 = vunpack.c.l.b16 %v378
        %v1741 = vunpack.c.h.b16 %v378
        %v1742 = vunpack.c.l.b16 %v379
        %v1743 = vunpack.c.h.b16 %v379
        %v1744 = vunpack.c.l.b16 %v380
        %v1745 = vunpack.c.h.b16 %v380
        %v1746 = vunpack.c.l.b16 %v381
        %v1747 = vunpack.c.h.b16 %v381
        %v1748 = vunpack.c.l.b16 %v382
        %v1749 = vunpack.c.h.b16 %v382
        %v1750 = vunpack.c.l.b16 %v383
        %v1751 = vunpack.c.h.b16 %v383
        %v1752 = vunpack.c.l.b16 %v384
        %v1753 = vunpack.c.h.b16 %v384
        %v1754 = vunpack.c.l.b16 %v385
        %v1755 = vunpack.c.h.b16 %v385
        %v1756 = vunpack.c.l.b16 %v386
        %v1757 = vunpack.c.h.b16 %v386
        %v1758 = vunpack.c.l.b16 %v387
        %v1759 = vunpack.c.h.b16 %v387
        %v1760 = vunpack.c.l.b16 %v388
        %v1761 = vunpack.c.h.b16 %v388
        %v1762 = vunpack.c.l.b16 %v389
        %v1763 = vunpack.c.h.b16 %v389
        %v1764 = vunpack.c.l.b16 %v390
        %v1765 = vunpack.c.h.b16 %v390
        %v1766 = vunpack.c.l.b16 %v391
        %v1767 = vunpack.c.h.b16 %v391
        %v1768 = vunpack.c.l.b16 %v392
        %v1769 = vunpack.c.h.b16 %v392
        %v1770 = vunpack.c.l.b16 %v393
        %v1771 = vunpack.c.h.b16 %v393
        %v1772 = vunpack.c.l.b16 %v394
        %v1773 = vunpack.c.h.b16 %v394
        %v1774 = vunpack.c.l.b16 %v395
        %v1775 = vunpack.c.h.b16 %v395
        %v1776 = vunpack.c.l.b16 %v396
        %v1777 = vunpack.c.h.b16 %v396
        %v1778 = vunpack.c.l.b16 %v397
        %v1779 = vunpack.c.h.b16 %v397
        %v1780 = vunpack.c.l.b16 %v398
        %v1781 = vunpack.c.h.b16 %v398
        %v1782 = vunpack.c.l.b16 %v399
        %v1783 = vunpack.c.h.b16 %v399
        %v1784 = vunpack.c.l.b16 %v400
        %v1785 = vunpack.c.h.b16 %v400
        %v1786 = vunpack.c.l.b16 %v401
        %v1787 = vunpack.c.h.b16 %v401
        %v1788 = vunpack.c.l.b16 %v402
        %v1789 = vunpack.c.h.b16 %v402
        %v1790 = vunpack.c.l.b16 %v403
        %v1791 = vunpack.c.h.b16 %v403
        %v1792 = vunpack.c.l.b16 %v404
        %v1793 = vunpack.c.h.b16 %v404
        %v1794 = vunpack.c.l.b16 %v405
        %v1795 = vunpack.c.h.b16 %v405
        %v1796 = vunpack.c.l.b16 %v406
        %v1797 = vunpack.c.h.b16 %v406
        %v1798 = vunpack.c.l.b16 %v407
        %v1799 = vunpack.c.h.b16 %v407
        %v1800 = vunpack.c.l.b16 %v408
        %v1801 = vunpack.c.h.b16 %v408
        %v1802 = vunpack.c.l.b16 %v409
        %v1803 = vunpack.c.h.b16 %v409
        %v1804 = vunpack.c.l.b16 %v410
        %v1805 = vunpack.c.h.b16 %v410
        %v1806 = vunpack.c.l.b16 %v411
        %v1807 = vunpack.c.h.b16 %v411
        %v1808 = vunpack.c.l.b16 %v412
        %v1809 = vunpack.c.h.b16 %v412
        %v1810 = vunpack.c.l.b16 %v413
        %v1811 = vunpack.c.h.b16 %v413
        %v1812 = vunpack.c.l.b16 %v414
        %v1813 = vunpack.c.h.b16 %v414
        %v1814 = vunpack.c.l.b16 %v415
        %v1815 = vunpack.c.h.b16 %v415
        %v1816 = vunpack.c.l.b16 %v416
        %v1817 = vunpack.c.h.b16 %v416
        %v1818 = vunpack.c.l.b16 %v417
        %v1819 = vunpack.c.h.b16 %v417
        %v1820 = vunpack.c.l.b16 %v418
        %v1821 = vunpack.c.h.b16 %v418
        %v1822 = vunpack.c.l.b16 %v419
        %v1823 = vunpack.c.h.b16 %v419
        %v1824 = vunpack.c.l.b16 %v420
        %v1825 = vunpack.c.h.b16 %v420
        %v1826 = vunpack.c.l.b16 %v421
        %v1827 = vunpack.c.h.b16 %v421
        %v1828 = vunpack.c.l.b16 %v422
        %v1829 = vunpack.c.h.b16 %v422
        %v1830 = vunpack.c.l.b16 %v423
        %v1831 = vunpack.c.h.b16 %v423
        %v1832 = vunpack.c.l.b16 %v424
        %v1833 = vunpack.c.h.b16 %v424
        %v1834 = vunpack.c.l.b16 %v425
        %v1835 = vunpack.c.h.b16 %v425
        %v1836 = vunpack.c.l.b16 %v426
        %v1837 = vunpack.c.h.b16 %v426
        %v1838 = vunpack.c.l.b16 %v427
        %v1839 = vunpack.c.h.b16 %v427
        %v1840 = vunpack.c.l.b16 %v428
        %v1841 = vunpack.c.h.b16 %v428
        %v1842 = vunpack.c.l.b16 %v429
        %v1843 = vunpack.c.h.b16 %v429
        %v1844 = vunpack.c.l.b16 %v430
        %v1845 = vunpack.c.h.b16 %v430
        %v1846 = vunpack.c.l.b16 %v431
        %v1847 = vunpack.c.h.b16 %v431
        %v1848 = vunpack.c.l.b16 %v432
        %v1849 = vunpack.c.h.b16 %v432
        %v1850 = vunpack.c.l.b16 %v433
        %v1851 = vunpack.c.h.b16 %v433
        %v1852 = vunpack.c.l.b16 %v434
        %v1853 = vunpack.c.h.b16 %v434
        %v1854 = vunpack.c.l.b16 %v435
        %v1855 = vunpack.c.h.b16 %v435
        %v1856 = vunpack.c.l.b16 %v436
        %v1857 = vunpack.c.h.b16 %v436
        %v1858 = vunpack.c.l.b16 %v437
        %v1859 = vunpack.c.h.b16 %v437
        %v1860 = vunpack.c.l.b16 %v438
        %v1861 = vunpack.c.h.b16 %v438
        %v1862 = vunpack.c.l.b16 %v439
        %v1863 = vunpack.c.h.b16 %v439
        %v1864 = vunpack.c.l.b16 %v440
        %v1865 = vunpack.c.h.b16 %v440
        %v1866 = vunpack.c.l.b16 %v441
        %v1867 = vunpack.c.h.b16 %v441
        %v1868 = vunpack.c.l.b16 %v442
        %v1869 = vunpack.c.h.b16 %v442
        %v1870 = vunpack.c.l.b16 %v443
        %v1871 = vunpack.c.h.b16 %v443
        %v1872 = vunpack.c.l.b16 %v444
        %v1873 = vunpack.c.h.b16 %v444
        %v1874 = vunpack.c.l.b16 %v445
        %v1875 = vunpack.c.h.b16 %v445
        %v1876 = vunpack.c.l.b16 %v446
        %v1877 = vunpack.c.h.b16 %v446
        %v1878 = vunpack.c.l.b16 %v447
        %v1879 = vunpack.c.h.b16 %v447
        %v1880 = vunpack.c.l.b16 %v448
        %v1881 = vunpack.c.h.b16 %v448
        %v1882 = vunpack.c.l.b16 %v449
        %v1883 = vunpack.c.h.b16 %v449
        %v1884 = vunpack.c.l.b16 %v450
        %v1885 = vunpack.c.h.b16 %v450
        %v1886 = vunpack.c.l.b16 %v451
        %v1887 = vunpack.c.h.b16 %v451
        %v1888 = vunpack.c.l.b16 %v452
        %v1889 = vunpack.c.h.b16 %v452
        %v1890 = vunpack.c.l.b16 %v453
        %v1891 = vunpack.c.h.b16 %v453
        %v1892 = vunpack.c.l.b16 %v454
        %v1893 = vunpack.c.h.b16 %v454
        %v1894 = vunpack.c.l.b16 %v455
        %v1895 = vunpack.c.h.b16 %v455
        %v1896 = vunpack.c.l.b16 %v456
        %v1897 = vunpack.c.h.b16 %v456
        %v1898 = vunpack.c.l.b16 %v457
        %v1899 = vunpack.c.h.b16 %v457
        %v1900 = vunpack.c.l.b16 %v458
        %v1901 = vunpack.c.h.b16 %v458
        %v1902 = vunpack.c.l.b16 %v459
        %v1903 = vunpack.c.h.b16 %v459
        %v1904 = vunpack.c.l.b16 %v460
        %v1905 = vunpack.c.h.b16 %v460
        %v1906 = vunpack.c.l.b16 %v461
        %v1907 = vunpack.c.h.b16 %v461
        %v1908 = vunpack.c.l.b16 %v462
        %v1909 = vunpack.c.h.b16 %v462
        %v1910 = vunpack.c.l.b16 %v463
        %v1911 = vunpack.c.h.b16 %v463
        %v1912 = vunpack.c.l.b16 %v464
        %v1913 = vunpack.c.h.b16 %v464
        %v1914 = vunpack.c.l.b16 %v465
        %v1915 = vunpack.c.h.b16 %v465
        %v1916 = vunpack.c.l.b16 %v466
        %v1917 = vunpack.c.h.b16 %v466
        %v1918 = vunpack.c.l.b16 %v467
        %v1919 = vunpack.c.h.b16 %v467
        %v1920 = vunpack.c.l.b16 %v468
        %v1921 = vunpack.c.h.b16 %v468
        %v1922 = vunpack.c.l.b16 %v469
        %v1923 = vunpack.c.h.b16 %v469
        %v1924 = vunpack.c.l.b16 %v470
        %v1925 = vunpack.c.h.b16 %v470
        %v1926 = vunpack.c.l.b16 %v471
        %v1927 = vunpack.c.h.b16 %v471
        %v1928 = vunpack.c.l.b16 %v472
        %v1929 = vunpack.c.h.b16 %v472
        %v1930 = vunpack.c.l.b16 %v473
        %v1931 = vunpack.c.h.b16 %v473
        %v1932 = vunpack.c.l.b16 %v474
        %v1933 = vunpack.c.h.b16 %v474
        %v1934 = vunpack.c.l.b16 %v475
        %v1935 = vunpack.c.h.b16 %v475
        %v1936 = vunpack.c.l.b16 %v476
        %v1937 = vunpack.c.h.b16 %v476
        %v1938 = vunpack.c.l.b16 %v477
        %v1939 = vunpack.c.h.b16 %v477
        %v1940 = vunpack.c.l.b16 %v478
        %v1941 = vunpack.c.h.b16 %v478
        %v1942 = vunpack.c.l.b16 %v479
        %v1943 = vunpack.c.h.b16 %v479
        %v1944 = vunpack.c.l.b16 %v480
        %v1945 = vunpack.c.h.b16 %v480
        %v1946 = vunpack.c.l.b16 %v481
        %v1947 = vunpack.c.h.b16 %v481
        %v1948 = vunpack.c.l.b16 %v482
        %v1949 = vunpack.c.h.b16 %v482
        %v1950 = vunpack.c.l.b16 %v483
        %v1951 = vunpack.c.h.b16 %v483
        %v1952 = vunpack.c.l.b16 %v484
        %v1953 = vunpack.c.h.b16 %v484
        %v1954 = vunpack.c.l.b16 %v485
        %v1955 = vunpack.c.h.b16 %v485
        %v1956 = vunpack.c.l.b16 %v486
        %v1957 = vunpack.c.h.b16 %v486
        %v1958 = vunpack.c.l.b16 %v487
        %v1959 = vunpack.c.h.b16 %v487
        %v1960 = vunpack.c.l.b16 %v488
        %v1961 = vunpack.c.h.b16 %v488
        %v1962 = vunpack.c.l.b16 %v489
        %v1963 = vunpack.c.h.b16 %v489
        %v1964 = vunpack.c.l.b16 %v490
        %v1965 = vunpack.c.h.b16 %v490
        %v1966 = vunpack.c.l.b16 %v491
        %v1967 = vunpack.c.h.b16 %v491
        %v1968 = vunpack.c.l.b16 %v492
        %v1969 = vunpack.c.h.b16 %v492
        %v1970 = vunpack.c.l.b16 %v493
        %v1971 = vunpack.c.h.b16 %v493
        %v1972 = vunpack.c.l.b16 %v494
        %v1973 = vunpack.c.h.b16 %v494
        %v1974 = vunpack.c.l.b16 %v495
        %v1975 = vunpack.c.h.b16 %v495
        %v1976 = vunpack.c.l.b16 %v496
        %v1977 = vunpack.c.h.b16 %v496
        %v1978 = vunpack.c.l.b16 %v497
        %v1979 = vunpack.c.h.b16 %v497
        %v1980 = vunpack.c.l.b16 %v498
        %v1981 = vunpack.c.h.b16 %v498
        %v1982 = vunpack.c.l.b16 %v499
        %v1983 = vunpack.c.h.b16 %v499
        %v1984 = vunpack.c.l.b16 %v500
        %v1985 = vunpack.c.h.b16 %v500
        %v1986 = vunpack.c.l.b16 %v501
        %v1987 = vunpack.c.h.b16 %v501
        %v1988 = vunpack.c.l.b16 %v502
        %v1989 = vunpack.c.h.b16 %v502
        %v1990 = vunpack.c.l.b16 %v503
        %v1991 = vunpack.c.h.b16 %v503
        %v1992 = vunpack.c.l.b16 %v504
        %v1993 = vunpack.c.h.b16 %v504
        %v1994 = vunpack.c.l.b16 %v505
        %v1995 = vunpack.c.h.b16 %v505
        %v1996 = vunpack.c.l.b16 %v506
        %v1997 = vunpack.c.h.b16 %v506
        %v1998 = vunpack.c.l.b16 %v507
        %v1999 = vunpack.c.h.b16 %v507
        %v2000 = vunpack.c.l.b16 %v508
        %v2001 = vunpack.c.h.b16 %v508
        %v2002 = vunpack.c.l.b16 %v509
        %v2003 = vunpack.c.h.b16 %v509
        %v2004 = vunpack.c.l.b16 %v510
        %v2005 = vunpack.c.h.b16 %v510
        %v2006 = vunpack.c.l.b16 %v511
        %v2007 = vunpack.c.h.b16 %v511
        %v2008 = vunpack.c.l.b16 %v512
        %v2009 = vunpack.c.h.b16 %v512
        %v2010 = vunpack.c.l.b16 %v513
        %v2011 = vunpack.c.h.b16 %v513
        %v2012 = vunpack.c.l.b16 %v514
        %v2013 = vunpack.c.h.b16 %v514
        %v2014 = vunpack.c.l.b16 %v515
        %v2015 = vunpack.c.h.b16 %v515
        %v2016 = vunpack.c.l.b16 %v516
        %v2017 = vunpack.c.h.b16 %v516
        %v2018 = vunpack.c.l.b16 %v517
        %v2019 = vunpack.c.h.b16 %v517
        %v2020 = vunpack.c.l.b16 %v518
        %v2021 = vunpack.c.h.b16 %v518
        %v2022 = vunpack.c.l.b16 %v519
        %v2023 = vunpack.c.h.b16 %v519
        %v2024 = vunpack.c.l.b16 %v520
        %v2025 = vunpack.c.h.b16 %v520
        %v2026 = vunpack.c.l.b16 %v521
        %v2027 = vunpack.c.h.b16 %v521
        %v2028 = vunpack.c.l.b16 %v522
        %v2029 = vunpack.c.h.b16 %v522
        %v2030 = vunpack.c.l.b16 %v523
        %v2031 = vunpack.c.h.b16 %v523
        %v2032 = vunpack.c.l.b16 %v524
        %v2033 = vunpack.c.h.b16 %v524
        %v2034 = vunpack.c.l.b16 %v525
        %v2035 = vunpack.c.h.b16 %v525
        %v2036 = vunpack.c.l.b16 %v526
        %v2037 = vunpack.c.h.b16 %v526
        %v2038 = vunpack.c.l.b16 %v527
        %v2039 = vunpack.c.h.b16 %v527
        %v2040 = vunpack.c.l.b16 %v528
        %v2041 = vunpack.c.h.b16 %v528
        %v2042 = vunpack.c.l.b16 %v529
        %v2043 = vunpack.c.h.b16 %v529
        %v2044 = vunpack.c.l.b16 %v530
        %v2045 = vunpack.c.h.b16 %v530
        %v2046 = vunpack.c.l.b16 %v531
        %v2047 = vunpack.c.h.b16 %v531
        %v2048 = vunpack.c.l.b16 %v532
        %v2049 = vunpack.c.h.b16 %v532
        %v2050 = vunpack.c.l.b16 %v533
        %v2051 = vunpack.c.h.b16 %v533
        %v2052 = vunpack.c.l.b16 %v534
        %v2053 = vunpack.c.h.b16 %v534
        %v2054 = vunpack.c.l.b16 %v535
        %v2055 = vunpack.c.h.b16 %v535
        %v2056 = vunpack.c.l.b16 %v536
        %v2057 = vunpack.c.h.b16 %v536
        %v2058 = vunpack.c.l.b16 %v537
        %v2059 = vunpack.c.h.b16 %v537
        %v2060 = vunpack.c.l.b16 %v538
        %v2061 = vunpack.c.h.b16 %v538
        %v2062 = vunpack.c.l.b16 %v539
        %v2063 = vunpack.c.h.b16 %v539
        %v2064 = vunpack.c.l.b16 %v540
        %v2065 = vunpack.c.h.b16 %v540
        %v2066 = vunpack.c.l.b16 %v541
        %v2067 = vunpack.c.h.b16 %v541
        %v2068 = vunpack.c.l.b16 %v542
        %v2069 = vunpack.c.h.b16 %v542
        %v2070 = vunpack.c.l.b16 %v543
        %v2071 = vunpack.c.h.b16 %v543
        %v2072 = vunpack.c.l.b16 %v544
        %v2073 = vunpack.c.h.b16 %v544
        %v2074 = vunpack.c.l.b16 %v545
        %v2075 = vunpack.c.h.b16 %v545
        %v2076 = vunpack.c.l.b16 %v546
        %v2077 = vunpack.c.h.b16 %v546
        %v2078 = vunpack.c.l.b16 %v547
        %v2079 = vunpack.c.h.b16 %v547
        %v2080 = vunpack.c.l.b16 %v548
        %v2081 = vunpack.c.h.b16 %v548
        %v2082 = vunpack.c.l.b16 %v549
        %v2083 = vunpack.c.h.b16 %v549
        %v2084 = vunpack.c.l.b16 %v550
        %v2085 = vunpack.c.h.b16 %v550
        %v2086 = vunpack.c.l.b16 %v551
        %v2087 = vunpack.c.h.b16 %v551
        %v2088 = vunpack.c.l.b16 %v552
        %v2089 = vunpack.c.h.b16 %v552
        %v2090 = vunpack.c.l.b16 %v553
        %v2091 = vunpack.c.h.b16 %v553
        %v2092 = vunpack.c.l.b16 %v554
        %v2093 = vunpack.c.h.b16 %v554
        %v2094 = vunpack.c.l.b16 %v555
        %v2095 = vunpack.c.h.b16 %v555
        %v2096 = vunpack.c.l.b16 %v556
        %v2097 = vunpack.c.h.b16 %v556
        %v2098 = vunpack.c.l.b16 %v557
        %v2099 = vunpack.c.h.b16 %v557
        %v2100 = vunpack.c.l.b16 %v558
        %v2101 = vunpack.c.h.b16 %v558
        %v2102 = vunpack.c.l.b16 %v559
        %v2103 = vunpack.c.h.b16 %v559
        %v2104 = vunpack.c.l.b16 %v560
        %v2105 = vunpack.c.h.b16 %v560
        %v2106 = vunpack.c.l.b16 %v561
        %v2107 = vunpack.c.h.b16 %v561
        %v2108 = vunpack.c.l.b16 %v562
        %v2109 = vunpack.c.h.b16 %v562
        %v2110 = vunpack.c.l.b16 %v563
        %v2111 = vunpack.c.h.b16 %v563
        %v2112 = vunpack.c.l.b16 %v564
        %v2113 = vunpack.c.h.b16 %v564
        %v2114 = vunpack.c.l.b16 %v565
        %v2115 = vunpack.c.h.b16 %v565
        %v2116 = vunpack.c.l.b16 %v566
        %v2117 = vunpack.c.h.b16 %v566
        %v2118 = vunpack.c.l.b16 %v567
        %v2119 = vunpack.c.h.b16 %v567
        %v2120 = vunpack.c.l.b16 %v568
        %v2121 = vunpack.c.h.b16 %v568
        %v2122 = vunpack.c.l.b16 %v569
        %v2123 = vunpack.c.h.b16 %v569
        %v2124 = vunpack.c.l.b16 %v570
        %v2125 = vunpack.c.h.b16 %v570
        %v2126 = vunpack.c.l.b16 %v571
        %v2127 = vunpack.c.h.b16 %v571
        %v2128 = vunpack.c.l.b16 %v572
        %v2129 = vunpack.c.h.b16 %v572
        %v2130 = vunpack.c.l.b16 %v573
        %v2131 = vunpack.c.h.b16 %v573
        %v2132 = vunpack.c.l.b16 %v574
        %v2133 = vunpack.c.h.b16 %v574
        %v2134 = vunpack.c.l.b16 %v575
        %v2135 = vunpack.c.h.b16 %v575
        %v2136 = vunpack.c.l.b16 %v576
        %v2137 = vunpack.c.h.b16 %v576
        %v2138 = vunpack.c.l.b16 %v577
        %v2139 = vunpack.c.h.b16 %v577
        %v2140 = vunpack.c.l.b16 %v578
        %v2141 = vunpack.c.h.b16 %v578
        %v2142 = vunpack.c.l.b16 %v579
        %v2143 = vunpack.c.h.b16 %v579
        %v2144 = vunpack.c.l.b16 %v580
        %v2145 = vunpack.c.h.b16 %v580
        %v2146 = vunpack.c.l.b16 %v581
        %v2147 = vunpack.c.h.b16 %v581
        %v2148 = vunpack.c.l.b16 %v582
        %v2149 = vunpack.c.h.b16 %v582
        %v2150 = vunpack.c.l.b16 %v583
        %v2151 = vunpack.c.h.b16 %v583
        %v2152 = vunpack.c.l.b16 %v584
        %v2153 = vunpack.c.h.b16 %v584
        %v2154 = vunpack.c.l.b16 %v585
        %v2155 = vunpack.c.h.b16 %v585
        %v2156 = vunpack.c.l.b16 %v586
        %v2157 = vunpack.c.h.b16 %v586
        %v2158 = vunpack.c.l.b16 %v587
        %v2159 = vunpack.c.h.b16 %v587
        %v2160 = vunpack.c.l.b16 %v588
        %v2161 = vunpack.c.h.b16 %v588
        %v2162 = vunpack.c.l.b16 %v589
        %v2163 = vunpack.c.h.b16 %v589
        %v2164 = vunpack.c.l.b16 %v590
        %v2165 = vunpack.c.h.b16 %v590
        %v2166 = vunpack.c.l.b16 %v591
        %v2167 = vunpack.c.h.b16 %v591
        %v2168 = vunpack.c.l.b16 %v592
        %v2169 = vunpack.c.h.b16 %v592
        %v2170 = vunpack.c.l.b16 %v593
        %v2171 = vunpack.c.h.b16 %v593
        %v2172 = vunpack.c.l.b16 %v594
        %v2173 = vunpack.c.h.b16 %v594
        %v2174 = vunpack.c.l.b16 %v595
        %v2175 = vunpack.c.h.b16 %v595
        %v2176 = vunpack.c.l.b16 %v596
        %v2177 = vunpack.c.h.b16 %v596
        %v2178 = vunpack.c.l.b16 %v597
        %v2179 = vunpack.c.h.b16 %v597
        %v2180 = vunpack.c.l.b16 %v598
        %v2181 = vunpack.c.h.b16 %v598
        %v2182 = vunpack.c.l.b16 %v599
        %v2183 = vunpack.c.h.b16 %v599
        %v2184 = vunpack.c.l.b16 %v600
        %v2185 = vunpack.c.h.b16 %v600
        %v2186 = vunpack.c.l.b16 %v601
        %v2187 = vunpack.c.h.b16 %v601
        %v2188 = vunpack.c.l.b16 %v602
        %v2189 = vunpack.c.h.b16 %v602
        %v2190 = vunpack.c.l.b16 %v603
        %v2191 = vunpack.c.h.b16 %v603
        %v2192 = vunpack.c.l.b16 %v604
        %v2193 = vunpack.c.h.b16 %v604
        %v2194 = vunpack.c.l.b16 %v605
        %v2195 = vunpack.c.h.b16 %v605
        %v2196 = vunpack.c.l.b16 %v606
        %v2197 = vunpack.c.h.b16 %v606
        %v2198 = vunpack.c.l.b16 %v607
        %v2199 = vunpack.c.h.b16 %v607
        %v2200 = vunpack.c.l.b16 %v608
        %v2201 = vunpack.c.h.b16 %v608
        %v2202 = vunpack.c.l.b16 %v609
        %v2203 = vunpack.c.h.b16 %v609
        %v2204 = vunpack.c.l.b16 %v610
        %v2205 = vunpack.c.h.b16 %v610
        %v2206 = vunpack.c.l.b16 %v611
        %v2207 = vunpack.c.h.b16 %v611
        %v2208 = vunpack.c.l.b16 %v612
        %v2209 = vunpack.c.h.b16 %v612
        %v2210 = vunpack.c.l.b16 %v613
        %v2211 = vunpack.c.h.b16 %v613
        %v2212 = vunpack.c.l.b16 %v614
        %v2213 = vunpack.c.h.b16 %v614
        %v2214 = vunpack.c.l.b16 %v615
        %v2215 = vunpack.c.h.b16 %v615
        %v2216 = vunpack.c.l.b16 %v616
        %v2217 = vunpack.c.h.b16 %v616
        %v2218 = vunpack.c.l.b16 %v617
        %v2219 = vunpack.c.h.b16 %v617
        %v2220 = vunpack.c.l.b16 %v618
        %v2221 = vunpack.c.h.b16 %v618
        %v2222 = vunpack.c.l.b16 %v619
        %v2223 = vunpack.c.h.b16 %v619
        %v2224 = vunpack.c.l.b16 %v620
        %v2225 = vunpack.c.h.b16 %v620
        %v2226 = vunpack.c.l.b16 %v621
        %v2227 = vunpack.c.h.b16 %v621
        %v2228 = vunpack.c.l.b16 %v622
        %v2229 = vunpack.c.h.b16 %v622
        %v2230 = vunpack.c.l.b16 %v623
        %v2231 = vunpack.c.h.b16 %v623
        %v2232 = vunpack.c.l.b16 %v624
        %v2233 = vunpack.c.h.b16 %v624
        %v2234 = vunpack.c.l.b16 %v625
        %v2235 = vunpack.c.h.b16 %v625
        %v2236 = vunpack.c.l.b16 %v626
        %v2237 = vunpack.c.h.b16 %v626
        %v2238 = vunpack.c.l.b16 %v627
        %v2239 = vunpack.c.h.b16 %v627
        %v2240 = vunpack.c.l.b16 %v628
        %v2241 = vunpack.c.h.b16 %v628
        %v2242 = vunpack.c.l.b16 %v629
        %v2243 = vunpack.c.h.b16 %v629
        %v2244 = vunpack.c.l.b16 %v630
        %v2245 = vunpack.c.h.b16 %v630
        %v2246 = vunpack.c.l.b16 %v631
        %v2247 = vunpack.c.h.b16 %v631
        %v2248 = vunpack.c.l.b16 %v632
        %v2249 = vunpack.c.h.b16 %v632
        %v2250 = vunpack.c.l.b16 %v633
        %v2251 = vunpack.c.h.b16 %v633
        %v2252 = vunpack.c.l.b16 %v634
        %v2253 = vunpack.c.h.b16 %v634
        %v2254 = vunpack.c.l.b16 %v635
        %v2255 = vunpack.c.h.b16 %v635
        %v2256 = vunpack.c.l.b16 %v636
        %v2257 = vunpack.c.h.b16 %v636
        %v2258 = vunpack.c.l.b16 %v637
        %v2259 = vunpack.c.h.b16 %v637
        %v2260 = vunpack.c.l.b16 %v638
        %v2261 = vunpack.c.h.b16 %v638
        %v2262 = vunpack.c.l.b16 %v639
        %v2263 = vunpack.c.h.b16 %v639
        %v2264 = vunpack.c.l.b16 %v640
        %v2265 = vunpack.c.h.b16 %v640
        %v2266 = vunpack.c.l.b16 %v641
        %v2267 = vunpack.c.h.b16 %v641
        %v2268 = vunpack.c.l.b16 %v642
        %v2269 = vunpack.c.h.b16 %v642
        %v2270 = vunpack.c.l.b16 %v643
        %v2271 = vunpack.c.h.b16 %v643
        %v2272 = vunpack.c.l.b16 %v644
        %v2273 = vunpack.c.h.b16 %v644
        %v2274 = vunpack.c.l.b16 %v645
        %v2275 = vunpack.c.h.b16 %v645
        %v2276 = vunpack.c.l.b16 %v646
        %v2277 = vunpack.c.h.b16 %v646
        %v2278 = vunpack.c.l.b16 %v647
        %v2279 = vunpack.c.h.b16 %v647
        %v2280 = vunpack.c.l.b16 %v648
        %v2281 = vunpack.c.h.b16 %v648
        %v2282 = vunpack.c.l.b16 %v649
        %v2283 = vunpack.c.h.b16 %v649
        %v2284 = vunpack.c.l.b16 %v650
        %v2285 = vunpack.c.h.b16 %v650
        %v2286 = vunpack.c.l.b16 %v651
        %v2287 = vunpack.c.h.b16 %v651
        %v2288 = vunpack.c.l.b16 %v652
        %v2289 = vunpack.c.h.b16 %v652
        %v2290 = vunpack.c.l.b16 %v653
        %v2291 = vunpack.c.h.b16 %v653
        %v2292 = vunpack.c.l.b16 %v654
        %v2293 = vunpack.c.h.b16 %v654
        %v2294 = vunpack.c.l.b16 %v655
        %v2295 = vunpack.c.h.b16 %v655
        %v2296 = vunpack.c.l.b16 %v656
        %v2297 = vunpack.c.h.b16 %v656
        %v2298 = vunpack.c.l.b16 %v657
        %v2299 = vunpack.c.h.b16 %v657
        %v2300 = vunpack.c.l.b16 %v658
        %v2301 = vunpack.c.h.b16 %v658
        %v2302 = vunpack.c.l.b16 %v659
        %v2303 = vunpack.c.h.b16 %v659
        %v2304 = vunpack.c.l.b16 %v660
        %v2305 = vunpack.c.h.b16 %v660
        %v2306 = vunpack.c.l.b16 %v661
        %v2307 = vunpack.c.h.b16 %v661
        %v2308 = vunpack.c.l.b16 %v662
        %v2309 = vunpack.c.h.b16 %v662
        %v2310 = vunpack.c.l.b16 %v663
        %v2311 = vunpack.c.h.b16 %v663
        %v2312 = vunpack.c.l.b16 %v664
        %v2313 = vunpack.c.h.b16 %v664
        %v2314 = vunpack.c.l.b16 %v665
        %v2315 = vunpack.c.h.b16 %v665
        %v2316 = vunpack.c.l.b16 %v666
        %v2317 = vunpack.c.h.b16 %v666
        %v2318 = vunpack.c.l.b16 %v667
        %v2319 = vunpack.c.h.b16 %v667
        %v2320 = vunpack.c.l.b16 %v668
        %v2321 = vunpack.c.h.b16 %v668
        %v2322 = vunpack.c.l.b16 %v669
        %v2323 = vunpack.c.h.b16 %v669
        %v2324 = vunpack.c.l.b16 %v670
        %v2325 = vunpack.c.h.b16 %v670
        %v2326 = vunpack.c.l.b16 %v671
        %v2327 = vunpack.c.h.b16 %v671
        %v2328 = vunpack.c.l.b16 %v672
        %v2329 = vunpack.c.h.b16 %v672
        %v2330 = vunpack.c.l.b16 %v673
        %v2331 = vunpack.c.h.b16 %v673
        %v2332 = vunpack.c.l.b16 %v674
        %v2333 = vunpack.c.h.b16 %v674
        %v2334 = vunpack.c.l.b16 %v675
        %v2335 = vunpack.c.h.b16 %v675
        %v2336 = vunpack.c.l.b16 %v676
        %v2337 = vunpack.c.h.b16 %v676
        %v2338 = vunpack.c.l.b16 %v677
        %v2339 = vunpack.c.h.b16 %v677
        %v2340 = vunpack.c.l.b16 %v678
        %v2341 = vunpack.c.h.b16 %v678
        %v2342 = vunpack.c.l.b16 %v679
        %v2343 = vunpack.c.h.b16 %v679
        %v2344 = vunpack.c.l.b16 %v680
        %v2345 = vunpack.c.h.b16 %v680
        %v2346 = vunpack.c.l.b16 %v681
        %v2347 = vunpack.c.h.b16 %v681
        %v2348 = vunpack.c.l.b16 %v682
        %v2349 = vunpack.c.h.b16 %v682
        %v2350 = vunpack.c.l.b16 %v683
        %v2351 = vunpack.c.h.b16 %v683
        %v2352 = vunpack.c.l.b16 %v684
        %v2353 = vunpack.c.h.b16 %v684
        %v2354 = vunpack.c.l.b16 %v685
        %v2355 = vunpack.c.h.b16 %v685
        %v2356 = vunpack.c.l.b16 %v686
        %v2357 = vunpack.c.h.b16 %v686
        %v2358 = vunpack.c.l.b16 %v687
        %v2359 = vunpack.c.h.b16 %v687
        %v2360 = vunpack.c.l.b16 %v688
        %v2361 = vunpack.c.h.b16 %v688
        %v2362 = vunpack.c.l.b16 %v689
        %v2363 = vunpack.c.h.b16 %v689
        %v2364 = vunpack.c.l.b16 %v690
        %v2365 = vunpack.c.h.b16 %v690
        %v2366 = vunpack.c.l.b16 %v691
        %v2367 = vunpack.c.h.b16 %v691
        %v2368 = vunpack.c.l.b16 %v692
        %v2369 = vunpack.c.h.b16 %v692
        %v2370 = vunpack.c.l.b16 %v693
        %v2371 = vunpack.c.h.b16 %v693
        %v2372 = vunpack.c.l.b16 %v694
        %v2373 = vunpack.c.h.b16 %v694
        %v2374 = vunpack.c.l.b16 %v695
        %v2375 = vunpack.c.h.b16 %v695
        %v2376 = vunpack.c.l.b16 %v696
        %v2377 = vunpack.c.h.b16 %v696
        %v2378 = vunpack.c.l.b16 %v697
        %v2379 = vunpack.c.h.b16 %v697
        %v2380 = vunpack.c.l.b16 %v698
        %v2381 = vunpack.c.h.b16 %v698
        %v2382 = vunpack.c.l.b16 %v699
        %v2383 = vunpack.c.h.b16 %v699
        %v2384 = vunpack.c.l.b16 %v700
        %v2385 = vunpack.c.h.b16 %v700
        %v2386 = vunpack.c.l.b16 %v701
        %v2387 = vunpack.c.h.b16 %v701
        %v2388 = vunpack.c.l.b16 %v702
        %v2389 = vunpack.c.h.b16 %v702
        %v2390 = vunpack.c.l.b16 %v703
        %v2391 = vunpack.c.h.b16 %v703
        %v2392 = vunpack.c.l.b16 %v704
        %v2393 = vunpack.c.h.b16 %v704
        %v2394 = vunpack.c.l.b16 %v705
        %v2395 = vunpack.c.h.b16 %v705
        %v2396 = vunpack.c.l.b16 %v706
        %v2397 = vunpack.c.h.b16 %v706
        %v2398 = vunpack.c.l.b16 %v707
        %v2399 = vunpack.c.h.b16 %v707
        %v2400 = vunpack.c.l.b16 %v708
        %v2401 = vunpack.c.h.b16 %v708
        %v2402 = vunpack.c.l.b16 %v709
        %v2403 = vunpack.c.h.b16 %v709
        %v2404 = vunpack.c.l.b16 %v710
        %v2405 = vunpack.c.h.b16 %v710
        %v2406 = vunpack.c.l.b16 %v711
        %v2407 = vunpack.c.h.b16 %v711
        %v2408 = vunpack.c.l.b16 %v712
        %v2409 = vunpack.c.h.b16 %v712
        %v2410 = vunpack.c.l.b16 %v713
        %v2411 = vunpack.c.h.b16 %v713
        %v2412 = vunpack.c.l.b16 %v714
        %v2413 = vunpack.c.h.b16 %v714
        %v2414 = vunpack.c.l.b16 %v715
        %v2415 = vunpack.c.h.b16 %v715
        %v2416 = vunpack.c.l.b16 %v716
        %v2417 = vunpack.c.h.b16 %v716
        %v2418 = vunpack.c.l.b16 %v717
        %v2419 = vunpack.c.h.b16 %v717
        %v2420 = vunpack.c.l.b16 %v718
        %v2421 = vunpack.c.h.b16 %v718
        %v2422 = vunpack.c.l.b16 %v719
        %v2423 = vunpack.c.h.b16 %v719
        %v2424 = vunpack.c.l.b16 %v720
        %v2425 = vunpack.c.h.b16 %v720
        %v2426 = vunpack.c.l.b16 %v721
        %v2427 = vunpack.c.h.b16 %v721
        %v2428 = vunpack.c.l.b16 %v722
        %v2429 = vunpack.c.h.b16 %v722
        %v2430 = vunpack.c.l.b16 %v723
        %v2431 = vunpack.c.h.b16 %v723
        %v2432 = vunpack.c.l.b16 %v724
        %v2433 = vunpack.c.h.b16 %v724
        %v2434 = vunpack.c.l.b16 %v725
        %v2435 = vunpack.c.h.b16 %v725
        %v2436 = vunpack.c.l.b16 %v726
        %v2437 = vunpack.c.h.b16 %v726
        %v2438 = vunpack.c.l.b16 %v727
        %v2439 = vunpack.c.h.b16 %v727
        %v2440 = vunpack.c.l.b16 %v728
        %v2441 = vunpack.c.h.b16 %v728
        %v2442 = vunpack.c.l.b16 %v729
        %v2443 = vunpack.c.h.b16 %v729
        %v2444 = vunpack.c.l.b16 %v730
        %v2445 = vunpack.c.h.b16 %v730
        %v2446 = vunpack.c.l.b16 %v731
        %v2447 = vunpack.c.h.b16 %v731
        %v2448 = vunpack.c.l.b16 %v732
        %v2449 = vunpack.c.h.b16 %v732
        %v2450 = vunpack.c.l.b16 %v733
        %v2451 = vunpack.c.h.b16 %v733
        %v2452 = vunpack.c.l.b16 %v734
        %v2453 = vunpack.c.h.b16 %v734
        %v2454 = vunpack.c.l.b16 %v735
        %v2455 = vunpack.c.h.b16 %v735
        %v2456 = vunpack.c.l.b16 %v736
        %v2457 = vunpack.c.h.b16 %v736
        %v2458 = vunpack.c.l.b16 %v737
        %v2459 = vunpack.c.h.b16 %v737
        %v2460 = vunpack.c.l.b16 %v738
        %v2461 = vunpack.c.h.b16 %v738
        %v2462 = vunpack.c.l.b16 %v739
        %v2463 = vunpack.c.h.b16 %v739
        %v2464 = vunpack.c.l.b16 %v740
        %v2465 = vunpack.c.h.b16 %v740
        %v2466 = vunpack.c.l.b16 %v741
        %v2467 = vunpack.c.h.b16 %v741
        %v2468 = vunpack.c.l.b16 %v742
        %v2469 = vunpack.c.h.b16 %v742
        %v2470 = vunpack.c.l.b16 %v743
        %v2471 = vunpack.c.h.b16 %v743
        %v2472 = vunpack.c.l.b16 %v744
        %v2473 = vunpack.c.h.b16 %v744
        %v2474 = vunpack.c.l.b16 %v745
        %v2475 = vunpack.c.h.b16 %v745
        %v2476 = vunpack.c.l.b16 %v746
        %v2477 = vunpack.c.h.b16 %v746
        %v2478 = vunpack.c.l.b16 %v747
        %v2479 = vunpack.c.h.b16 %v747
        %v2480 = vunpack.c.l.b16 %v748
        %v2481 = vunpack.c.h.b16 %v748
        %v2482 = vunpack.c.l.b16 %v749
        %v2483 = vunpack.c.h.b16 %v749
        %v2484 = vunpack.c.l.b16 %v750
        %v2485 = vunpack.c.h.b16 %v750
        %v2486 = vunpack.c.l.b16 %v751
        %v2487 = vunpack.c.h.b16 %v751
        %v2488 = vunpack.c.l.b16 %v752
        %v2489 = vunpack.c.h.b16 %v752
        %v2490 = vunpack.c.l.b16 %v753
        %v2491 = vunpack.c.h.b16 %v753
        %v2492 = vunpack.c.l.b16 %v754
        %v2493 = vunpack.c.h.b16 %v754
        %v2494 = vunpack.c.l.b16 %v755
        %v2495 = vunpack.c.h.b16 %v755
        %v2496 = vunpack.c.l.b16 %v756
        %v2497 = vunpack.c.h.b16 %v756
        %v2498 = vunpack.c.l.b16 %v757
        %v2499 = vunpack.c.h.b16 %v757
        %v2500 = vunpack.c.l.b16 %v758
        %v2501 = vunpack.c.h.b16 %v758
        %v2502 = vunpack.c.l.b16 %v759
        %v2503 = vunpack.c.h.b16 %v759
        %v2504 = vunpack.c.l.b16 %v760
        %v2505 = vunpack.c.h.b16 %v760
        %v2506 = vunpack.c.l.b16 %v761
        %v2507 = vunpack.c.h.b16 %v761
        %v2508 = vunpack.c.l.b16 %v762
        %v2509 = vunpack.c.h.b16 %v762
        %v2510 = vunpack.c.l.b16 %v763
        %v2511 = vunpack.c.h.b16 %v763
        %v2512 = vunpack.c.l.b16 %v764
        %v2513 = vunpack.c.h.b16 %v764
        %v2514 = vunpack.c.l.b16 %v765
        %v2515 = vunpack.c.h.b16 %v765
        %v2516 = vunpack.c.l.b16 %v766
        %v2517 = vunpack.c.h.b16 %v766
        %v2518 = vunpack.c.l.b16 %v767
        %v2519 = vunpack.c.h.b16 %v767
        %v2520 = vunpack.c.l.b16 %v768
        %v2521 = vunpack.c.h.b16 %v768
        %v2522 = vunpack.c.l.b16 %v769
        %v2523 = vunpack.c.h.b16 %v769
        %v2524 = vunpack.c.l.b16 %v770
        %v2525 = vunpack.c.h.b16 %v770
        %v2526 = vunpack.c.l.b16 %v771
        %v2527 = vunpack.c.h.b16 %v771
        %v2528 = vunpack.c.l.b16 %v772
        %v2529 = vunpack.c.h.b16 %v772
        %v2530 = vunpack.c.l.b16 %v773
        %v2531 = vunpack.c.h.b16 %v773
        %v2532 = vunpack.c.l.b16 %v774
        %v2533 = vunpack.c.h.b16 %v774
        %v2534 = vunpack.c.l.b16 %v775
        %v2535 = vunpack.c.h.b16 %v775
        %v2536 = vunpack.c.l.b16 %v776
        %v2537 = vunpack.c.h.b16 %v776
        %v2538 = vunpack.c.l.b16 %v777
        %v2539 = vunpack.c.h.b16 %v777
        %v2540 = vunpack.c.l.b16 %v778
        %v2541 = vunpack.c.h.b16 %v778
        %v2542 = vunpack.c.l.b16 %v779
        %v2543 = vunpack.c.h.b16 %v779
        %v2544 = vunpack.c.l.b16 %v780
        %v2545 = vunpack.c.h.b16 %v780
        %v2546 = vunpack.c.l.b16 %v781
        %v2547 = vunpack.c.h.b16 %v781
        %v2548 = vunpack.c.l.b16 %v782
        %v2549 = vunpack.c.h.b16 %v782
        %v2550 = vunpack.c.l.b16 %v783
        %v2551 = vunpack.c.h.b16 %v783
        %v2552 = vunpack.c.l.b16 %v784
        %v2553 = vunpack.c.h.b16 %v784
        %v2554 = vunpack.c.l.b16 %v785
        %v2555 = vunpack.c.h.b16 %v785
        %v2556 = vunpack.c.l.b16 %v786
        %v2557 = vunpack.c.h.b16 %v786
        %v2558 = vunpack.c.l.b16 %v787
        %v2559 = vunpack.c.h.b16 %v787
        %v2560 = vunpack.c.l.b16 %v788
        %v2561 = vunpack.c.h.b16 %v788
        %v2562 = vunpack.c.l.b16 %v789
        %v2563 = vunpack.c.h.b16 %v789
        %v2564 = vunpack.c.l.b16 %v790
        %v2565 = vunpack.c.h.b16 %v790
        %v2566 = vunpack.c.l.b16 %v791
        %v2567 = vunpack.c.h.b16 %v791
        %v2568 = vunpack.c.l.b16 %v792
        %v2569 = vunpack.c.h.b16 %v792
        %v2570 = vunpack.c.l.b16 %v793
        %v2571 = vunpack.c.h.b16 %v793
        %v2572 = vunpack.c.l.b16 %v794
        %v2573 = vunpack.c.h.b16 %v794
        %v2574 = vunpack.c.l.b16 %v795
        %v2575 = vunpack.c.h.b16 %v795
        %v2576 = vunpack.c.l.b16 %v796
        %v2577 = vunpack.c.h.b16 %v796
        %v2578 = vunpack.c.l.b16 %v797
        %v2579 = vunpack.c.h.b16 %v797
        %v2580 = vunpack.c.l.b16 %v798
        %v2581 = vunpack.c.h.b16 %v798
        %v2582 = vunpack.c.l.b16 %v799
        %v2583 = vunpack.c.h.b16 %v799
        %v2584 = vunpack.c.l.b16 %v800
        %v2585 = vunpack.c.h.b16 %v800
        %v2586 = vunpack.c.l.b16 %v801
        %v2587 = vunpack.c.h.b16 %v801
        %v2588 = vunpack.c.l.b16 %v802
        %v2589 = vunpack.c.h.b16 %v802
        %v2590 = vunpack.c.l.b16 %v803
        %v2591 = vunpack.c.h.b16 %v803
        %v2592 = vunpack.c.l.b16 %v804
        %v2593 = vunpack.c.h.b16 %v804
        %v2594 = vunpack.c.l.b16 %v805
        %v2595 = vunpack.c.h.b16 %v805
        %v2596 = vunpack.c.l.b16 %v806
        %v2597 = vunpack.c.h.b16 %v806
        %v2598 = vunpack.c.l.b16 %v807
        %v2599 = vunpack.c.h.b16 %v807
        %v2600 = vunpack.c.l.b16 %v808
        %v2601 = vunpack.c.h.b16 %v808
        %v2602 = vunpack.c.l.b16 %v809
        %v2603 = vunpack.c.h.b16 %v809
        %v2604 = vunpack.c.l.b16 %v810
        %v2605 = vunpack.c.h.b16 %v810
        %v2606 = vunpack.c.l.b16 %v811
        %v2607 = vunpack.c.h.b16 %v811
        %v2608 = vunpack.c.l.b16 %v812
        %v2609 = vunpack.c.h.b16 %v812
        %v2610 = vunpack.c.l.b16 %v813
        %v2611 = vunpack.c.h.b16 %v813
        %v2612 = vunpack.c.l.b16 %v814
        %v2613 = vunpack.c.h.b16 %v814
        %v2614 = vunpack.c.l.b16 %v815
        %v2615 = vunpack.c.h.b16 %v815
        %v2616 = vunpack.c.l.b16 %v816
        %v2617 = vunpack.c.h.b16 %v816
        %v2618 = vunpack.c.l.b16 %v817
        %v2619 = vunpack.c.h.b16 %v817
        %v2620 = vunpack.c.l.b16 %v818
        %v2621 = vunpack.c.h.b16 %v818
        %v2622 = vunpack.c.l.b16 %v819
        %v2623 = vunpack.c.h.b16 %v819
        %v2624 = vunpack.c.l.b16 %v820
        %v2625 = vunpack.c.h.b16 %v820
        %v2626 = vunpack.c.l.b16 %v821
        %v2627 = vunpack.c.h.b16 %v821
        %v2628 = vunpack.c.l.b16 %v822
        %v2629 = vunpack.c.h.b16 %v822
        %v2630 = vunpack.c.l.b16 %v823
        %v2631 = vunpack.c.h.b16 %v823
        %v2632 = vunpack.c.l.b16 %v824
        %v2633 = vunpack.c.h.b16 %v824
        %v2634 = vunpack.c.l.b16 %v825
        %v2635 = vunpack.c.h.b16 %v825
        %v2636 = vunpack.c.l.b16 %v826
        %v2637 = vunpack.c.h.b16 %v826
        %v2638 = vunpack.c.l.b16 %v827
        %v2639 = vunpack.c.h.b16 %v827
        %v2640 = vunpack.c.l.b16 %v828
        %v2641 = vunpack.c.h.b16 %v828
        %v2642 = vunpack.c.l.b16 %v829
        %v2643 = vunpack.c.h.b16 %v829
        %v2644 = vunpack.c.l.b16 %v830
        %v2645 = vunpack.c.h.b16 %v830
        %v2646 = vunpack.c.l.b16 %v831
        %v2647 = vunpack.c.h.b16 %v831
        %v2648 = vunpack.c.l.b16 %v832
        %v2649 = vunpack.c.h.b16 %v832
        %v2650 = vunpack.c.l.b16 %v833
        %v2651 = vunpack.c.h.b16 %v833
        %v2652 = vunpack.c.l.b16 %v834
        %v2653 = vunpack.c.h.b16 %v834
        %v2654 = vunpack.c.l.b16 %v835
        %v2655 = vunpack.c.h.b16 %v835
        %v2656 = vunpack.c.l.b16 %v836
        %v2657 = vunpack.c.h.b16 %v836
        %v2658 = vunpack.c.l.b16 %v837
        %v2659 = vunpack.c.h.b16 %v837
        %v2660 = vunpack.c.l.b16 %v838
        %v2661 = vunpack.c.h.b16 %v838
        %v2662 = vunpack.c.l.b16 %v839
        %v2663 = vunpack.c.h.b16 %v839
        %v2664 = vunpack.c.l.b16 %v840
        %v2665 = vunpack.c.h.b16 %v840
        %v2666 = vunpack.c.l.b16 %v841
        %v2667 = vunpack.c.h.b16 %v841
        %v2668 = vunpack.c.l.b16 %v842
        %v2669 = vunpack.c.h.b16 %v842
        %v2670 = vunpack.c.l.b16 %v843
        %v2671 = vunpack.c.h.b16 %v843
        %v2672 = vunpack.c.l.b16 %v844
        %v2673 = vunpack.c.h.b16 %v844
        %v2674 = vunpack.c.l.b16 %v845
        %v2675 = vunpack.c.h.b16 %v845
        %v2676 = vunpack.c.l.b16 %v846
        %v2677 = vunpack.c.h.b16 %v846
        %v2678 = vunpack.c.l.b16 %v847
        %v2679 = vunpack.c.h.b16 %v847
        %v2680 = vunpack.c.l.b16 %v848
        %v2681 = vunpack.c.h.b16 %v848
        %v2682 = vunpack.c.l.b16 %v849
        %v2683 = vunpack.c.h.b16 %v849
        %v2684 = vunpack.c.l.b16 %v850
        %v2685 = vunpack.c.h.b16 %v850
        %v2686 = vunpack.c.l.b16 %v851
        %v2687 = vunpack.c.h.b16 %v851
        %v2688 = vunpack.c.l.b16 %v852
        %v2689 = vunpack.c.h.b16 %v852
        %v2690 = vunpack.c.l.b16 %v853
        %v2691 = vunpack.c.h.b16 %v853
        %v2692 = vunpack.c.l.b16 %v854
        %v2693 = vunpack.c.h.b16 %v854
        %v2694 = vunpack.c.l.b16 %v855
        %v2695 = vunpack.c.h.b16 %v855
        %v2696 = vunpack.c.l.b16 %v856
        %v2697 = vunpack.c.h.b16 %v856
        %v2698 = vunpack.c.l.b16 %v857
        %v2699 = vunpack.c.h.b16 %v857
        %v2700 = vunpack.c.l.b16 %v858
        %v2701 = vunpack.c.h.b16 %v858
        %v2702 = vunpack.c.l.b16 %v859
        %v2703 = vunpack.c.h.b16 %v859
        %v2704 = vunpack.c.l.b16 %v860
        %v2705 = vunpack.c.h.b16 %v860
        %v2706 = vunpack.c.l.b16 %v861
        %v2707 = vunpack.c.h.b16 %v861
        %v2708 = vunpack.c.l.b16 %v862
        %v2709 = vunpack.c.h.b16 %v862
        %v2710 = vunpack.c.l.b16 %v863
        %v2711 = vunpack.c.h.b16 %v863
        %v2712 = vunpack.c.l.b16 %v864
        %v2713 = vunpack.c.h.b16 %v864
        %v2714 = vunpack.c.l.b16 %v865
        %v2715 = vunpack.c.h.b16 %v865
        %v2716 = vunpack.c.l.b16 %v866
        %v2717 = vunpack.c.h.b16 %v866
        %v2718 = vunpack.c.l.b16 %v867
        %v2719 = vunpack.c.h.b16 %v867
        %v2720 = vunpack.c.l.b16 %v868
        %v2721 = vunpack.c.h.b16 %v868
        %v2722 = vunpack.c.l.b16 %v869
        %v2723 = vunpack.c.h.b16 %v869
        %v2724 = vunpack.c.l.b16 %v870
        %v2725 = vunpack.c.h.b16 %v870
        %v2726 = vunpack.c.l.b16 %v871
        %v2727 = vunpack.c.h.b16 %v871
        %v2728 = vunpack.c.l.b16 %v872
        %v2729 = vunpack.c.h.b16 %v872
        %v2730 = vunpack.c.l.b16 %v873
        %v2731 = vunpack.c.h.b16 %v873
        %v2732 = vunpack.c.l.b16 %v874
        %v2733 = vunpack.c.h.b16 %v874
        %v2734 = vunpack.c.l.b16 %v875
        %v2735 = vunpack.c.h.b16 %v875
        %v2736 = vunpack.c.l.b16 %v876
        %v2737 = vunpack.c.h.b16 %v876
        %v2738 = vunpack.c.l.b16 %v877
        %v2739 = vunpack.c.h.b16 %v877
        %v2740 = vunpack.c.l.b16 %v878
        %v2741 = vunpack.c.h.b16 %v878
        %v2742 = vunpack.c.l.b16 %v879
        %v2743 = vunpack.c.h.b16 %v879
        %v2744 = vunpack.c.l.b16 %v880
        %v2745 = vunpack.c.h.b16 %v880
        %v2746 = vunpack.c.l.b16 %v881
        %v2747 = vunpack.c.h.b16 %v881
        %v2748 = vunpack.c.l.b16 %v882
        %v2749 = vunpack.c.h.b16 %v882
        %v2750 = vunpack.c.l.b16 %v883
        %v2751 = vunpack.c.h.b16 %v883
        %v2752 = vpack.c.b16 %v1730, %v1728
        %v2753 = vpack.c.b16 %v1731, %v1729
        %v2754 = vpack.c.b16 %v1734, %v1732
        %v2755 = vpack.c.b16 %v1735, %v1733
        %v2756 = vpack.c.b16 %v1738, %v1736
        %v2757 = vpack.c.b16 %v1739, %v1737
        %v2758 = vpack.c.b16 %v1742, %v1740
        %v2759 = vpack.c.b16 %v1743, %v1741
        %v2760 = vpack.c.b16 %v1746, %v1744
        %v2761 = vpack.c.b16 %v1747, %v1745
        %v2762 = vpack.c.b16 %v1750, %v1748
        %v2763 = vpack.c.b16 %v1751, %v1749
        %v2764 = vpack.c.b16 %v1754, %v1752
        %v2765 = vpack.c.b16 %v1755, %v1753
        %v2766 = vpack.c.b16 %v1758, %v1756
        %v2767 = vpack.c.b16 %v1759, %v1757
        %v2768 = vpack.c.b16 %v1762, %v1760
        %v2769 = vpack.c.b16 %v1763, %v1761
        %v2770 = vpack.c.b16 %v1766, %v1764
        %v2771 = vpack.c.b16 %v1767, %v1765
        %v2772 = vpack.c.b16 %v1770, %v1768
        %v2773 = vpack.c.b16 %v1771, %v1769
        %v2774 = vpack.c.b16 %v1774, %v1772
        %v2775 = vpack.c.b16 %v1775, %v1773
        %v2776 = vpack.c.b16 %v1778, %v1776
        %v2777 = vpack.c.b16 %v1779, %v1777
        %v2778 = vpack.c.b16 %v1782, %v1780
        %v2779 = vpack.c.b16 %v1783, %v1781
        %v2780 = vpack.c.b16 %v1786, %v1784
        %v2781 = vpack.c.b16 %v1787, %v1785
        %v2782 = vpack.c.b16 %v1790, %v1788
        %v2783 = vpack.c.b16 %v1791, %v1789
        %v2784 = vpack.c.b16 %v1794, %v1792
        %v2785 = vpack.c.b16 %v1795, %v1793
        %v2786 = vpack.c.b16 %v1798, %v1796
        %v2787 = vpack.c.b16 %v1799, %v1797
        %v2788 = vpack.c.b16 %v1802, %v1800
        %v2789 = vpack.c.b16 %v1803, %v1801
        %v2790 = vpack.c.b16 %v1806, %v1804
        %v2791 = vpack.c.b16 %v1807, %v1805
        %v2792 = vpack.c.b16 %v1810, %v1808
        %v2793 = vpack.c.b16 %v1811, %v1809
        %v2794 = vpack.c.b16 %v1814, %v1812
        %v2795 = vpack.c.b16 %v1815, %v1813
        %v2796 = vpack.c.b16 %v1818, %v1816
        %v2797 = vpack.c.b16 %v1819, %v1817
        %v2798 = vpack.c.b16 %v1822, %v1820
        %v2799 = vpack.c.b16 %v1823, %v1821
        %v2800 = vpack.c.b16 %v1826, %v1824
        %v2801 = vpack.c.b16 %v1827, %v1825
        %v2802 = vpack.c.b16 %v1830, %v1828
        %v2803 = vpack.c.b16 %v1831, %v1829
        %v2804 = vpack.c.b16 %v1834, %v1832
        %v2805 = vpack.c.b16 %v1835, %v1833
        %v2806 = vpack.c.b16 %v1838, %v1836
        %v2807 = vpack.c.b16 %v1839, %v1837
        %v2808 = vpack.c.b16 %v1842, %v1840
        %v2809 = vpack.c.b16 %v1843, %v1841
        %v2810 = vpack.c.b16 %v1846, %v1844
        %v2811 = vpack.c.b16 %v1847, %v1845
        %v2812 = vpack.c.b16 %v1850, %v1848
        %v2813 = vpack.c.b16 %v1851, %v1849
        %v2814 = vpack.c.b16 %v1854, %v1852
        %v2815 = vpack.c.b16 %v1855, %v1853
        %v2816 = vpack.c.b16 %v1858, %v1856
        %v2817 = vpack.c.b16 %v1859, %v1857
        %v2818 = vpack.c.b16 %v1862, %v1860
        %v2819 = vpack.c.b16 %v1863, %v1861
        %v2820 = vpack.c.b16 %v1866, %v1864
        %v2821 = vpack.c.b16 %v1867, %v1865
        %v2822 = vpack.c.b16 %v1870, %v1868
        %v2823 = vpack.c.b16 %v1871, %v1869
        %v2824 = vpack.c.b16 %v1874, %v1872
        %v2825 = vpack.c.b16 %v1875, %v1873
        %v2826 = vpack.c.b16 %v1878, %v1876
        %v2827 = vpack.c.b16 %v1879, %v1877
        %v2828 = vpack.c.b16 %v1882, %v1880
        %v2829 = vpack.c.b16 %v1883, %v1881
        %v2830 = vpack.c.b16 %v1886, %v1884
        %v2831 = vpack.c.b16 %v1887, %v1885
        %v2832 = vpack.c.b16 %v1890, %v1888
        %v2833 = vpack.c.b16 %v1891, %v1889
        %v2834 = vpack.c.b16 %v1894, %v1892
        %v2835 = vpack.c.b16 %v1895, %v1893
        %v2836 = vpack.c.b16 %v1898, %v1896
        %v2837 = vpack.c.b16 %v1899, %v1897
        %v2838 = vpack.c.b16 %v1902, %v1900
        %v2839 = vpack.c.b16 %v1903, %v1901
        %v2840 = vpack.c.b16 %v1906, %v1904
        %v2841 = vpack.c.b16 %v1907, %v1905
        %v2842 = vpack.c.b16 %v1910, %v1908
        %v2843 = vpack.c.b16 %v1911, %v1909
        %v2844 = vpack.c.b16 %v1914, %v1912
        %v2845 = vpack.c.b16 %v1915, %v1913
        %v2846 = vpack.c.b16 %v1918, %v1916
        %v2847 = vpack.c.b16 %v1919, %v1917
        %v2848 = vpack.c.b16 %v1922, %v1920
        %v2849 = vpack.c.b16 %v1923, %v1921
        %v2850 = vpack.c.b16 %v1926, %v1924
        %v2851 = vpack.c.b16 %v1927, %v1925
        %v2852 = vpack.c.b16 %v1930, %v1928
        %v2853 = vpack.c.b16 %v1931, %v1929
        %v2854 = vpack.c.b16 %v1934, %v1932
        %v2855 = vpack.c.b16 %v1935, %v1933
        %v2856 = vpack.c.b16 %v1938, %v1936
        %v2857 = vpack.c.b16 %v1939, %v1937
        %v2858 = vpack.c.b16 %v1942, %v1940
        %v2859 = vpack.c.b16 %v1943, %v1941
        %v2860 = vpack.c.b16 %v1946, %v1944
        %v2861 = vpack.c.b16 %v1947, %v1945
        %v2862 = vpack.c.b16 %v1950, %v1948
        %v2863 = vpack.c.b16 %v1951, %v1949
        %v2864 = vpack.c.b16 %v1954, %v1952
        %v2865 = vpack.c.b16 %v1955, %v1953
        %v2866 = vpack.c.b16 %v1958, %v1956
        %v2867 = vpack.c.b16 %v1959, %v1957
        %v2868 = vpack.c.b16 %v1962, %v1960
        %v2869 = vpack.c.b16 %v1963, %v1961
        %v2870 = vpack.c.b16 %v1966, %v1964
        %v2871 = vpack.c.b16 %v1967, %v1965
        %v2872 = vpack.c.b16 %v1970, %v1968
        %v2873 = vpack.c.b16 %v1971, %v1969
        %v2874 = vpack.c.b16 %v1974, %v1972
        %v2875 = vpack.c.b16 %v1975, %v1973
        %v2876 = vpack.c.b16 %v1978, %v1976
        %v2877 = vpack.c.b16 %v1979, %v1977
        %v2878 = vpack.c.b16 %v1982, %v1980
        %v2879 = vpack.c.b16 %v1983, %v1981
        %v2880 = vpack.c.b16 %v1986, %v1984
        %v2881 = vpack.c.b16 %v1987, %v1985
        %v2882 = vpack.c.b16 %v1990, %v1988
        %v2883 = vpack.c.b16 %v1991, %v1989
        %v2884 = vpack.c.b16 %v1994, %v1992
        %v2885 = vpack.c.b16 %v1995, %v1993
        %v2886 = vpack.c.b16 %v1998, %v1996
        %v2887 = vpack.c.b16 %v1999, %v1997
        %v2888 = vpack.c.b16 %v2002, %v2000
        %v2889 = vpack.c.b16 %v2003, %v2001
        %v2890 = vpack.c.b16 %v2006, %v2004
        %v2891 = vpack.c.b16 %v2007, %v2005
        %v2892 = vpack.c.b16 %v2010, %v2008
        %v2893 = vpack.c.b16 %v2011, %v2009
        %v2894 = vpack.c.b16 %v2014, %v2012
        %v2895 = vpack.c.b16 %v2015, %v2013
        %v2896 = vpack.c.b16 %v2018, %v2016
        %v2897 = vpack.c.b16 %v2019, %v2017
        %v2898 = vpack.c.b16 %v2022, %v2020
        %v2899 = vpack.c.b16 %v2023, %v2021
        %v2900 = vpack.c.b16 %v2026, %v2024
        %v2901 = vpack.c.b16 %v2027, %v2025
        %v2902 = vpack.c.b16 %v2030, %v2028
        %v2903 = vpack.c.b16 %v2031, %v2029
        %v2904 = vpack.c.b16 %v2034, %v2032
        %v2905 = vpack.c.b16 %v2035, %v2033
        %v2906 = vpack.c.b16 %v2038, %v2036
        %v2907 = vpack.c.b16 %v2039, %v2037
        %v2908 = vpack.c.b16 %v2042, %v2040
        %v2909 = vpack.c.b16 %v2043, %v2041
        %v2910 = vpack.c.b16 %v2046, %v2044
        %v2911 = vpack.c.b16 %v2047, %v2045
        %v2912 = vpack.c.b16 %v2050, %v2048
        %v2913 = vpack.c.b16 %v2051, %v2049
        %v2914 = vpack.c.b16 %v2054, %v2052
        %v2915 = vpack.c.b16 %v2055, %v2053
        %v2916 = vpack.c.b16 %v2058, %v2056
        %v2917 = vpack.c.b16 %v2059, %v2057
        %v2918 = vpack.c.b16 %v2062, %v2060
        %v2919 = vpack.c.b16 %v2063, %v2061
        %v2920 = vpack.c.b16 %v2066, %v2064
        %v2921 = vpack.c.b16 %v2067, %v2065
        %v2922 = vpack.c.b16 %v2070, %v2068
        %v2923 = vpack.c.b16 %v2071, %v2069
        %v2924 = vpack.c.b16 %v2074, %v2072
        %v2925 = vpack.c.b16 %v2075, %v2073
        %v2926 = vpack.c.b16 %v2078, %v2076
        %v2927 = vpack.c.b16 %v2079, %v2077
        %v2928 = vpack.c.b16 %v2082, %v2080
        %v2929 = vpack.c.b16 %v2083, %v2081
        %v2930 = vpack.c.b16 %v2086, %v2084
        %v2931 = vpack.c.b16 %v2087, %v2085
        %v2932 = vpack.c.b16 %v2090, %v2088
        %v2933 = vpack.c.b16 %v2091, %v2089
        %v2934 = vpack.c.b16 %v2094, %v2092
        %v2935 = vpack.c.b16 %v2095, %v2093
        %v2936 = vpack.c.b16 %v2098, %v2096
        %v2937 = vpack.c.b16 %v2099, %v2097
        %v2938 = vpack.c.b16 %v2102, %v2100
        %v2939 = vpack.c.b16 %v2103, %v2101
        %v2940 = vpack.c.b16 %v2106, %v2104
        %v2941 = vpack.c.b16 %v2107, %v2105
        %v2942 = vpack.c.b16 %v2110, %v2108
        %v2943 = vpack.c.b16 %v2111, %v2109
        %v2944 = vpack.c.b16 %v2114, %v2112
        %v2945 = vpack.c.b16 %v2115, %v2113
        %v2946 = vpack.c.b16 %v2118, %v2116
        %v2947 = vpack.c.b16 %v2119, %v2117
        %v2948 = vpack.c.b16 %v2122, %v2120
        %v2949 = vpack.c.b16 %v2123, %v2121
        %v2950 = vpack.c.b16 %v2126, %v2124
        %v2951 = vpack.c.b16 %v2127, %v2125
        %v2952 = vpack.c.b16 %v2130, %v2128
        %v2953 = vpack.c.b16 %v2131, %v2129
        %v2954 = vpack.c.b16 %v2134, %v2132
        %v2955 = vpack.c.b16 %v2135, %v2133
        %v2956 = vpack.c.b16 %v2138, %v2136
        %v2957 = vpack.c.b16 %v2139, %v2137
        %v2958 = vpack.c.b16 %v2142, %v2140
        %v2959 = vpack.c.b16 %v2143, %v2141
        %v2960 = vpack.c.b16 %v2146, %v2144
        %v2961 = vpack.c.b16 %v2147, %v2145
        %v2962 = vpack.c.b16 %v2150, %v2148
        %v2963 = vpack.c.b16 %v2151, %v2149
        %v2964 = vpack.c.b16 %v2154, %v2152
        %v2965 = vpack.c.b16 %v2155, %v2153
        %v2966 = vpack.c.b16 %v2158, %v2156
        %v2967 = vpack.c.b16 %v2159, %v2157
        %v2968 = vpack.c.b16 %v2162, %v2160
        %v2969 = vpack.c.b16 %v2163, %v2161
        %v2970 = vpack.c.b16 %v2166, %v2164
        %v2971 = vpack.c.b16 %v2167, %v2165
        %v2972 = vpack.c.b16 %v2170, %v2168
        %v2973 = vpack.c.b16 %v2171, %v2169
        %v2974 = vpack.c.b16 %v2174, %v2172
        %v2975 = vpack.c.b16 %v2175, %v2173
        %v2976 = vpack.c.b16 %v2178, %v2176
        %v2977 = vpack.c.b16 %v2179, %v2177
        %v2978 = vpack.c.b16 %v2182, %v2180
        %v2979 = vpack.c.b16 %v2183, %v2181
        %v2980 = vpack.c.b16 %v2186, %v2184
        %v2981 = vpack.c.b16 %v2187, %v2185
        %v2982 = vpack.c.b16 %v2190, %v2188
        %v2983 = vpack.c.b16 %v2191, %v2189
        %v2984 = vpack.c.b16 %v2194, %v2192
        %v2985 = vpack.c.b16 %v2195, %v2193
        %v2986 = vpack.c.b16 %v2198, %v2196
        %v2987 = vpack.c.b16 %v2199, %v2197
        %v2988 = vpack.c.b16 %v2202, %v2200
        %v2989 = vpack.c.b16 %v2203, %v2201
        %v2990 = vpack.c.b16 %v2206, %v2204
        %v2991 = vpack.c.b16 %v2207, %v2205
        %v2992 = vpack.c.b16 %v2210, %v2208
        %v2993 = vpack.c.b16 %v2211, %v2209
        %v2994 = vpack.c.b16 %v2214, %v2212
        %v2995 = vpack.c.b16 %v2215, %v2213
        %v2996 = vpack.c.b16 %v2218, %v2216
        %v2997 = vpack.c.b16 %v2219, %v2217
        %v2998 = vpack.c.b16 %v2222, %v2220
        %v2999 = vpack.c.b16 %v2223, %v2221
        %v3000 = vpack.c.b16 %v2226, %v2224
        %v3001 = vpack.c.b16 %v2227, %v2225
        %v3002 = vpack.c.b16 %v2230, %v2228
        %v3003 = vpack.c.b16 %v2231, %v2229
        %v3004 = vpack.c.b16 %v2234, %v2232
        %v3005 = vpack.c.b16 %v2235, %v2233
        %v3006 = vpack.c.b16 %v2238, %v2236
        %v3007 = vpack.c.b16 %v2239, %v2237
        %v3008 = vpack.c.b16 %v2242, %v2240
        %v3009 = vpack.c.b16 %v2243, %v2241
        %v3010 = vpack.c.b16 %v2246, %v2244
        %v3011 = vpack.c.b16 %v2247, %v2245
        %v3012 = vpack.c.b16 %v2250, %v2248
        %v3013 = vpack.c.b16 %v2251, %v2249
        %v3014 = vpack.c.b16 %v2254, %v2252
        %v3015 = vpack.c.b16 %v2255, %v2253
        %v3016 = vpack.c.b16 %v2258, %v2256
        %v3017 = vpack.c.b16 %v2259, %v2257
        %v3018 = vpack.c.b16 %v2262, %v2260
        %v3019 = vpack.c.b16 %v2263, %v2261
        %v3020 = vpack.c.b16 %v2266, %v2264
        %v3021 = vpack.c.b16 %v2267, %v2265
        %v3022 = vpack.c.b16 %v2270, %v2268
        %v3023 = vpack.c.b16 %v2271, %v2269
        %v3024 = vpack.c.b16 %v2274, %v2272
        %v3025 = vpack.c.b16 %v2275, %v2273
        %v3026 = vpack.c.b16 %v2278, %v2276
        %v3027 = vpack.c.b16 %v2279, %v2277
        %v3028 = vpack.c.b16 %v2282, %v2280
        %v3029 = vpack.c.b16 %v2283, %v2281
        %v3030 = vpack.c.b16 %v2286, %v2284
        %v3031 = vpack.c.b16 %v2287, %v2285
        %v3032 = vpack.c.b16 %v2290, %v2288
        %v3033 = vpack.c.b16 %v2291, %v2289
        %v3034 = vpack.c.b16 %v2294, %v2292
        %v3035 = vpack.c.b16 %v2295, %v2293
        %v3036 = vpack.c.b16 %v2298, %v2296
        %v3037 = vpack.c.b16 %v2299, %v2297
        %v3038 = vpack.c.b16 %v2302, %v2300
        %v3039 = vpack.c.b16 %v2303, %v2301
        %v3040 = vpack.c.b16 %v2306, %v2304
        %v3041 = vpack.c.b16 %v2307, %v2305
        %v3042 = vpack.c.b16 %v2310, %v2308
        %v3043 = vpack.c.b16 %v2311, %v2309
        %v3044 = vpack.c.b16 %v2314, %v2312
        %v3045 = vpack.c.b16 %v2315, %v2313
        %v3046 = vpack.c.b16 %v2318, %v2316
        %v3047 = vpack.c.b16 %v2319, %v2317
        %v3048 = vpack.c.b16 %v2322, %v2320
        %v3049 = vpack.c.b16 %v2323, %v2321
        %v3050 = vpack.c.b16 %v2326, %v2324
        %v3051 = vpack.c.b16 %v2327, %v2325
        %v3052 = vpack.c.b16 %v2330, %v2328
        %v3053 = vpack.c.b16 %v2331, %v2329
        %v3054 = vpack.c.b16 %v2334, %v2332
        %v3055 = vpack.c.b16 %v2335, %v2333
        %v3056 = vpack.c.b16 %v2338, %v2336
        %v3057 = vpack.c.b16 %v2339, %v2337
        %v3058 = vpack.c.b16 %v2342, %v2340
        %v3059 = vpack.c.b16 %v2343, %v2341
        %v3060 = vpack.c.b16 %v2346, %v2344
        %v3061 = vpack.c.b16 %v2347, %v2345
        %v3062 = vpack.c.b16 %v2350, %v2348
        %v3063 = vpack.c.b16 %v2351, %v2349
        %v3064 = vpack.c.b16 %v2354, %v2352
        %v3065 = vpack.c.b16 %v2355, %v2353
        %v3066 = vpack.c.b16 %v2358, %v2356
        %v3067 = vpack.c.b16 %v2359, %v2357
        %v3068 = vpack.c.b16 %v2362, %v2360
        %v3069 = vpack.c.b16 %v2363, %v2361
        %v3070 = vpack.c.b16 %v2366, %v2364
        %v3071 = vpack.c.b16 %v2367, %v2365
        %v3072 = vpack.c.b16 %v2370, %v2368
        %v3073 = vpack.c.b16 %v2371, %v2369
        %v3074 = vpack.c.b16 %v2374, %v2372
        %v3075 = vpack.c.b16 %v2375, %v2373
        %v3076 = vpack.c.b16 %v2378, %v2376
        %v3077 = vpack.c.b16 %v2379, %v2377
        %v3078 = vpack.c.b16 %v2382, %v2380
        %v3079 = vpack.c.b16 %v2383, %v2381
        %v3080 = vpack.c.b16 %v2386, %v2384
        %v3081 = vpack.c.b16 %v2387, %v2385
        %v3082 = vpack.c.b16 %v2390, %v2388
        %v3083 = vpack.c.b16 %v2391, %v2389
        %v3084 = vpack.c.b16 %v2394, %v2392
        %v3085 = vpack.c.b16 %v2395, %v2393
        %v3086 = vpack.c.b16 %v2398, %v2396
        %v3087 = vpack.c.b16 %v2399, %v2397
        %v3088 = vpack.c.b16 %v2402, %v2400
        %v3089 = vpack.c.b16 %v2403, %v2401
        %v3090 = vpack.c.b16 %v2406, %v2404
        %v3091 = vpack.c.b16 %v2407, %v2405
        %v3092 = vpack.c.b16 %v2410, %v2408
        %v3093 = vpack.c.b16 %v2411, %v2409
        %v3094 = vpack.c.b16 %v2414, %v2412
        %v3095 = vpack.c.b16 %v2415, %v2413
        %v3096 = vpack.c.b16 %v2418, %v2416
        %v3097 = vpack.c.b16 %v2419, %v2417
        %v3098 = vpack.c.b16 %v2422, %v2420
        %v3099 = vpack.c.b16 %v2423, %v2421
        %v3100 = vpack.c.b16 %v2426, %v2424
        %v3101 = vpack.c.b16 %v2427, %v2425
        %v3102 = vpack.c.b16 %v2430, %v2428
        %v3103 = vpack.c.b16 %v2431, %v2429
        %v3104 = vpack.c.b16 %v2434, %v2432
        %v3105 = vpack.c.b16 %v2435, %v2433
        %v3106 = vpack.c.b16 %v2438, %v2436
        %v3107 = vpack.c.b16 %v2439, %v2437
        %v3108 = vpack.c.b16 %v2442, %v2440
        %v3109 = vpack.c.b16 %v2443, %v2441
        %v3110 = vpack.c.b16 %v2446, %v2444
        %v3111 = vpack.c.b16 %v2447, %v2445
        %v3112 = vpack.c.b16 %v2450, %v2448
        %v3113 = vpack.c.b16 %v2451, %v2449
        %v3114 = vpack.c.b16 %v2454, %v2452
        %v3115 = vpack.c.b16 %v2455, %v2453
        %v3116 = vpack.c.b16 %v2458, %v2456
        %v3117 = vpack.c.b16 %v2459, %v2457
        %v3118 = vpack.c.b16 %v2462, %v2460
        %v3119 = vpack.c.b16 %v2463, %v2461
        %v3120 = vpack.c.b16 %v2466, %v2464
        %v3121 = vpack.c.b16 %v2467, %v2465
        %v3122 = vpack.c.b16 %v2470, %v2468
        %v3123 = vpack.c.b16 %v2471, %v2469
        %v3124 = vpack.c.b16 %v2474, %v2472
        %v3125 = vpack.c.b16 %v2475, %v2473
        %v3126 = vpack.c.b16 %v2478, %v2476
        %v3127 = vpack.c.b16 %v2479, %v2477
        %v3128 = vpack.c.b16 %v2482, %v2480
        %v3129 = vpack.c.b16 %v2483, %v2481
        %v3130 = vpack.c.b16 %v2486, %v2484
        %v3131 = vpack.c.b16 %v2487, %v2485
        %v3132 = vpack.c.b16 %v2490, %v2488
        %v3133 = vpack.c.b16 %v2491, %v2489
        %v3134 = vpack.c.b16 %v2494, %v2492
        %v3135 = vpack.c.b16 %v2495, %v2493
        %v3136 = vpack.c.b16 %v2498, %v2496
        %v3137 = vpack.c.b16 %v2499, %v2497
        %v3138 = vpack.c.b16 %v2502, %v2500
        %v3139 = vpack.c.b16 %v2503, %v2501
        %v3140 = vpack.c.b16 %v2506, %v2504
        %v3141 = vpack.c.b16 %v2507, %v2505
        %v3142 = vpack.c.b16 %v2510, %v2508
        %v3143 = vpack.c.b16 %v2511, %v2509
        %v3144 = vpack.c.b16 %v2514, %v2512
        %v3145 = vpack.c.b16 %v2515, %v2513
        %v3146 = vpack.c.b16 %v2518, %v2516
        %v3147 = vpack.c.b16 %v2519, %v2517
        %v3148 = vpack.c.b16 %v2522, %v2520
        %v3149 = vpack.c.b16 %v2523, %v2521
        %v3150 = vpack.c.b16 %v2526, %v2524
        %v3151 = vpack.c.b16 %v2527, %v2525
        %v3152 = vpack.c.b16 %v2530, %v2528
        %v3153 = vpack.c.b16 %v2531, %v2529
        %v3154 = vpack.c.b16 %v2534, %v2532
        %v3155 = vpack.c.b16 %v2535, %v2533
        %v3156 = vpack.c.b16 %v2538, %v2536
        %v3157 = vpack.c.b16 %v2539, %v2537
        %v3158 = vpack.c.b16 %v2542, %v2540
        %v3159 = vpack.c.b16 %v2543, %v2541
        %v3160 = vpack.c.b16 %v2546, %v2544
        %v3161 = vpack.c.b16 %v2547, %v2545
        %v3162 = vpack.c.b16 %v2550, %v2548
        %v3163 = vpack.c.b16 %v2551, %v2549
        %v3164 = vpack.c.b16 %v2554, %v2552
        %v3165 = vpack.c.b16 %v2555, %v2553
        %v3166 = vpack.c.b16 %v2558, %v2556
        %v3167 = vpack.c.b16 %v2559, %v2557
        %v3168 = vpack.c.b16 %v2562, %v2560
        %v3169 = vpack.c.b16 %v2563, %v2561
        %v3170 = vpack.c.b16 %v2566, %v2564
        %v3171 = vpack.c.b16 %v2567, %v2565
        %v3172 = vpack.c.b16 %v2570, %v2568
        %v3173 = vpack.c.b16 %v2571, %v2569
        %v3174 = vpack.c.b16 %v2574, %v2572
        %v3175 = vpack.c.b16 %v2575, %v2573
        %v3176 = vpack.c.b16 %v2578, %v2576
        %v3177 = vpack.c.b16 %v2579, %v2577
        %v3178 = vpack.c.b16 %v2582, %v2580
        %v3179 = vpack.c.b16 %v2583, %v2581
        %v3180 = vpack.c.b16 %v2586, %v2584
        %v3181 = vpack.c.b16 %v2587, %v2585
        %v3182 = vpack.c.b16 %v2590, %v2588
        %v3183 = vpack.c.b16 %v2591, %v2589
        %v3184 = vpack.c.b16 %v2594, %v2592
        %v3185 = vpack.c.b16 %v2595, %v2593
        %v3186 = vpack.c.b16 %v2598, %v2596
        %v3187 = vpack.c.b16 %v2599, %v2597
        %v3188 = vpack.c.b16 %v2602, %v2600
        %v3189 = vpack.c.b16 %v2603, %v2601
        %v3190 = vpack.c.b16 %v2606, %v2604
        %v3191 = vpack.c.b16 %v2607, %v2605
        %v3192 = vpack.c.b16 %v2610, %v2608
        %v3193 = vpack.c.b16 %v2611, %v2609
        %v3194 = vpack.c.b16 %v2614, %v2612
        %v3195 = vpack.c.b16 %v2615, %v2613
        %v3196 = vpack.c.b16 %v2618, %v2616
        %v3197 = vpack.c.b16 %v2619, %v2617
        %v3198 = vpack.c.b16 %v2622, %v2620
        %v3199 = vpack.c.b16 %v2623, %v2621
        %v3200 = vpack.c.b16 %v2626, %v2624
        %v3201 = vpack.c.b16 %v2627, %v2625
        %v3202 = vpack.c.b16 %v2630, %v2628
        %v3203 = vpack.c.b16 %v2631, %v2629
        %v3204 = vpack.c.b16 %v2634, %v2632
        %v3205 = vpack.c.b16 %v2635, %v2633
        %v3206 = vpack.c.b16 %v2638, %v2636
        %v3207 = vpack.c.b16 %v2639, %v2637
        %v3208 = vpack.c.b16 %v2642, %v2640
        %v3209 = vpack.c.b16 %v2643, %v2641
        %v3210 = vpack.c.b16 %v2646, %v2644
        %v3211 = vpack.c.b16 %v2647, %v2645
        %v3212 = vpack.c.b16 %v2650, %v2648
        %v3213 = vpack.c.b16 %v2651, %v2649
        %v3214 = vpack.c.b16 %v2654, %v2652
        %v3215 = vpack.c.b16 %v2655, %v2653
        %v3216 = vpack.c.b16 %v2658, %v2656
        %v3217 = vpack.c.b16 %v2659, %v2657
        %v3218 = vpack.c.b16 %v2662, %v2660
        %v3219 = vpack.c.b16 %v2663, %v2661
        %v3220 = vpack.c.b16 %v2666, %v2664
        %v3221 = vpack.c.b16 %v2667, %v2665
        %v3222 = vpack.c.b16 %v2670, %v2668
        %v3223 = vpack.c.b16 %v2671, %v2669
        %v3224 = vpack.c.b16 %v2674, %v2672
        %v3225 = vpack.c.b16 %v2675, %v2673
        %v3226 = vpack.c.b16 %v2678, %v2676
        %v3227 = vpack.c.b16 %v2679, %v2677
        %v3228 = vpack.c.b16 %v2682, %v2680
        %v3229 = vpack.c.b16 %v2683, %v2681
        %v3230 = vpack.c.b16 %v2686, %v2684
        %v3231 = vpack.c.b16 %v2687, %v2685
        %v3232 = vpack.c.b16 %v2690, %v2688
        %v3233 = vpack.c.b16 %v2691, %v2689
        %v3234 = vpack.c.b16 %v2694, %v2692
        %v3235 = vpack.c.b16 %v2695, %v2693
        %v3236 = vpack.c.b16 %v2698, %v2696
        %v3237 = vpack.c.b16 %v2699, %v2697
        %v3238 = vpack.c.b16 %v2702, %v2700
        %v3239 = vpack.c.b16 %v2703, %v2701
        %v3240 = vpack.c.b16 %v2706, %v2704
        %v3241 = vpack.c.b16 %v2707, %v2705
        %v3242 = vpack.c.b16 %v2710, %v2708
        %v3243 = vpack.c.b16 %v2711, %v2709
        %v3244 = vpack.c.b16 %v2714, %v2712
        %v3245 = vpack.c.b16 %v2715, %v2713
        %v3246 = vpack.c.b16 %v2718, %v2716
        %v3247 = vpack.c.b16 %v2719, %v2717
        %v3248 = vpack.c.b16 %v2722, %v2720
        %v3249 = vpack.c.b16 %v2723, %v2721
        %v3250 = vpack.c.b16 %v2726, %v2724
        %v3251 = vpack.c.b16 %v2727, %v2725
        %v3252 = vpack.c.b16 %v2730, %v2728
        %v3253 = vpack.c.b16 %v2731, %v2729
        %v3254 = vpack.c.b16 %v2734, %v2732
        %v3255 = vpack.c.b16 %v2735, %v2733
        %v3256 = vpack.c.b16 %v2738, %v2736
        %v3257 = vpack.c.b16 %v2739, %v2737
        %v3258 = vpack.c.b16 %v2742, %v2740
        %v3259 = vpack.c.b16 %v2743, %v2741
        %v3260 = vpack.c.b16 %v2746, %v2744
        %v3261 = vpack.c.b16 %v2747, %v2745
        %v3262 = vpack.c.b16 %v2750, %v2748
        %v3263 = vpack.c.b16 %v2751, %v2749
        %3776 = vmatprep.subr.bf16.mxu0 %v2753
        %3777 = vmatpush1.bf16.msra.mxu0 %v2752
        %3778 = vmatprep.subr.bf16.mxu0 %v2755
        %3779 = vmatpush1.bf16.msra.mxu0 %v2754
        %3780 = vmatprep.subr.bf16.mxu0 %v2757
        %3781 = vmatpush1.bf16.msra.mxu0 %v2756
        %3782 = vmatprep.subr.bf16.mxu0 %v2759
        %3783 = vmatpush1.bf16.msra.mxu0 %v2758
        %3784 = vmatprep.subr.bf16.mxu0 %v2761
        %3785 = vmatpush1.bf16.msra.mxu0 %v2760
        %3786 = vmatprep.subr.bf16.mxu0 %v2763
        %3787 = vmatpush1.bf16.msra.mxu0 %v2762
        %3788 = vmatprep.subr.bf16.mxu0 %v2765
        %3789 = vmatpush1.bf16.msra.mxu0 %v2764
        %3790 = vmatprep.subr.bf16.mxu0 %v2767
        %3791 = vmatpush1.bf16.msra.mxu0 %v2766
        %3792 = vmatprep.subr.bf16.mxu0 %v2769
        %3793 = vmatpush1.bf16.msra.mxu0 %v2768
        %3794 = vmatprep.subr.bf16.mxu0 %v2771
        %3795 = vmatpush1.bf16.msra.mxu0 %v2770
        %3796 = vmatprep.subr.bf16.mxu0 %v2773
        %3797 = vmatpush1.bf16.msra.mxu0 %v2772
        %3798 = vmatprep.subr.bf16.mxu0 %v2775
        %3799 = vmatpush1.bf16.msra.mxu0 %v2774
        %3800 = vmatprep.subr.bf16.mxu0 %v2777
        %3801 = vmatpush1.bf16.msra.mxu0 %v2776
        %3802 = vmatprep.subr.bf16.mxu0 %v2779
        %3803 = vmatpush1.bf16.msra.mxu0 %v2778
        %3804 = vmatprep.subr.bf16.mxu0 %v2781
        %3805 = vmatpush1.bf16.msra.mxu0 %v2780
        %3806 = vmatprep.subr.bf16.mxu0 %v2783
        %3807 = vmatpush1.bf16.msra.mxu0 %v2782
        %3808 = vmatprep.mubr.bf16.mxu0 %v1089
        %3809 = vmatmul.mubr.bf16.gmra.mrb[0].mxu0 %v1088
        %v3810 = vpop.f32.mrb[0].mxu0
        %v3811 = vadd.f32 %v889, %v3810
        %v3812 = vpop.f32.mrb[0].mxu0
        %v3813 = vadd.f32 %v893, %v3812
        %v3814 = vpop.f32.mrb[0].mxu0
        %v3815 = vadd.f32 %v889, %v3814
        %v3816 = vpop.f32.mrb[0].mxu0
        %v3817 = vadd.f32 %v893, %v3816
        %3818 = vmatprep.mubr.bf16.mxu0 %v1121
        %3819 = vmatmul.mubr.bf16.gmra.mrb[0].mxu0 %v1120
        %v3820 = vpop.f32.mrb[0].mxu0
        %v3821 = vadd.f32 %v889, %v3820
        %v3822 = vpop.f32.mrb[0].mxu0
        %v3823 = vadd.f32 %v893, %v3822
        %v3824 = vpop.f32.mrb[0].mxu0
        %v3825 = vadd.f32 %v889, %v3824
        %v3826 = vpop.f32.mrb[0].mxu0
        %v3827 = vadd.f32 %v893, %v3826
        %3828 = vdwg.mxu0
        %3829 = vmatprep.subr.bf16.mxu0 %v2785
        %3830 = vmatpush1.bf16.msra.mxu0 %v2784
        %3831 = vmatprep.subr.bf16.mxu0 %v2787
        %3832 = vmatpush1.bf16.msra.mxu0 %v2786
        %3833 = vmatprep.subr.bf16.mxu0 %v2789
        %3834 = vmatpush1.bf16.msra.mxu0 %v2788
        %3835 = vmatprep.subr.bf16.mxu0 %v2791
        %3836 = vmatpush1.bf16.msra.mxu0 %v2790
        %3837 = vmatprep.subr.bf16.mxu0 %v2793
        %3838 = vmatpush1.bf16.msra.mxu0 %v2792
        %3839 = vmatprep.subr.bf16.mxu0 %v2795
        %3840 = vmatpush1.bf16.msra.mxu0 %v2794
        %3841 = vmatprep.subr.bf16.mxu0 %v2797
        %3842 = vmatpush1.bf16.msra.mxu0 %v2796
        %3843 = vmatprep.subr.bf16.mxu0 %v2799
        %3844 = vmatpush1.bf16.msra.mxu0 %v2798
        %3845 = vmatprep.subr.bf16.mxu0 %v2801
        %3846 = vmatpush1.bf16.msra.mxu0 %v2800
        %3847 = vmatprep.subr.bf16.mxu0 %v2803
        %3848 = vmatpush1.bf16.msra.mxu0 %v2802
        %3849 = vmatprep.subr.bf16.mxu0 %v2805
        %3850 = vmatpush1.bf16.msra.mxu0 %v2804
        %3851 = vmatprep.subr.bf16.mxu0 %v2807
        %3852 = vmatpush1.bf16.msra.mxu0 %v2806
        %3853 = vmatprep.subr.bf16.mxu0 %v2809
        %3854 = vmatpush1.bf16.msra.mxu0 %v2808
        %3855 = vmatprep.subr.bf16.mxu0 %v2811
        %3856 = vmatpush1.bf16.msra.mxu0 %v2810
        %3857 = vmatprep.subr.bf16.mxu0 %v2813
        %3858 = vmatpush1.bf16.msra.mxu0 %v2812
        %3859 = vmatprep.subr.bf16.mxu0 %v2815
        %3860 = vmatpush1.bf16.msra.mxu0 %v2814
        %3861 = vmatprep.mubr.bf16.mxu0 %v1091
        %3862 = vmatmul.mubr.bf16.gmra.mrb[0].mxu0 %v1090
        %v3863 = vpop.f32.mrb[0].mxu0
        %v3864 = vadd.f32 %v3811, %v3863
        %v3865 = vpop.f32.mrb[0].mxu0
        %v3866 = vadd.f32 %v3813, %v3865
        %v3867 = vpop.f32.mrb[0].mxu0
        %v3868 = vadd.f32 %v3815, %v3867
        %v3869 = vpop.f32.mrb[0].mxu0
        %v3870 = vadd.f32 %v3817, %v3869
        %3871 = vmatprep.mubr.bf16.mxu0 %v1123
        %3872 = vmatmul.mubr.bf16.gmra.mrb[0].mxu0 %v1122
        %v3873 = vpop.f32.mrb[0].mxu0
        %v3874 = vadd.f32 %v3821, %v3873
        %v3875 = vpop.f32.mrb[0].mxu0
        %v3876 = vadd.f32 %v3823, %v3875
        %v3877 = vpop.f32.mrb[0].mxu0
        %v3878 = vadd.f32 %v3825, %v3877
        %v3879 = vpop.f32.mrb[0].mxu0
        %v3880 = vadd.f32 %v3827, %v3879
        %3881 = vdwg.mxu0
        %3882 = vmatprep.subr.bf16.mxu0 %v2817
        %3883 = vmatpush1.bf16.msra.mxu0 %v2816
        %3884 = vmatprep.subr.bf16.mxu0 %v2819
        %3885 = vmatpush1.bf16.msra.mxu0 %v2818
        %3886 = vmatprep.subr.bf16.mxu0 %v2821
        %3887 = vmatpush1.bf16.msra.mxu0 %v2820
        %3888 = vmatprep.subr.bf16.mxu0 %v2823
        %3889 = vmatpush1.bf16.msra.mxu0 %v2822
        %3890 = vmatprep.subr.bf16.mxu0 %v2825
        %3891 = vmatpush1.bf16.msra.mxu0 %v2824
        %3892 = vmatprep.subr.bf16.mxu0 %v2827
        %3893 = vmatpush1.bf16.msra.mxu0 %v2826
        %3894 = vmatprep.subr.bf16.mxu0 %v2829
        %3895 = vmatpush1.bf16.msra.mxu0 %v2828
        %3896 = vmatprep.subr.bf16.mxu0 %v2831
        %3897 = vmatpush1.bf16.msra.mxu0 %v2830
        %3898 = vmatprep.subr.bf16.mxu0 %v2833
        %3899 = vmatpush1.bf16.msra.mxu0 %v2832
        %3900 = vmatprep.subr.bf16.mxu0 %v2835
        %3901 = vmatpush1.bf16.msra.mxu0 %v2834
        %3902 = vmatprep.subr.bf16.mxu0 %v2837
        %3903 = vmatpush1.bf16.msra.mxu0 %v2836
        %3904 = vmatprep.subr.bf16.mxu0 %v2839
        %3905 = vmatpush1.bf16.msra.mxu0 %v2838
        %3906 = vmatprep.subr.bf16.mxu0 %v2841
        %3907 = vmatpush1.bf16.msra.mxu0 %v2840
        %3908 = vmatprep.subr.bf16.mxu0 %v2843
        %3909 = vmatpush1.bf16.msra.mxu0 %v2842
        %3910 = vmatprep.subr.bf16.mxu0 %v2845
        %3911 = vmatpush1.bf16.msra.mxu0 %v2844
        %3912 = vmatprep.subr.bf16.mxu0 %v2847
        %3913 = vmatpush1.bf16.msra.mxu0 %v2846
        %3914 = vmatprep.mubr.bf16.mxu0 %v1093
        %3915 = vmatmul.mubr.bf16.gmra.mrb[0].mxu0 %v1092
        %v3916 = vpop.f32.mrb[0].mxu0
        %v3917 = vadd.f32 %v3864, %v3916
        %v3918 = vpop.f32.mrb[0].mxu0
        %v3919 = vadd.f32 %v3866, %v3918
        %v3920 = vpop.f32.mrb[0].mxu0
        %v3921 = vadd.f32 %v3868, %v3920
        %v3922 = vpop.f32.mrb[0].mxu0
        %v3923 = vadd.f32 %v3870, %v3922
        %3924 = vmatprep.mubr.bf16.mxu0 %v1125
        %3925 = vmatmul.mubr.bf16.gmra.mrb[0].mxu0 %v1124
        %v3926 = vpop.f32.mrb[0].mxu0
        %v3927 = vadd.f32 %v3874, %v3926
        %v3928 = vpop.f32.mrb[0].mxu0
        %v3929 = vadd.f32 %v3876, %v3928
        %v3930 = vpop.f32.mrb[0].mxu0
        %v3931 = vadd.f32 %v3878, %v3930
        %v3932 = vpop.f32.mrb[0].mxu0
        %v3933 = vadd.f32 %v3880, %v3932
        %3934 = vdwg.mxu0
        %3935 = vmatprep.subr.bf16.mxu0 %v2849
        %3936 = vmatpush1.bf16.msra.mxu0 %v2848
        %3937 = vmatprep.subr.bf16.mxu0 %v2851
        %3938 = vmatpush1.bf16.msra.mxu0 %v2850
        %3939 = vmatprep.subr.bf16.mxu0 %v2853
        %3940 = vmatpush1.bf16.msra.mxu0 %v2852
        %3941 = vmatprep.subr.bf16.mxu0 %v2855
        %3942 = vmatpush1.bf16.msra.mxu0 %v2854
        %3943 = vmatprep.subr.bf16.mxu0 %v2857
        %3944 = vmatpush1.bf16.msra.mxu0 %v2856
        %3945 = vmatprep.subr.bf16.mxu0 %v2859
        %3946 = vmatpush1.bf16.msra.mxu0 %v2858
        %3947 = vmatprep.subr.bf16.mxu0 %v2861
        %3948 = vmatpush1.bf16.msra.mxu0 %v2860
        %3949 = vmatprep.subr.bf16.mxu0 %v2863
        %3950 = vmatpush1.bf16.msra.mxu0 %v2862
        %3951 = vmatprep.subr.bf16.mxu0 %v2865
        %3952 = vmatpush1.bf16.msra.mxu0 %v2864
        %3953 = vmatprep.subr.bf16.mxu0 %v2867
        %3954 = vmatpush1.bf16.msra.mxu0 %v2866
        %3955 = vmatprep.subr.bf16.mxu0 %v2869
        %3956 = vmatpush1.bf16.msra.mxu0 %v2868
        %3957 = vmatprep.subr.bf16.mxu0 %v2871
        %3958 = vmatpush1.bf16.msra.mxu0 %v2870
        %3959 = vmatprep.subr.bf16.mxu0 %v2873
        %3960 = vmatpush1.bf16.msra.mxu0 %v2872
        %3961 = vmatprep.subr.bf16.mxu0 %v2875
        %3962 = vmatpush1.bf16.msra.mxu0 %v2874
        %3963 = vmatprep.subr.bf16.mxu0 %v2877
        %3964 = vmatpush1.bf16.msra.mxu0 %v2876
        %3965 = vmatprep.subr.bf16.mxu0 %v2879
        %3966 = vmatpush1.bf16.msra.mxu0 %v2878
        %3967 = vmatprep.mubr.bf16.mxu0 %v1095
        %3968 = vmatmul.mubr.bf16.gmra.mrb[0].mxu0 %v1094
        %v3969 = vpop.f32.mrb[0].mxu0
        %v3970 = vadd.f32 %v3917, %v3969
        %v3971 = vpop.f32.mrb[0].mxu0
        %v3972 = vadd.f32 %v3919, %v3971
        %v3973 = vpop.f32.mrb[0].mxu0
        %v3974 = vadd.f32 %v3921, %v3973
        %v3975 = vpop.f32.mrb[0].mxu0
        %v3976 = vadd.f32 %v3923, %v3975
        %3977 = vmatprep.mubr.bf16.mxu0 %v1127
        %3978 = vmatmul.mubr.bf16.gmra.mrb[0].mxu0 %v1126
        %v3979 = vpop.f32.mrb[0].mxu0
        %v3980 = vadd.f32 %v3927, %v3979
        %v3981 = vpop.f32.mrb[0].mxu0
        %v3982 = vadd.f32 %v3929, %v3981
        %v3983 = vpop.f32.mrb[0].mxu0
        %v3984 = vadd.f32 %v3931, %v3983
        %v3985 = vpop.f32.mrb[0].mxu0
        %v3986 = vadd.f32 %v3933, %v3985
        %3987 = vdwg.mxu0
        %3988 = vmatprep.subr.bf16.mxu0 %v2881
        %3989 = vmatpush1.bf16.msra.mxu0 %v2880
        %3990 = vmatprep.subr.bf16.mxu0 %v2883
        %3991 = vmatpush1.bf16.msra.mxu0 %v2882
        %3992 = vmatprep.subr.bf16.mxu0 %v2885
        %3993 = vmatpush1.bf16.msra.mxu0 %v2884
        %3994 = vmatprep.subr.bf16.mxu0 %v2887
        %3995 = vmatpush1.bf16.msra.mxu0 %v2886
        %3996 = vmatprep.subr.bf16.mxu0 %v2889
        %3997 = vmatpush1.bf16.msra.mxu0 %v2888
        %3998 = vmatprep.subr.bf16.mxu0 %v2891
        %3999 = vmatpush1.bf16.msra.mxu0 %v2890
        %4000 = vmatprep.subr.bf16.mxu0 %v2893
        %4001 = vmatpush1.bf16.msra.mxu0 %v2892
        %4002 = vmatprep.subr.bf16.mxu0 %v2895
        %4003 = vmatpush1.bf16.msra.mxu0 %v2894
        %4004 = vmatprep.subr.bf16.mxu0 %v2897
        %4005 = vmatpush1.bf16.msra.mxu0 %v2896
        %4006 = vmatprep.subr.bf16.mxu0 %v2899
        %4007 = vmatpush1.bf16.msra.mxu0 %v2898
        %4008 = vmatprep.subr.bf16.mxu0 %v2901
        %4009 = vmatpush1.bf16.msra.mxu0 %v2900
        %4010 = vmatprep.subr.bf16.mxu0 %v2903
        %4011 = vmatpush1.bf16.msra.mxu0 %v2902
        %4012 = vmatprep.subr.bf16.mxu0 %v2905
        %4013 = vmatpush1.bf16.msra.mxu0 %v2904
        %4014 = vmatprep.subr.bf16.mxu0 %v2907
        %4015 = vmatpush1.bf16.msra.mxu0 %v2906
        %4016 = vmatprep.subr.bf16.mxu0 %v2909
        %4017 = vmatpush1.bf16.msra.mxu0 %v2908
        %4018 = vmatprep.subr.bf16.mxu0 %v2911
        %4019 = vmatpush1.bf16.msra.mxu0 %v2910
        %4020 = vmatprep.mubr.bf16.mxu0 %v1097
        %4021 = vmatmul.mubr.bf16.gmra.mrb[0].mxu0 %v1096
        %v4022 = vpop.f32.mrb[0].mxu0
        %v4023 = vadd.f32 %v3970, %v4022
        %v4024 = vpop.f32.mrb[0].mxu0
        %v4025 = vadd.f32 %v3972, %v4024
        %v4026 = vpop.f32.mrb[0].mxu0
        %v4027 = vadd.f32 %v3974, %v4026
        %v4028 = vpop.f32.mrb[0].mxu0
        %v4029 = vadd.f32 %v3976, %v4028
        %4030 = vmatprep.mubr.bf16.mxu0 %v1129
        %4031 = vmatmul.mubr.bf16.gmra.mrb[0].mxu0 %v1128
        %v4032 = vpop.f32.mrb[0].mxu0
        %v4033 = vadd.f32 %v3980, %v4032
        %v4034 = vpop.f32.mrb[0].mxu0
        %v4035 = vadd.f32 %v3982, %v4034
        %v4036 = vpop.f32.mrb[0].mxu0
        %v4037 = vadd.f32 %v3984, %v4036
        %v4038 = vpop.f32.mrb[0].mxu0
        %v4039 = vadd.f32 %v3986, %v4038
        %4040 = vdwg.mxu0
        %4041 = vmatprep.subr.bf16.mxu0 %v2913
        %4042 = vmatpush1.bf16.msra.mxu0 %v2912
        %4043 = vmatprep.subr.bf16.mxu0 %v2915
        %4044 = vmatpush1.bf16.msra.mxu0 %v2914
        %4045 = vmatprep.subr.bf16.mxu0 %v2917
        %4046 = vmatpush1.bf16.msra.mxu0 %v2916
        %4047 = vmatprep.subr.bf16.mxu0 %v2919
        %4048 = vmatpush1.bf16.msra.mxu0 %v2918
        %4049 = vmatprep.subr.bf16.mxu0 %v2921
        %4050 = vmatpush1.bf16.msra.mxu0 %v2920
        %4051 = vmatprep.subr.bf16.mxu0 %v2923
        %4052 = vmatpush1.bf16.msra.mxu0 %v2922
        %4053 = vmatprep.subr.bf16.mxu0 %v2925
        %4054 = vmatpush1.bf16.msra.mxu0 %v2924
        %4055 = vmatprep.subr.bf16.mxu0 %v2927
        %4056 = vmatpush1.bf16.msra.mxu0 %v2926
        %4057 = vmatprep.subr.bf16.mxu0 %v2929
        %4058 = vmatpush1.bf16.msra.mxu0 %v2928
        %4059 = vmatprep.subr.bf16.mxu0 %v2931
        %4060 = vmatpush1.bf16.msra.mxu0 %v2930
        %4061 = vmatprep.subr.bf16.mxu0 %v2933
        %4062 = vmatpush1.bf16.msra.mxu0 %v2932
        %4063 = vmatprep.subr.bf16.mxu0 %v2935
        %4064 = vmatpush1.bf16.msra.mxu0 %v2934
        %4065 = vmatprep.subr.bf16.mxu0 %v2937
        %4066 = vmatpush1.bf16.msra.mxu0 %v2936
        %4067 = vmatprep.subr.bf16.mxu0 %v2939
        %4068 = vmatpush1.bf16.msra.mxu0 %v2938
        %4069 = vmatprep.subr.bf16.mxu0 %v2941
        %4070 = vmatpush1.bf16.msra.mxu0 %v2940
        %4071 = vmatprep.subr.bf16.mxu0 %v2943
        %4072 = vmatpush1.bf16.msra.mxu0 %v2942
        %4073 = vmatprep.mubr.bf16.mxu0 %v1099
        %4074 = vmatmul.mubr.bf16.gmra.mrb[0].mxu0 %v1098
        %v4075 = vpop.f32.mrb[0].mxu0
        %v4076 = vadd.f32 %v4023, %v4075
        %v4077 = vpop.f32.mrb[0].mxu0
        %v4078 = vadd.f32 %v4025, %v4077
        %v4079 = vpop.f32.mrb[0].mxu0
        %v4080 = vadd.f32 %v4027, %v4079
        %v4081 = vpop.f32.mrb[0].mxu0
        %v4082 = vadd.f32 %v4029, %v4081
        %4083 = vmatprep.mubr.bf16.mxu0 %v1131
        %4084 = vmatmul.mubr.bf16.gmra.mrb[0].mxu0 %v1130
        %v4085 = vpop.f32.mrb[0].mxu0
        %v4086 = vadd.f32 %v4033, %v4085
        %v4087 = vpop.f32.mrb[0].mxu0
        %v4088 = vadd.f32 %v4035, %v4087
        %v4089 = vpop.f32.mrb[0].mxu0
        %v4090 = vadd.f32 %v4037, %v4089
        %v4091 = vpop.f32.mrb[0].mxu0
        %v4092 = vadd.f32 %v4039, %v4091
        %4093 = vdwg.mxu0
        %4094 = vmatprep.subr.bf16.mxu0 %v2945
        %4095 = vmatpush1.bf16.msra.mxu0 %v2944
        %4096 = vmatprep.subr.bf16.mxu0 %v2947
        %4097 = vmatpush1.bf16.msra.mxu0 %v2946
        %4098 = vmatprep.subr.bf16.mxu0 %v2949
        %4099 = vmatpush1.bf16.msra.mxu0 %v2948
        %4100 = vmatprep.subr.bf16.mxu0 %v2951
        %4101 = vmatpush1.bf16.msra.mxu0 %v2950
        %4102 = vmatprep.subr.bf16.mxu0 %v2953
        %4103 = vmatpush1.bf16.msra.mxu0 %v2952
        %4104 = vmatprep.subr.bf16.mxu0 %v2955
        %4105 = vmatpush1.bf16.msra.mxu0 %v2954
        %4106 = vmatprep.subr.bf16.mxu0 %v2957
        %4107 = vmatpush1.bf16.msra.mxu0 %v2956
        %4108 = vmatprep.subr.bf16.mxu0 %v2959
        %4109 = vmatpush1.bf16.msra.mxu0 %v2958
        %4110 = vmatprep.subr.bf16.mxu0 %v2961
        %4111 = vmatpush1.bf16.msra.mxu0 %v2960
        %4112 = vmatprep.subr.bf16.mxu0 %v2963
        %4113 = vmatpush1.bf16.msra.mxu0 %v2962
        %4114 = vmatprep.subr.bf16.mxu0 %v2965
        %4115 = vmatpush1.bf16.msra.mxu0 %v2964
        %4116 = vmatprep.subr.bf16.mxu0 %v2967
        %4117 = vmatpush1.bf16.msra.mxu0 %v2966
        %4118 = vmatprep.subr.bf16.mxu0 %v2969
        %4119 = vmatpush1.bf16.msra.mxu0 %v2968
        %4120 = vmatprep.subr.bf16.mxu0 %v2971
        %4121 = vmatpush1.bf16.msra.mxu0 %v2970
        %4122 = vmatprep.subr.bf16.mxu0 %v2973
        %4123 = vmatpush1.bf16.msra.mxu0 %v2972
        %4124 = vmatprep.subr.bf16.mxu0 %v2975
        %4125 = vmatpush1.bf16.msra.mxu0 %v2974
        %4126 = vmatprep.mubr.bf16.mxu0 %v1101
        %4127 = vmatmul.mubr.bf16.gmra.mrb[0].mxu0 %v1100
        %v4128 = vpop.f32.mrb[0].mxu0
        %v4129 = vadd.f32 %v4076, %v4128
        %v4130 = vpop.f32.mrb[0].mxu0
        %v4131 = vadd.f32 %v4078, %v4130
        %v4132 = vpop.f32.mrb[0].mxu0
        %v4133 = vadd.f32 %v4080, %v4132
        %v4134 = vpop.f32.mrb[0].mxu0
        %v4135 = vadd.f32 %v4082, %v4134
        %4136 = vmatprep.mubr.bf16.mxu0 %v1133
        %4137 = vmatmul.mubr.bf16.gmra.mrb[0].mxu0 %v1132
        %v4138 = vpop.f32.mrb[0].mxu0
        %v4139 = vadd.f32 %v4086, %v4138
        %v4140 = vpop.f32.mrb[0].mxu0
        %v4141 = vadd.f32 %v4088, %v4140
        %v4142 = vpop.f32.mrb[0].mxu0
        %v4143 = vadd.f32 %v4090, %v4142
        %v4144 = vpop.f32.mrb[0].mxu0
        %v4145 = vadd.f32 %v4092, %v4144
        %4146 = vdwg.mxu0
        %4147 = vmatprep.subr.bf16.mxu0 %v2977
        %4148 = vmatpush1.bf16.msra.mxu0 %v2976
        %4149 = vmatprep.subr.bf16.mxu0 %v2979
        %4150 = vmatpush1.bf16.msra.mxu0 %v2978
        %4151 = vmatprep.subr.bf16.mxu0 %v2981
        %4152 = vmatpush1.bf16.msra.mxu0 %v2980
        %4153 = vmatprep.subr.bf16.mxu0 %v2983
        %4154 = vmatpush1.bf16.msra.mxu0 %v2982
        %4155 = vmatprep.subr.bf16.mxu0 %v2985
        %4156 = vmatpush1.bf16.msra.mxu0 %v2984
        %4157 = vmatprep.subr.bf16.mxu0 %v2987
        %4158 = vmatpush1.bf16.msra.mxu0 %v2986
        %4159 = vmatprep.subr.bf16.mxu0 %v2989
        %4160 = vmatpush1.bf16.msra.mxu0 %v2988
        %4161 = vmatprep.subr.bf16.mxu0 %v2991
        %4162 = vmatpush1.bf16.msra.mxu0 %v2990
        %4163 = vmatprep.subr.bf16.mxu0 %v2993
        %4164 = vmatpush1.bf16.msra.mxu0 %v2992
        %4165 = vmatprep.subr.bf16.mxu0 %v2995
        %4166 = vmatpush1.bf16.msra.mxu0 %v2994
        %4167 = vmatprep.subr.bf16.mxu0 %v2997
        %4168 = vmatpush1.bf16.msra.mxu0 %v2996
        %4169 = vmatprep.subr.bf16.mxu0 %v2999
        %4170 = vmatpush1.bf16.msra.mxu0 %v2998
        %4171 = vmatprep.subr.bf16.mxu0 %v3001
        %4172 = vmatpush1.bf16.msra.mxu0 %v3000
        %4173 = vmatprep.subr.bf16.mxu0 %v3003
        %4174 = vmatpush1.bf16.msra.mxu0 %v3002
        %4175 = vmatprep.subr.bf16.mxu0 %v3005
        %4176 = vmatpush1.bf16.msra.mxu0 %v3004
        %4177 = vmatprep.subr.bf16.mxu0 %v3007
        %4178 = vmatpush1.bf16.msra.mxu0 %v3006
        %4179 = vmatprep.mubr.bf16.mxu0 %v1103
        %4180 = vmatmul.mubr.bf16.gmra.mrb[0].mxu0 %v1102
        %v4181 = vpop.f32.mrb[0].mxu0
        %v4182 = vadd.f32 %v4129, %v4181
        %v4183 = vpop.f32.mrb[0].mxu0
        %v4184 = vadd.f32 %v4131, %v4183
        %v4185 = vpop.f32.mrb[0].mxu0
        %v4186 = vadd.f32 %v4133, %v4185
        %v4187 = vpop.f32.mrb[0].mxu0
        %v4188 = vadd.f32 %v4135, %v4187
        %4189 = vmatprep.mubr.bf16.mxu0 %v1135
        %4190 = vmatmul.mubr.bf16.gmra.mrb[0].mxu0 %v1134
        %v4191 = vpop.f32.mrb[0].mxu0
        %v4192 = vadd.f32 %v4139, %v4191
        %v4193 = vpop.f32.mrb[0].mxu0
        %v4194 = vadd.f32 %v4141, %v4193
        %v4195 = vpop.f32.mrb[0].mxu0
        %v4196 = vadd.f32 %v4143, %v4195
        %v4197 = vpop.f32.mrb[0].mxu0
        %v4198 = vadd.f32 %v4145, %v4197
        %4199 = vdwg.mxu0
        %4200 = vmatprep.subr.bf16.mxu0 %v3009
        %4201 = vmatpush1.bf16.msra.mxu0 %v3008
        %4202 = vmatprep.subr.bf16.mxu0 %v3011
        %4203 = vmatpush1.bf16.msra.mxu0 %v3010
        %4204 = vmatprep.subr.bf16.mxu0 %v3013
        %4205 = vmatpush1.bf16.msra.mxu0 %v3012
        %4206 = vmatprep.subr.bf16.mxu0 %v3015
        %4207 = vmatpush1.bf16.msra.mxu0 %v3014
        %4208 = vmatprep.subr.bf16.mxu0 %v3017
        %4209 = vmatpush1.bf16.msra.mxu0 %v3016
        %4210 = vmatprep.subr.bf16.mxu0 %v3019
        %4211 = vmatpush1.bf16.msra.mxu0 %v3018
        %4212 = vmatprep.subr.bf16.mxu0 %v3021
        %4213 = vmatpush1.bf16.msra.mxu0 %v3020
        %4214 = vmatprep.subr.bf16.mxu0 %v3023
        %4215 = vmatpush1.bf16.msra.mxu0 %v3022
        %4216 = vmatprep.subr.bf16.mxu0 %v3025
        %4217 = vmatpush1.bf16.msra.mxu0 %v3024
        %4218 = vmatprep.subr.bf16.mxu0 %v3027
        %4219 = vmatpush1.bf16.msra.mxu0 %v3026
        %4220 = vmatprep.subr.bf16.mxu0 %v3029
        %4221 = vmatpush1.bf16.msra.mxu0 %v3028
        %4222 = vmatprep.subr.bf16.mxu0 %v3031
        %4223 = vmatpush1.bf16.msra.mxu0 %v3030
        %4224 = vmatprep.subr.bf16.mxu0 %v3033
        %4225 = vmatpush1.bf16.msra.mxu0 %v3032
        %4226 = vmatprep.subr.bf16.mxu0 %v3035
        %4227 = vmatpush1.bf16.msra.mxu0 %v3034
        %4228 = vmatprep.subr.bf16.mxu0 %v3037
        %4229 = vmatpush1.bf16.msra.mxu0 %v3036
        %4230 = vmatprep.subr.bf16.mxu0 %v3039
        %4231 = vmatpush1.bf16.msra.mxu0 %v3038
        %4232 = vmatprep.mubr.bf16.mxu0 %v1105
        %4233 = vmatmul.mubr.bf16.gmra.mrb[0].mxu0 %v1104
        %v4234 = vpop.f32.mrb[0].mxu0
        %v4235 = vadd.f32 %v4182, %v4234
        %v4236 = vpop.f32.mrb[0].mxu0
        %v4237 = vadd.f32 %v4184, %v4236
        %v4238 = vpop.f32.mrb[0].mxu0
        %v4239 = vadd.f32 %v4186, %v4238
        %v4240 = vpop.f32.mrb[0].mxu0
        %v4241 = vadd.f32 %v4188, %v4240
        %4242 = vmatprep.mubr.bf16.mxu0 %v1137
        %4243 = vmatmul.mubr.bf16.gmra.mrb[0].mxu0 %v1136
        %v4244 = vpop.f32.mrb[0].mxu0
        %v4245 = vadd.f32 %v4192, %v4244
        %v4246 = vpop.f32.mrb[0].mxu0
        %v4247 = vadd.f32 %v4194, %v4246
        %v4248 = vpop.f32.mrb[0].mxu0
        %v4249 = vadd.f32 %v4196, %v4248
        %v4250 = vpop.f32.mrb[0].mxu0
        %v4251 = vadd.f32 %v4198, %v4250
        %4252 = vdwg.mxu0
        %4253 = vmatprep.subr.bf16.mxu0 %v3041
        %4254 = vmatpush1.bf16.msra.mxu0 %v3040
        %4255 = vmatprep.subr.bf16.mxu0 %v3043
        %4256 = vmatpush1.bf16.msra.mxu0 %v3042
        %4257 = vmatprep.subr.bf16.mxu0 %v3045
        %4258 = vmatpush1.bf16.msra.mxu0 %v3044
        %4259 = vmatprep.subr.bf16.mxu0 %v3047
        %4260 = vmatpush1.bf16.msra.mxu0 %v3046
        %4261 = vmatprep.subr.bf16.mxu0 %v3049
        %4262 = vmatpush1.bf16.msra.mxu0 %v3048
        %4263 = vmatprep.subr.bf16.mxu0 %v3051
        %4264 = vmatpush1.bf16.msra.mxu0 %v3050
        %4265 = vmatprep.subr.bf16.mxu0 %v3053
        %4266 = vmatpush1.bf16.msra.mxu0 %v3052
        %4267 = vmatprep.subr.bf16.mxu0 %v3055
        %4268 = vmatpush1.bf16.msra.mxu0 %v3054
        %4269 = vmatprep.subr.bf16.mxu0 %v3057
        %4270 = vmatpush1.bf16.msra.mxu0 %v3056
        %4271 = vmatprep.subr.bf16.mxu0 %v3059
        %4272 = vmatpush1.bf16.msra.mxu0 %v3058
        %4273 = vmatprep.subr.bf16.mxu0 %v3061
        %4274 = vmatpush1.bf16.msra.mxu0 %v3060
        %4275 = vmatprep.subr.bf16.mxu0 %v3063
        %4276 = vmatpush1.bf16.msra.mxu0 %v3062
        %4277 = vmatprep.subr.bf16.mxu0 %v3065
        %4278 = vmatpush1.bf16.msra.mxu0 %v3064
        %4279 = vmatprep.subr.bf16.mxu0 %v3067
        %4280 = vmatpush1.bf16.msra.mxu0 %v3066
        %4281 = vmatprep.subr.bf16.mxu0 %v3069
        %4282 = vmatpush1.bf16.msra.mxu0 %v3068
        %4283 = vmatprep.subr.bf16.mxu0 %v3071
        %4284 = vmatpush1.bf16.msra.mxu0 %v3070
        %4285 = vmatprep.mubr.bf16.mxu0 %v1107
        %4286 = vmatmul.mubr.bf16.gmra.mrb[0].mxu0 %v1106
        %v4287 = vpop.f32.mrb[0].mxu0
        %v4288 = vadd.f32 %v4235, %v4287
        %v4289 = vpop.f32.mrb[0].mxu0
        %v4290 = vadd.f32 %v4237, %v4289
        %v4291 = vpop.f32.mrb[0].mxu0
        %v4292 = vadd.f32 %v4239, %v4291
        %v4293 = vpop.f32.mrb[0].mxu0
        %v4294 = vadd.f32 %v4241, %v4293
        %4295 = vmatprep.mubr.bf16.mxu0 %v1139
        %4296 = vmatmul.mubr.bf16.gmra.mrb[0].mxu0 %v1138
        %v4297 = vpop.f32.mrb[0].mxu0
        %v4298 = vadd.f32 %v4245, %v4297
        %v4299 = vpop.f32.mrb[0].mxu0
        %v4300 = vadd.f32 %v4247, %v4299
        %v4301 = vpop.f32.mrb[0].mxu0
        %v4302 = vadd.f32 %v4249, %v4301
        %v4303 = vpop.f32.mrb[0].mxu0
        %v4304 = vadd.f32 %v4251, %v4303
        %4305 = vdwg.mxu0
        %4306 = vmatprep.subr.bf16.mxu0 %v3073
        %4307 = vmatpush1.bf16.msra.mxu0 %v3072
        %4308 = vmatprep.subr.bf16.mxu0 %v3075
        %4309 = vmatpush1.bf16.msra.mxu0 %v3074
        %4310 = vmatprep.subr.bf16.mxu0 %v3077
        %4311 = vmatpush1.bf16.msra.mxu0 %v3076
        %4312 = vmatprep.subr.bf16.mxu0 %v3079
        %4313 = vmatpush1.bf16.msra.mxu0 %v3078
        %4314 = vmatprep.subr.bf16.mxu0 %v3081
        %4315 = vmatpush1.bf16.msra.mxu0 %v3080
        %4316 = vmatprep.subr.bf16.mxu0 %v3083
        %4317 = vmatpush1.bf16.msra.mxu0 %v3082
        %4318 = vmatprep.subr.bf16.mxu0 %v3085
        %4319 = vmatpush1.bf16.msra.mxu0 %v3084
        %4320 = vmatprep.subr.bf16.mxu0 %v3087
        %4321 = vmatpush1.bf16.msra.mxu0 %v3086
        %4322 = vmatprep.subr.bf16.mxu0 %v3089
        %4323 = vmatpush1.bf16.msra.mxu0 %v3088
        %4324 = vmatprep.subr.bf16.mxu0 %v3091
        %4325 = vmatpush1.bf16.msra.mxu0 %v3090
        %4326 = vmatprep.subr.bf16.mxu0 %v3093
        %4327 = vmatpush1.bf16.msra.mxu0 %v3092
        %4328 = vmatprep.subr.bf16.mxu0 %v3095
        %4329 = vmatpush1.bf16.msra.mxu0 %v3094
        %4330 = vmatprep.subr.bf16.mxu0 %v3097
        %4331 = vmatpush1.bf16.msra.mxu0 %v3096
        %4332 = vmatprep.subr.bf16.mxu0 %v3099
        %4333 = vmatpush1.bf16.msra.mxu0 %v3098
        %4334 = vmatprep.subr.bf16.mxu0 %v3101
        %4335 = vmatpush1.bf16.msra.mxu0 %v3100
        %4336 = vmatprep.subr.bf16.mxu0 %v3103
        %4337 = vmatpush1.bf16.msra.mxu0 %v3102
        %4338 = vmatprep.mubr.bf16.mxu0 %v1109
        %4339 = vmatmul.mubr.bf16.gmra.mrb[0].mxu0 %v1108
        %v4340 = vpop.f32.mrb[0].mxu0
        %v4341 = vadd.f32 %v4288, %v4340
        %v4342 = vpop.f32.mrb[0].mxu0
        %v4343 = vadd.f32 %v4290, %v4342
        %v4344 = vpop.f32.mrb[0].mxu0
        %v4345 = vadd.f32 %v4292, %v4344
        %v4346 = vpop.f32.mrb[0].mxu0
        %v4347 = vadd.f32 %v4294, %v4346
        %4348 = vmatprep.mubr.bf16.mxu0 %v1141
        %4349 = vmatmul.mubr.bf16.gmra.mrb[0].mxu0 %v1140
        %v4350 = vpop.f32.mrb[0].mxu0
        %v4351 = vadd.f32 %v4298, %v4350
        %v4352 = vpop.f32.mrb[0].mxu0
        %v4353 = vadd.f32 %v4300, %v4352
        %v4354 = vpop.f32.mrb[0].mxu0
        %v4355 = vadd.f32 %v4302, %v4354
        %v4356 = vpop.f32.mrb[0].mxu0
        %v4357 = vadd.f32 %v4304, %v4356
        %4358 = vdwg.mxu0
        %4359 = vmatprep.subr.bf16.mxu0 %v3105
        %4360 = vmatpush1.bf16.msra.mxu0 %v3104
        %4361 = vmatprep.subr.bf16.mxu0 %v3107
        %4362 = vmatpush1.bf16.msra.mxu0 %v3106
        %4363 = vmatprep.subr.bf16.mxu0 %v3109
        %4364 = vmatpush1.bf16.msra.mxu0 %v3108
        %4365 = vmatprep.subr.bf16.mxu0 %v3111
        %4366 = vmatpush1.bf16.msra.mxu0 %v3110
        %4367 = vmatprep.subr.bf16.mxu0 %v3113
        %4368 = vmatpush1.bf16.msra.mxu0 %v3112
        %4369 = vmatprep.subr.bf16.mxu0 %v3115
        %4370 = vmatpush1.bf16.msra.mxu0 %v3114
        %4371 = vmatprep.subr.bf16.mxu0 %v3117
        %4372 = vmatpush1.bf16.msra.mxu0 %v3116
        %4373 = vmatprep.subr.bf16.mxu0 %v3119
        %4374 = vmatpush1.bf16.msra.mxu0 %v3118
        %4375 = vmatprep.subr.bf16.mxu0 %v3121
        %4376 = vmatpush1.bf16.msra.mxu0 %v3120
        %4377 = vmatprep.subr.bf16.mxu0 %v3123
        %4378 = vmatpush1.bf16.msra.mxu0 %v3122
        %4379 = vmatprep.subr.bf16.mxu0 %v3125
        %4380 = vmatpush1.bf16.msra.mxu0 %v3124
        %4381 = vmatprep.subr.bf16.mxu0 %v3127
        %4382 = vmatpush1.bf16.msra.mxu0 %v3126
        %4383 = vmatprep.subr.bf16.mxu0 %v3129
        %4384 = vmatpush1.bf16.msra.mxu0 %v3128
        %4385 = vmatprep.subr.bf16.mxu0 %v3131
        %4386 = vmatpush1.bf16.msra.mxu0 %v3130
        %4387 = vmatprep.subr.bf16.mxu0 %v3133
        %4388 = vmatpush1.bf16.msra.mxu0 %v3132
        %4389 = vmatprep.subr.bf16.mxu0 %v3135
        %4390 = vmatpush1.bf16.msra.mxu0 %v3134
        %4391 = vmatprep.mubr.bf16.mxu0 %v1111
        %4392 = vmatmul.mubr.bf16.gmra.mrb[0].mxu0 %v1110
        %v4393 = vpop.f32.mrb[0].mxu0
        %v4394 = vadd.f32 %v4341, %v4393
        %v4395 = vpop.f32.mrb[0].mxu0
        %v4396 = vadd.f32 %v4343, %v4395
        %v4397 = vpop.f32.mrb[0].mxu0
        %v4398 = vadd.f32 %v4345, %v4397
        %v4399 = vpop.f32.mrb[0].mxu0
        %v4400 = vadd.f32 %v4347, %v4399
        %4401 = vmatprep.mubr.bf16.mxu0 %v1143
        %4402 = vmatmul.mubr.bf16.gmra.mrb[0].mxu0 %v1142
        %v4403 = vpop.f32.mrb[0].mxu0
        %v4404 = vadd.f32 %v4351, %v4403
        %v4405 = vpop.f32.mrb[0].mxu0
        %v4406 = vadd.f32 %v4353, %v4405
        %v4407 = vpop.f32.mrb[0].mxu0
        %v4408 = vadd.f32 %v4355, %v4407
        %v4409 = vpop.f32.mrb[0].mxu0
        %v4410 = vadd.f32 %v4357, %v4409
        %4411 = vdwg.mxu0
        %4412 = vmatprep.subr.bf16.mxu0 %v3137
        %4413 = vmatpush1.bf16.msra.mxu0 %v3136
        %4414 = vmatprep.subr.bf16.mxu0 %v3139
        %4415 = vmatpush1.bf16.msra.mxu0 %v3138
        %4416 = vmatprep.subr.bf16.mxu0 %v3141
        %4417 = vmatpush1.bf16.msra.mxu0 %v3140
        %4418 = vmatprep.subr.bf16.mxu0 %v3143
        %4419 = vmatpush1.bf16.msra.mxu0 %v3142
        %4420 = vmatprep.subr.bf16.mxu0 %v3145
        %4421 = vmatpush1.bf16.msra.mxu0 %v3144
        %4422 = vmatprep.subr.bf16.mxu0 %v3147
        %4423 = vmatpush1.bf16.msra.mxu0 %v3146
        %4424 = vmatprep.subr.bf16.mxu0 %v3149
        %4425 = vmatpush1.bf16.msra.mxu0 %v3148
        %4426 = vmatprep.subr.bf16.mxu0 %v3151
        %4427 = vmatpush1.bf16.msra.mxu0 %v3150
        %4428 = vmatprep.subr.bf16.mxu0 %v3153
        %4429 = vmatpush1.bf16.msra.mxu0 %v3152
        %4430 = vmatprep.subr.bf16.mxu0 %v3155
        %4431 = vmatpush1.bf16.msra.mxu0 %v3154
        %4432 = vmatprep.subr.bf16.mxu0 %v3157
        %4433 = vmatpush1.bf16.msra.mxu0 %v3156
        %4434 = vmatprep.subr.bf16.mxu0 %v3159
        %4435 = vmatpush1.bf16.msra.mxu0 %v3158
        %4436 = vmatprep.subr.bf16.mxu0 %v3161
        %4437 = vmatpush1.bf16.msra.mxu0 %v3160
        %4438 = vmatprep.subr.bf16.mxu0 %v3163
        %4439 = vmatpush1.bf16.msra.mxu0 %v3162
        %4440 = vmatprep.subr.bf16.mxu0 %v3165
        %4441 = vmatpush1.bf16.msra.mxu0 %v3164
        %4442 = vmatprep.subr.bf16.mxu0 %v3167
        %4443 = vmatpush1.bf16.msra.mxu0 %v3166
        %4444 = vmatprep.mubr.bf16.mxu0 %v1113
        %4445 = vmatmul.mubr.bf16.gmra.mrb[0].mxu0 %v1112
        %v4446 = vpop.f32.mrb[0].mxu0
        %v4447 = vadd.f32 %v4394, %v4446
        %v4448 = vpop.f32.mrb[0].mxu0
        %v4449 = vadd.f32 %v4396, %v4448
        %v4450 = vpop.f32.mrb[0].mxu0
        %v4451 = vadd.f32 %v4398, %v4450
        %v4452 = vpop.f32.mrb[0].mxu0
        %v4453 = vadd.f32 %v4400, %v4452
        %4454 = vmatprep.mubr.bf16.mxu0 %v1145
        %4455 = vmatmul.mubr.bf16.gmra.mrb[0].mxu0 %v1144
        %v4456 = vpop.f32.mrb[0].mxu0
        %v4457 = vadd.f32 %v4404, %v4456
        %v4458 = vpop.f32.mrb[0].mxu0
        %v4459 = vadd.f32 %v4406, %v4458
        %v4460 = vpop.f32.mrb[0].mxu0
        %v4461 = vadd.f32 %v4408, %v4460
        %v4462 = vpop.f32.mrb[0].mxu0
        %v4463 = vadd.f32 %v4410, %v4462
        %4464 = vdwg.mxu0
        %4465 = vmatprep.subr.bf16.mxu0 %v3169
        %4466 = vmatpush1.bf16.msra.mxu0 %v3168
        %4467 = vmatprep.subr.bf16.mxu0 %v3171
        %4468 = vmatpush1.bf16.msra.mxu0 %v3170
        %4469 = vmatprep.subr.bf16.mxu0 %v3173
        %4470 = vmatpush1.bf16.msra.mxu0 %v3172
        %4471 = vmatprep.subr.bf16.mxu0 %v3175
        %4472 = vmatpush1.bf16.msra.mxu0 %v3174
        %4473 = vmatprep.subr.bf16.mxu0 %v3177
        %4474 = vmatpush1.bf16.msra.mxu0 %v3176
        %4475 = vmatprep.subr.bf16.mxu0 %v3179
        %4476 = vmatpush1.bf16.msra.mxu0 %v3178
        %4477 = vmatprep.subr.bf16.mxu0 %v3181
        %4478 = vmatpush1.bf16.msra.mxu0 %v3180
        %4479 = vmatprep.subr.bf16.mxu0 %v3183
        %4480 = vmatpush1.bf16.msra.mxu0 %v3182
        %4481 = vmatprep.subr.bf16.mxu0 %v3185
        %4482 = vmatpush1.bf16.msra.mxu0 %v3184
        %4483 = vmatprep.subr.bf16.mxu0 %v3187
        %4484 = vmatpush1.bf16.msra.mxu0 %v3186
        %4485 = vmatprep.subr.bf16.mxu0 %v3189
        %4486 = vmatpush1.bf16.msra.mxu0 %v3188
        %4487 = vmatprep.subr.bf16.mxu0 %v3191
        %4488 = vmatpush1.bf16.msra.mxu0 %v3190
        %4489 = vmatprep.subr.bf16.mxu0 %v3193
        %4490 = vmatpush1.bf16.msra.mxu0 %v3192
        %4491 = vmatprep.subr.bf16.mxu0 %v3195
        %4492 = vmatpush1.bf16.msra.mxu0 %v3194
        %4493 = vmatprep.subr.bf16.mxu0 %v3197
        %4494 = vmatpush1.bf16.msra.mxu0 %v3196
        %4495 = vmatprep.subr.bf16.mxu0 %v3199
        %4496 = vmatpush1.bf16.msra.mxu0 %v3198
        %4497 = vmatprep.mubr.bf16.mxu0 %v1115
        %4498 = vmatmul.mubr.bf16.gmra.mrb[0].mxu0 %v1114
        %v4499 = vpop.f32.mrb[0].mxu0
        %v4500 = vadd.f32 %v4447, %v4499
        %v4501 = vpop.f32.mrb[0].mxu0
        %v4502 = vadd.f32 %v4449, %v4501
        %v4503 = vpop.f32.mrb[0].mxu0
        %v4504 = vadd.f32 %v4451, %v4503
        %v4505 = vpop.f32.mrb[0].mxu0
        %v4506 = vadd.f32 %v4453, %v4505
        %4507 = vmatprep.mubr.bf16.mxu0 %v1147
        %4508 = vmatmul.mubr.bf16.gmra.mrb[0].mxu0 %v1146
        %v4509 = vpop.f32.mrb[0].mxu0
        %v4510 = vadd.f32 %v4457, %v4509
        %v4511 = vpop.f32.mrb[0].mxu0
        %v4512 = vadd.f32 %v4459, %v4511
        %v4513 = vpop.f32.mrb[0].mxu0
        %v4514 = vadd.f32 %v4461, %v4513
        %v4515 = vpop.f32.mrb[0].mxu0
        %v4516 = vadd.f32 %v4463, %v4515
        %4517 = vdwg.mxu0
        %4518 = vmatprep.subr.bf16.mxu0 %v3201
        %4519 = vmatpush1.bf16.msra.mxu0 %v3200
        %4520 = vmatprep.subr.bf16.mxu0 %v3203
        %4521 = vmatpush1.bf16.msra.mxu0 %v3202
        %4522 = vmatprep.subr.bf16.mxu0 %v3205
        %4523 = vmatpush1.bf16.msra.mxu0 %v3204
        %4524 = vmatprep.subr.bf16.mxu0 %v3207
        %4525 = vmatpush1.bf16.msra.mxu0 %v3206
        %4526 = vmatprep.subr.bf16.mxu0 %v3209
        %4527 = vmatpush1.bf16.msra.mxu0 %v3208
        %4528 = vmatprep.subr.bf16.mxu0 %v3211
        %4529 = vmatpush1.bf16.msra.mxu0 %v3210
        %4530 = vmatprep.subr.bf16.mxu0 %v3213
        %4531 = vmatpush1.bf16.msra.mxu0 %v3212
        %4532 = vmatprep.subr.bf16.mxu0 %v3215
        %4533 = vmatpush1.bf16.msra.mxu0 %v3214
        %4534 = vmatprep.subr.bf16.mxu0 %v3217
        %4535 = vmatpush1.bf16.msra.mxu0 %v3216
        %4536 = vmatprep.subr.bf16.mxu0 %v3219
        %4537 = vmatpush1.bf16.msra.mxu0 %v3218
        %4538 = vmatprep.subr.bf16.mxu0 %v3221
        %4539 = vmatpush1.bf16.msra.mxu0 %v3220
        %4540 = vmatprep.subr.bf16.mxu0 %v3223
        %4541 = vmatpush1.bf16.msra.mxu0 %v3222
        %4542 = vmatprep.subr.bf16.mxu0 %v3225
        %4543 = vmatpush1.bf16.msra.mxu0 %v3224
        %4544 = vmatprep.subr.bf16.mxu0 %v3227
        %4545 = vmatpush1.bf16.msra.mxu0 %v3226
        %4546 = vmatprep.subr.bf16.mxu0 %v3229
        %4547 = vmatpush1.bf16.msra.mxu0 %v3228
        %4548 = vmatprep.subr.bf16.mxu0 %v3231
        %4549 = vmatpush1.bf16.msra.mxu0 %v3230
        %4550 = vmatprep.mubr.bf16.mxu0 %v1117
        %4551 = vmatmul.mubr.bf16.gmra.mrb[0].mxu0 %v1116
        %v4552 = vpop.f32.mrb[0].mxu0
        %v4553 = vadd.f32 %v4500, %v4552
        %v4554 = vpop.f32.mrb[0].mxu0
        %v4555 = vadd.f32 %v4502, %v4554
        %v4556 = vpop.f32.mrb[0].mxu0
        %v4557 = vadd.f32 %v4504, %v4556
        %v4558 = vpop.f32.mrb[0].mxu0
        %v4559 = vadd.f32 %v4506, %v4558
        %4560 = vmatprep.mubr.bf16.mxu0 %v1149
        %4561 = vmatmul.mubr.bf16.gmra.mrb[0].mxu0 %v1148
        %v4562 = vpop.f32.mrb[0].mxu0
        %v4563 = vadd.f32 %v4510, %v4562
        %v4564 = vpop.f32.mrb[0].mxu0
        %v4565 = vadd.f32 %v4512, %v4564
        %v4566 = vpop.f32.mrb[0].mxu0
        %v4567 = vadd.f32 %v4514, %v4566
        %v4568 = vpop.f32.mrb[0].mxu0
        %v4569 = vadd.f32 %v4516, %v4568
        %4570 = vdwg.mxu0
        %4571 = vmatprep.subr.bf16.mxu0 %v3233
        %4572 = vmatpush1.bf16.msra.mxu0 %v3232
        %4573 = vmatprep.subr.bf16.mxu0 %v3235
        %4574 = vmatpush1.bf16.msra.mxu0 %v3234
        %4575 = vmatprep.subr.bf16.mxu0 %v3237
        %4576 = vmatpush1.bf16.msra.mxu0 %v3236
        %4577 = vmatprep.subr.bf16.mxu0 %v3239
        %4578 = vmatpush1.bf16.msra.mxu0 %v3238
        %4579 = vmatprep.subr.bf16.mxu0 %v3241
        %4580 = vmatpush1.bf16.msra.mxu0 %v3240
        %4581 = vmatprep.subr.bf16.mxu0 %v3243
        %4582 = vmatpush1.bf16.msra.mxu0 %v3242
        %4583 = vmatprep.subr.bf16.mxu0 %v3245
        %4584 = vmatpush1.bf16.msra.mxu0 %v3244
        %4585 = vmatprep.subr.bf16.mxu0 %v3247
        %4586 = vmatpush1.bf16.msra.mxu0 %v3246
        %4587 = vmatprep.subr.bf16.mxu0 %v3249
        %4588 = vmatpush1.bf16.msra.mxu0 %v3248
        %4589 = vmatprep.subr.bf16.mxu0 %v3251
        %4590 = vmatpush1.bf16.msra.mxu0 %v3250
        %4591 = vmatprep.subr.bf16.mxu0 %v3253
        %4592 = vmatpush1.bf16.msra.mxu0 %v3252
        %4593 = vmatprep.subr.bf16.mxu0 %v3255
        %4594 = vmatpush1.bf16.msra.mxu0 %v3254
        %4595 = vmatprep.subr.bf16.mxu0 %v3257
        %4596 = vmatpush1.bf16.msra.mxu0 %v3256
        %4597 = vmatprep.subr.bf16.mxu0 %v3259
        %4598 = vmatpush1.bf16.msra.mxu0 %v3258
        %4599 = vmatprep.subr.bf16.mxu0 %v3261
        %4600 = vmatpush1.bf16.msra.mxu0 %v3260
        %4601 = vmatprep.subr.bf16.mxu0 %v3263
        %4602 = vmatpush1.bf16.msra.mxu0 %v3262
        %4603 = vmatprep.mubr.bf16.mxu0 %v1119
        %4604 = vmatmul.mubr.bf16.gmra.mrb[0].mxu0 %v1118
        %v4605 = vpop.f32.mrb[0].mxu0
        %v4606 = vadd.f32 %v4553, %v4605
        %v4607 = vpop.f32.mrb[0].mxu0
        %v4608 = vadd.f32 %v4555, %v4607
        %v4609 = vpop.f32.mrb[0].mxu0
        %v4610 = vadd.f32 %v4557, %v4609
        %v4611 = vpop.f32.mrb[0].mxu0
        %v4612 = vadd.f32 %v4559, %v4611
        %4613 = vmatprep.mubr.bf16.mxu0 %v1151
        %4614 = vmatmul.mubr.bf16.gmra.mrb[0].mxu0 %v1150
        %v4615 = vpop.f32.mrb[0].mxu0
        %v4616 = vadd.f32 %v4563, %v4615
        %v4617 = vpop.f32.mrb[0].mxu0
        %v4618 = vadd.f32 %v4565, %v4617
        %v4619 = vpop.f32.mrb[0].mxu0
        %v4620 = vadd.f32 %v4567, %v4619
        %v4621 = vpop.f32.mrb[0].mxu0
        %v4622 = vadd.f32 %v4569, %v4621
        %4623 = vdwg.mxu0
        %vm4624 = vcmp.gt.f32.partialorder %v4606, 0.0
        %vm4625 = vcmp.gt.f32.partialorder %v4608, 0.0
        %vm4626 = vcmp.gt.f32.partialorder %v4610, 0.0
        %vm4627 = vcmp.gt.f32.partialorder %v4612, 0.0
        %vm4628 = vcmp.gt.f32.partialorder %v4616, 0.0
        %vm4629 = vcmp.gt.f32.partialorder %v4618, 0.0
        %vm4630 = vcmp.gt.f32.partialorder %v4620, 0.0
        %vm4631 = vcmp.gt.f32.partialorder %v4622, 0.0
        %v4632 = vmul.f32 %v4606, 0.2
        %v4633 = vmul.f32 %v4608, 0.2
        %v4634 = vmul.f32 %v4610, 0.2
        %v4635 = vmul.f32 %v4612, 0.2
        %v4636 = vmul.f32 %v4616, 0.2
        %v4637 = vmul.f32 %v4618, 0.2
        %v4638 = vmul.f32 %v4620, 0.2
        %v4639 = vmul.f32 %v4622, 0.2
        %v4640 = vsel %vm4624, %v4606, %v4632
        %v4641 = vsel %vm4625, %v4608, %v4633
        %v4642 = vsel %vm4626, %v4610, %v4634
        %v4643 = vsel %vm4627, %v4612, %v4635
        %v4644 = vsel %vm4628, %v4616, %v4636
        %v4645 = vsel %vm4629, %v4618, %v4637
        %v4646 = vsel %vm4630, %v4620, %v4638
        %v4647 = vsel %vm4631, %v4622, %v4639
        %v4648 = vpack.c.bf16 %v4642, %v4640
        %v4649 = vpack.c.bf16 %v4643, %v4641
        %v4650 = vpack.c.bf16 %v4646, %v4644
        %v4651 = vpack.c.bf16 %v4647, %v4645
        %v4652 = vld [vmem:[#allocation6] sm:$0xf]
        %v4653 = vld [vmem:[#allocation6 + $0x4] sm:$0xf]
        %v4654 = vld [vmem:[#allocation6 + $0x8] sm:$0xf]
        %v4655 = vld [vmem:[#allocation6 + $0xc] sm:$0xf]
        %v4656 = vld [vmem:[#allocation6 + $0x10] sm:$0xf]
        %v4657 = vld [vmem:[#allocation6 + $0x14] sm:$0xf]
        %v4658 = vld [vmem:[#allocation6 + $0x18] sm:$0xf]
        %v4659 = vld [vmem:[#allocation6 + $0x1c] sm:$0xf]
        %v4660 = vld [vmem:[#allocation6 + $0x20] sm:$0xf]
        %v4661 = vld [vmem:[#allocation6 + $0x24] sm:$0xf]
        %v4662 = vld [vmem:[#allocation6 + $0x28] sm:$0xf]
        %v4663 = vld [vmem:[#allocation6 + $0x2c] sm:$0xf]
        %v4664 = vld [vmem:[#allocation6 + $0x30] sm:$0xf]
        %v4665 = vld [vmem:[#allocation6 + $0x34] sm:$0xf]
        %v4666 = vld [vmem:[#allocation6 + $0x38] sm:$0xf]
        %v4667 = vld [vmem:[#allocation6 + $0x3c] sm:$0xf]
        %v4668 = vld [vmem:[#allocation6 + $0x40] sm:$0xf]
        %v4669 = vld [vmem:[#allocation6 + $0x44] sm:$0xf]
        %v4670 = vld [vmem:[#allocation6 + $0x48] sm:$0xf]
        %v4671 = vld [vmem:[#allocation6 + $0x4c] sm:$0xf]
        %v4672 = vld [vmem:[#allocation6 + $0x50] sm:$0xf]
        %v4673 = vld [vmem:[#allocation6 + $0x54] sm:$0xf]
        %v4674 = vld [vmem:[#allocation6 + $0x58] sm:$0xf]
        %v4675 = vld [vmem:[#allocation6 + $0x5c] sm:$0xf]
        %v4676 = vld [vmem:[#allocation6 + $0x60] sm:$0xf]
        %v4677 = vld [vmem:[#allocation6 + $0x64] sm:$0xf]
        %v4678 = vld [vmem:[#allocation6 + $0x68] sm:$0xf]
        %v4679 = vld [vmem:[#allocation6 + $0x6c] sm:$0xf]
        %v4680 = vld [vmem:[#allocation6 + $0x70] sm:$0xf]
        %v4681 = vld [vmem:[#allocation6 + $0x74] sm:$0xf]
        %v4682 = vld [vmem:[#allocation6 + $0x78] sm:$0xf]
        %v4683 = vld [vmem:[#allocation6 + $0x7c] sm:$0xf]
        %v4716 = vunpack.c.l.b16 %v4652
        %v4717 = vunpack.c.l.b16 %v4653
        %v4718 = vunpack.c.l.b16 %v4654
        %v4719 = vunpack.c.l.b16 %v4655
        %v4720 = vunpack.c.l.b16 %v4656
        %v4721 = vunpack.c.l.b16 %v4657
        %v4722 = vunpack.c.l.b16 %v4658
        %v4723 = vunpack.c.l.b16 %v4659
        %v4724 = vunpack.c.l.b16 %v4660
        %v4725 = vunpack.c.l.b16 %v4661
        %v4726 = vunpack.c.l.b16 %v4662
        %v4727 = vunpack.c.l.b16 %v4663
        %v4728 = vunpack.c.l.b16 %v4664
        %v4729 = vunpack.c.l.b16 %v4665
        %v4730 = vunpack.c.l.b16 %v4666
        %v4731 = vunpack.c.l.b16 %v4667
        %v4732 = vunpack.c.l.b16 %v4668
        %v4733 = vunpack.c.l.b16 %v4669
        %v4734 = vunpack.c.l.b16 %v4670
        %v4735 = vunpack.c.l.b16 %v4671
        %v4736 = vunpack.c.l.b16 %v4672
        %v4737 = vunpack.c.l.b16 %v4673
        %v4738 = vunpack.c.l.b16 %v4674
        %v4739 = vunpack.c.l.b16 %v4675
        %v4740 = vunpack.c.l.b16 %v4676
        %v4741 = vunpack.c.l.b16 %v4677
        %v4742 = vunpack.c.l.b16 %v4678
        %v4743 = vunpack.c.l.b16 %v4679
        %v4744 = vunpack.c.l.b16 %v4680
        %v4745 = vunpack.c.l.b16 %v4681
        %v4746 = vunpack.c.l.b16 %v4682
        %v4747 = vunpack.c.l.b16 %v4683
        %v4748 = vpack.c.b16 %v4717, %v4716
        %v4749 = vpack.c.b16 %v4719, %v4718
        %v4750 = vpack.c.b16 %v4721, %v4720
        %v4751 = vpack.c.b16 %v4723, %v4722
        %v4752 = vpack.c.b16 %v4725, %v4724
        %v4753 = vpack.c.b16 %v4727, %v4726
        %v4754 = vpack.c.b16 %v4729, %v4728
        %v4755 = vpack.c.b16 %v4731, %v4730
        %v4756 = vpack.c.b16 %v4733, %v4732
        %v4757 = vpack.c.b16 %v4735, %v4734
        %v4758 = vpack.c.b16 %v4737, %v4736
        %v4759 = vpack.c.b16 %v4739, %v4738
        %v4760 = vpack.c.b16 %v4741, %v4740
        %v4761 = vpack.c.b16 %v4743, %v4742
        %v4762 = vpack.c.b16 %v4745, %v4744
        %v4763 = vpack.c.b16 %v4747, %v4746
        %4780 = vmatprep.subr.bf16.mxu0 0
        %4781 = vmatpush1.bf16.msra.mxu0 %v4748
        %4782 = vmatprep.subr.bf16.mxu0 0
        %4783 = vmatpush1.bf16.msra.mxu0 %v4749
        %4784 = vmatprep.subr.bf16.mxu0 0
        %4785 = vmatpush1.bf16.msra.mxu0 %v4750
        %4786 = vmatprep.subr.bf16.mxu0 0
        %4787 = vmatpush1.bf16.msra.mxu0 %v4751
        %4788 = vmatprep.subr.bf16.mxu0 0
        %4789 = vmatpush1.bf16.msra.mxu0 %v4752
        %4790 = vmatprep.subr.bf16.mxu0 0
        %4791 = vmatpush1.bf16.msra.mxu0 %v4753
        %4792 = vmatprep.subr.bf16.mxu0 0
        %4793 = vmatpush1.bf16.msra.mxu0 %v4754
        %4794 = vmatprep.subr.bf16.mxu0 0
        %4795 = vmatpush1.bf16.msra.mxu0 %v4755
        %4796 = vmatprep.subr.bf16.mxu0 0
        %4797 = vmatpush1.bf16.msra.mxu0 %v4756
        %4798 = vmatprep.subr.bf16.mxu0 0
        %4799 = vmatpush1.bf16.msra.mxu0 %v4757
        %4800 = vmatprep.subr.bf16.mxu0 0
        %4801 = vmatpush1.bf16.msra.mxu0 %v4758
        %4802 = vmatprep.subr.bf16.mxu0 0
        %4803 = vmatpush1.bf16.msra.mxu0 %v4759
        %4804 = vmatprep.subr.bf16.mxu0 0
        %4805 = vmatpush1.bf16.msra.mxu0 %v4760
        %4806 = vmatprep.subr.bf16.mxu0 0
        %4807 = vmatpush1.bf16.msra.mxu0 %v4761
        %4808 = vmatprep.subr.bf16.mxu0 0
        %4809 = vmatpush1.bf16.msra.mxu0 %v4762
        %4810 = vmatprep.subr.bf16.mxu0 0
        %4811 = vmatpush1.bf16.msra.mxu0 %v4763
        %4812 = vmatprep.mubr.bf16.mxu0 %v4649
        %4813 = vmatmul.mubr.bf16.gmra.mrb[0].mxu0 %v4648
        %v4814 = vpop.f32.mrb[0].mxu0
        %v4815 = vadd.f32 0.0, %v4814
        %v4816 = vpop.f32.mrb[0].mxu0
        %v4817 = vpop.f32.mrb[0].mxu0
        %v4818 = vadd.f32 0.0, %v4817
        %v4819 = vpop.f32.mrb[0].mxu0
        %4820 = vmatprep.mubr.bf16.mxu0 %v4651
        %4821 = vmatmul.mubr.bf16.gmra.mrb[0].mxu0 %v4650
        %v4822 = vpop.f32.mrb[0].mxu0
        %v4823 = vadd.f32 0.0, %v4822
        %v4824 = vpop.f32.mrb[0].mxu0
        %v4825 = vpop.f32.mrb[0].mxu0
        %v4826 = vadd.f32 0.0, %v4825
        %v4827 = vpop.f32.mrb[0].mxu0
        %4828 = vdwg.mxu0
        %v4829 = vtanh.pop %v4815
        %v4830 = vtanh.pop %v4818
        %v4831 = vtanh.pop %v4823
        %v4832 = vtanh.pop %v4826
        %4833 = vst [vmem:[%s305] sm:$0xff] %v4829
        %4834 = vst [vmem:[%s305 + $0x8] sm:$0xff] %v4830
        %4835 = vst [vmem:[%s305 + $0x10] sm:$0xff] %v4831
        %4836 = vst [vmem:[%s305 + $0x18] sm:$0xff] %v4832
        %s4837 = smul.u32 4, %s24
        %p4838 = scmp.lt.s32.totalorder %s23, 3
        %s4839 = scalar_select %p4838, %s23, 3
        %p4840 = scmp.lt.s32.totalorder %s4837, 3
        %s4841 = scalar_select %p4840, %s4837, 3
        %s4842 = smul.addr %s4839, 4
        %s4843 = sadd.s32 %s4841, %s4842
        %s4844 = smul.addr %s4843, 8
        %s4845 = scalar_lea.vmem %s4, %s4844
        // Predicated region
        $region49: #{generator_forward.3} parent=35 // pred_check
          %p4846 = pneg %p147
        $region50: #{generator_forward.3} parent=35 // pred_check_branch
          %4848 = sbr.rel (%p4846) target = $region52
        $region51: #{generator_forward.3} parent=35 // pred_region
          %s4849 = smul.u32 4, %s24
        $region52: #{generator_forward.3} parent=35 // pred_fallthru
          _
      $region36: #{generator_forward.3} parent=5 // pred_fallthru
        _
      %p4850 = scmp.le.s32.totalorder 2, %s14
      // Predicated region
      $region53: #{generator_forward.3} parent=5 // pred_check
        %p4851 = pneg %p4850
      $region54: #{generator_forward.3} parent=5 // pred_check_branch
        %4853 = sbr.rel (%p4851) target = $region56
      $region55: #{generator_forward.3} parent=5 // pred_region
        %s4854 = ssub.s32 %s14, 2
        // Predicated region
        $region57: #{generator_forward.3} parent=55 // pred_check
          %p4855 = pneg %p153
        $region58: #{generator_forward.3} parent=55 // pred_check_branch
          %4857 = sbr.rel (%p4855) target = $region60
        $region59: #{generator_forward.3} parent=55 // pred_region
          %s4858 = smul.u32 4, %s26
          %p4859 = scmp.lt.s32.totalorder %s25, 3
          %s4860 = scalar_select %p4859, %s25, 3
          %p4861 = scmp.lt.s32.totalorder %s4858, 3
          %s4862 = scalar_select %p4861, %s4858, 3
          %s4863 = smul.addr %s4860, 4
          %s4864 = sadd.s32 %s4862, %s4863
          %s4865 = smul.addr %s4864, 8
          %s4866 = scalar_lea.vmem %s4, %s4865
        $region60: #{generator_forward.3} parent=55 // pred_fallthru
          _
      $region56: #{generator_forward.3} parent=5 // pred_fallthru
        _
    $region6: #{generator_forward.3} parent=1 // loop_footer
      %s18 = sadd.s32 1, %s14
    $region7: #{generator_forward.3} parent=1 // loop_footer_branch
      %13 = sbr.rel target = $region3
    $region8: #{generator_forward.3} parent=1 // loop_exit
      _
    %4867 = vsyncpa [#allocation3], 1
    %s4868 = scalar_lea.sflag [#allocation3], 1
    %4869 = vsyncpa %s4868, 1
    %4870 = vsyncpa [#allocation5], 1

</llo_original>
